<compile_context>
chip_gen: v7x
topology: tpu7x:2x2x1
jax: 0.10.0
libtpu: 0.0.40
codegen_flags: <defaults>
</compile_context>

<pallas_src>
import jax
import jax.numpy as jnp
from jax.experimental import pallas as pl
from jax.experimental.pallas import tpu as pltpu

# ---- model sizes (opts) -----------------------------------------------------
USER_EMB_SIZE = 64      # opts.user_emb_size
ITEM_SIZE = 128         # opts.item_size
H1, H2, H3 = 1024, 256, 32
OUT_SIZE = ITEM_SIZE + USER_EMB_SIZE          # 192
PACKED_OUT = 256                              # OUT_SIZE padded to lane multiple
PACKED_VEC = 128                              # H3 padded to lane multiple


def _round_up(x, m):
    return -(-x // m) * m


def _tpu_config():
    """Returns (max_batch_tile, vmem_limit_bytes, tensorcores_per_chip)."""
    try:
        kind = jax.devices()[0].device_kind.lower()
    except Exception:
        kind = ""
    if "v7" in kind or "7x" in kind:
        # 64 MiB VMEM per TensorCore, 2 TCs: cap the tile, keep VMEM headroom,
        # and make sure medium batches produce >= 2 "parallel" grid steps.
        return 512, 48 * 1024 * 1024, 2
    if "v5" in kind or "v6" in kind:
        # 128 MiB physical VMEM, single TC: big tiles amortize per-step cost.
        return 1024, 96 * 1024 * 1024, 1
    # Unknown chip: conservative settings that fit every recent TPU.
    return 512, 48 * 1024 * 1024, 1


def autoencoder_kernel(user_emb_ref, user_ref,
                       ws1, bs1, ws2, bs2,              # side_fc_l1 / side_fc_l2
                       w1, b1, w2, b2, w3p, b3p,        # fc_l1 / fc_l2 / fc_l3 (l3 lane-padded)
                       rw1p, rb1, rw2, rb2, rw3p, rb3p, # rev_fc_l1/2/3 (l1 rows / l3 cols padded)
                       user_vec_ref, user_hat_ref):
    bf16 = lambda x: x.astype(jnp.bfloat16)

    def linear(x_bf16, w_ref, b_ref, relu=True):
        # bf16 MXU matmul, f32 accumulation; bias add / ReLU in f32 on the VPU.
        y = jnp.dot(x_bf16, w_ref[...], preferred_element_type=jnp.float32)
        y = y + b_ref[...]
        return jnp.maximum(y, 0.0) if relu else y

    # side branch: relu(L2(relu(L1(user_emb))))
    side = linear(user_emb_ref[...], ws1, bs1)
    side = linear(bf16(side), ws2, bs2)

    # user (implicit-ratings) branch: relu(L2(relu(L1(user.float()))))
    uv = linear(user_ref[...], w1, b1)
    uv = linear(bf16(uv), w2, b2)

    # bottleneck: user_vec = relu(L3(side + uv)); fc_l3 is zero-padded to 128
    # output lanes so the store is unmasked / lane-dense. Padded columns are
    # exactly zero (zero weights, zero bias, relu(0)=0).
    uv = linear(bf16(side + uv), w3p, b3p)
    user_vec_ref[...] = uv

    # decoder: rev_l3(relu(rev_l2(relu(rev_l1(uv)))))
    # rev_l1 has zero-padded input rows (matching the padded uv lanes);
    # rev_l3 is zero-padded to 256 columns -> lane-dense (unmasked) store.
    h = linear(bf16(uv), rw1p, rb1)
    h = linear(bf16(h), rw2, rb2)
    user_hat_ref[...] = linear(bf16(h), rw3p, rb3p, relu=False)


def pack_params(params):
    """One-time layout prep (hoisted out of the per-call hot path).

    Pads fc_l3 (32->128 output lanes), rev_fc_l1 (32->128 input rows) and
    rev_fc_l3 (192->256 output lanes) with zeros, and flattens to the kernel
    argument order.
    """
    (ws1, bs1), (ws2, bs2), (w1, b1), (w2, b2), (w3, b3), \
        (rw1, rb1), (rw2, rb2), (rw3, rb3) = params
    w3p = jnp.pad(w3, ((0, 0), (0, PACKED_VEC - H3)))
    b3p = jnp.pad(b3, ((0, 0), (0, PACKED_VEC - H3)))
    rw1p = jnp.pad(rw1, ((0, PACKED_VEC - H3), (0, 0)))
    rw3p = jnp.pad(rw3, ((0, 0), (0, PACKED_OUT - OUT_SIZE)))
    rb3p = jnp.pad(rb3, ((0, 0), (0, PACKED_OUT - OUT_SIZE)))
    return (ws1, bs1, ws2, bs2, w1, b1, w2, b2, w3p, b3p,
            rw1p, rb1, rw2, rb2, rw3p, rb3p)


def user_auto_encoder_forward(user_emb, user, packed_params):
    """Pallas-accelerated UserAutoEncoder.forward (forward/inference compute).

    Returns (user_vec, user_emb_hat, user_item_hat), matching the PyTorch model.
    `packed_params` comes from pack_params() (called once, outside the hot path).
    """
    B = user_emb.shape[0]
    max_tb, vmem_limit, n_cores = _tpu_config()

    # bf16 MXU inputs (half/quarter of the input DMA bytes; ratings are 0/1 so exact).
    user_emb_bf = user_emb.astype(jnp.bfloat16)
    user_bf = user.astype(jnp.bfloat16)

    # Batch tiling:
    #  * always a multiple of 8 rows (full sublanes, no masked layouts),
    #  * >= n_cores grid steps for medium/large batches so both v7x TCs work,
    #  * capped at the chip-specific max tile (VMEM budget / overhead tradeoff).
    min_steps = n_cores if B > 128 else 1
    tb = min(max_tb, _round_up(-(-B // min_steps), 8))
    b_pad = _round_up(B, tb)
    if b_pad != B:
        pad = b_pad - B
        user_emb_bf = jnp.pad(user_emb_bf, ((0, pad), (0, 0)))
        user_bf = jnp.pad(user_bf, ((0, pad), (0, 0)))

    def _const_spec(p):
        # grid-invariant weights / biases: same full block at every grid step
        return pl.BlockSpec(p.shape, lambda i: (0, 0))

    in_specs = [
        pl.BlockSpec((tb, USER_EMB_SIZE), lambda i: (i, 0)),
        pl.BlockSpec((tb, ITEM_SIZE), lambda i: (i, 0)),
    ] + [_const_spec(p) for p in packed_params]
    out_specs = [
        pl.BlockSpec((tb, PACKED_VEC), lambda i: (i, 0)),
        pl.BlockSpec((tb, PACKED_OUT), lambda i: (i, 0)),
    ]
    out_shape = (
        jax.ShapeDtypeStruct((b_pad, PACKED_VEC), jnp.float32),  # padded user_vec
        jax.ShapeDtypeStruct((b_pad, PACKED_OUT), jnp.float32),  # padded user_hat
    )

    user_vec, user_hat = pl.pallas_call(
        autoencoder_kernel,
        out_shape=out_shape,
        grid_spec=pltpu.PrefetchScalarGridSpec(
            num_scalar_prefetch=0,
            grid=(b_pad // tb,),
            in_specs=in_specs,
            out_specs=out_specs,
        ),
        compiler_params=pltpu.CompilerParams(
            dimension_semantics=("parallel",),   # shards batch steps across v7x TCs
            vmem_limit_bytes=vmem_limit,
        ),
    )(user_emb_bf, user_bf, *packed_params)

    # Free layout plumbing: undo batch/lane padding and split the output slab.
    user_vec = user_vec[:B, :H3]
    user_hat = user_hat[:B]
    user_item_hat = user_hat[:, :ITEM_SIZE]
    user_emb_hat = user_hat[:, ITEM_SIZE:OUT_SIZE]
    return user_vec, user_emb_hat, user_item_hat


# ---- deterministic parameter init (mirrors var_init / nn.Linear) ------------
def xavier_linear(key, fan_in, fan_out):
    kw, kb = jax.random.split(key)
    std = (2.0 / (fan_in + fan_out)) ** 0.5
    # stored already transposed to [in, out] for x @ W; bf16 for the MXU
    w = (std * jax.random.normal(kw, (fan_in, fan_out), dtype=jnp.float32)
         ).astype(jnp.bfloat16)
    bound = 1.0 / (fan_in ** 0.5)
    b = jax.random.uniform(kb, (1, fan_out), minval=-bound, maxval=bound,
                           dtype=jnp.float32)
    return w, b


def make_params(key):
    dims = [
        (USER_EMB_SIZE, H1),  # side_fc_l1
        (H1, H2),             # side_fc_l2
        (ITEM_SIZE, H1),      # fc_l1
        (H1, H2),             # fc_l2
        (H2, H3),             # fc_l3
        (H3, H2),             # rev_fc_l1
        (H2, H1),             # rev_fc_l2
        (H1, OUT_SIZE),       # rev_fc_l3
    ]
    keys = jax.random.split(key, len(dims))
    return [xavier_linear(k, i, o) for k, (i, o) in zip(keys, dims)]


# ---- plain-JAX reference (same bf16-matmul / f32-accumulate recipe) ---------
def reference_forward(user_emb, user, params):
    def lin(x, w, b, relu=True):
        y = jnp.dot(x.astype(jnp.bfloat16), w,
                    preferred_element_type=jnp.float32) + b
        return jnp.maximum(y, 0.0) if relu else y

    (ws1, bs1), (ws2, bs2), (w1, b1), (w2, b2), (w3, b3), \
        (rw1, rb1), (rw2, rb2), (rw3, rb3) = params
    side = lin(lin(user_emb, ws1, bs1), ws2, bs2)
    uv = lin(lin(user.astype(jnp.float32), w1, b1), w2, b2)
    uv = lin(side + uv, w3, b3)
    h = lin(lin(uv, rw1, rb1), rw2, rb2)
    user_hat = lin(h, rw3, rb3, relu=False)
    return uv, user_hat[:, ITEM_SIZE:], user_hat[:, :ITEM_SIZE]


if __name__ == "__main__":
    key = jax.random.PRNGKey(0)
    k_params, k_u2v, k_dat, k_idx = jax.random.split(key, 4)

    params = make_params(k_params)
    packed_params = pack_params(params)   # one-time layout prep (not per call)

    # AutoEncoder glue: frozen user2vec embedding table + implicit rating rows
    USER_SIZE = 32
    BATCH = 16
    user2vec = jax.random.normal(k_u2v, (USER_SIZE, USER_EMB_SIZE),
                                 dtype=jnp.float32)
    # user_dat: long tensor of implicit ratings (0/1), cast to float for the MXU
    user_dat = jax.random.bernoulli(k_dat, 0.3,
                                    (USER_SIZE, ITEM_SIZE)).astype(jnp.int32)

    sample_user_indices = jax.random.randint(k_idx, (BATCH,), 0, USER_SIZE)
    sample_user_emb = jnp.take(user2vec, sample_user_indices, axis=0)  # Embedding lookup (glue)
    sample_user = jnp.take(user_dat, sample_user_indices, axis=0)

    user_vec, user_emb_hat, user_item_hat = jax.block_until_ready(
        user_auto_encoder_forward(sample_user_emb, sample_user, packed_params))

    ref_vec, ref_emb_hat, ref_item_hat = reference_forward(
        sample_user_emb, sample_user, params)

    assert user_vec.shape == (BATCH, H3)
    assert user_emb_hat.shape == (BATCH, USER_EMB_SIZE)
    assert user_item_hat.shape == (BATCH, ITEM_SIZE)
    assert jnp.allclose(user_vec, ref_vec, atol=2e-2, rtol=2e-2)
    assert jnp.allclose(user_emb_hat, ref_emb_hat, atol=2e-2, rtol=2e-2)
    assert jnp.allclose(user_item_hat, ref_item_hat, atol=2e-2, rtol=2e-2)

    print("KERNEL_OK")
</pallas_src>

<mosaic_0001>
module attributes {stable_mosaic.version = 11 : i64} {
  func.func @autoencoder_kernel(%arg0: i32, %arg1: memref<16x64xbf16, #tpu.memory_space<vmem>>, %arg2: memref<16x128xbf16, #tpu.memory_space<vmem>>, %arg3: memref<64x1024xbf16, #tpu.memory_space<vmem>>, %arg4: memref<1x1024xf32, #tpu.memory_space<vmem>>, %arg5: memref<1024x256xbf16, #tpu.memory_space<vmem>>, %arg6: memref<1x256xf32, #tpu.memory_space<vmem>>, %arg7: memref<128x1024xbf16, #tpu.memory_space<vmem>>, %arg8: memref<1x1024xf32, #tpu.memory_space<vmem>>, %arg9: memref<1024x256xbf16, #tpu.memory_space<vmem>>, %arg10: memref<1x256xf32, #tpu.memory_space<vmem>>, %arg11: memref<256x128xbf16, #tpu.memory_space<vmem>>, %arg12: memref<1x128xf32, #tpu.memory_space<vmem>>, %arg13: memref<128x256xbf16, #tpu.memory_space<vmem>>, %arg14: memref<1x256xf32, #tpu.memory_space<vmem>>, %arg15: memref<256x1024xbf16, #tpu.memory_space<vmem>>, %arg16: memref<1x1024xf32, #tpu.memory_space<vmem>>, %arg17: memref<1024x256xbf16, #tpu.memory_space<vmem>>, %arg18: memref<1x256xf32, #tpu.memory_space<vmem>>, %arg19: memref<16x128xf32, #tpu.memory_space<vmem>>, %arg20: memref<16x256xf32, #tpu.memory_space<vmem>>) attributes {dimension_semantics = [#tpu.dimension_semantics<parallel>], iteration_bounds = array<i64: 1>, scalar_prefetch = 0 : i64, scratch_operands = 0 : i64, tpu.core_type = #tpu.core_type<tc>, window_params = [{transform_indices = @transform_0, window_bounds = array<i64: 16, 64>}, {transform_indices = @transform_1, window_bounds = array<i64: 16, 128>}, {pipeline_mode = #tpu.pipeline_mode<synchronous>, transform_indices = @transform_2, window_bounds = array<i64: 64, 1024>}, {pipeline_mode = #tpu.pipeline_mode<synchronous>, transform_indices = @transform_3, window_bounds = array<i64: 1, 1024>}, {pipeline_mode = #tpu.pipeline_mode<synchronous>, transform_indices = @transform_4, window_bounds = array<i64: 1024, 256>}, {pipeline_mode = #tpu.pipeline_mode<synchronous>, transform_indices = @transform_5, window_bounds = array<i64: 1, 256>}, {pipeline_mode = #tpu.pipeline_mode<synchronous>, transform_indices = @transform_6, window_bounds = array<i64: 128, 1024>}, {pipeline_mode = #tpu.pipeline_mode<synchronous>, transform_indices = @transform_7, window_bounds = array<i64: 1, 1024>}, {pipeline_mode = #tpu.pipeline_mode<synchronous>, transform_indices = @transform_8, window_bounds = array<i64: 1024, 256>}, {pipeline_mode = #tpu.pipeline_mode<synchronous>, transform_indices = @transform_9, window_bounds = array<i64: 1, 256>}, {pipeline_mode = #tpu.pipeline_mode<synchronous>, transform_indices = @transform_10, window_bounds = array<i64: 256, 128>}, {pipeline_mode = #tpu.pipeline_mode<synchronous>, transform_indices = @transform_11, window_bounds = array<i64: 1, 128>}, {pipeline_mode = #tpu.pipeline_mode<synchronous>, transform_indices = @transform_12, window_bounds = array<i64: 128, 256>}, {pipeline_mode = #tpu.pipeline_mode<synchronous>, transform_indices = @transform_13, window_bounds = array<i64: 1, 256>}, {pipeline_mode = #tpu.pipeline_mode<synchronous>, transform_indices = @transform_14, window_bounds = array<i64: 256, 1024>}, {pipeline_mode = #tpu.pipeline_mode<synchronous>, transform_indices = @transform_15, window_bounds = array<i64: 1, 1024>}, {pipeline_mode = #tpu.pipeline_mode<synchronous>, transform_indices = @transform_16, window_bounds = array<i64: 1024, 256>}, {pipeline_mode = #tpu.pipeline_mode<synchronous>, transform_indices = @transform_17, window_bounds = array<i64: 1, 256>}, {transform_indices = @transform_18, window_bounds = array<i64: 16, 128>}, {transform_indices = @transform_19, window_bounds = array<i64: 16, 256>}]} {
    %c0 = arith.constant 0 : index
    %c0_0 = arith.constant 0 : index
    %0 = vector.load %arg1[%c0, %c0_0] : memref<16x64xbf16, #tpu.memory_space<vmem>>, vector<16x64xbf16>
    %c0_1 = arith.constant 0 : index
    %c0_2 = arith.constant 0 : index
    %1 = vector.load %arg3[%c0_1, %c0_2] : memref<64x1024xbf16, #tpu.memory_space<vmem>>, vector<64x1024xbf16>
    %cst = arith.constant dense<0.000000e+00> : vector<16x1024xf32>
    %2 = tpu.matmul %0, %1, %cst {dimension_numbers = #tpu.dot_dimension_numbers<[1], [0], [0], [1], [0, 0, 1, 1], [], []>} : vector<16x64xbf16>, vector<64x1024xbf16>, vector<16x1024xf32> -> vector<16x1024xf32>
    %c0_3 = arith.constant 0 : index
    %c0_4 = arith.constant 0 : index
    %3 = vector.load %arg4[%c0_3, %c0_4] : memref<1x1024xf32, #tpu.memory_space<vmem>>, vector<1x1024xf32>
    %4 = vector.broadcast %3 : vector<1x1024xf32> to vector<16x1024xf32>
    %5 = arith.addf %2, %4 : vector<16x1024xf32>
    %cst_5 = arith.constant 0.000000e+00 : f32
    %6 = vector.broadcast %cst_5 : f32 to vector<16x1024xf32>
    %7 = arith.maximumf %5, %6 : vector<16x1024xf32>
    %8 = arith.truncf %7 : vector<16x1024xf32> to vector<16x1024xbf16>
    %c0_6 = arith.constant 0 : index
    %c0_7 = arith.constant 0 : index
    %9 = vector.load %arg5[%c0_6, %c0_7] : memref<1024x256xbf16, #tpu.memory_space<vmem>>, vector<1024x256xbf16>
    %cst_8 = arith.constant dense<0.000000e+00> : vector<16x256xf32>
    %10 = tpu.matmul %8, %9, %cst_8 {dimension_numbers = #tpu.dot_dimension_numbers<[1], [0], [0], [1], [0, 0, 1, 1], [], []>} : vector<16x1024xbf16>, vector<1024x256xbf16>, vector<16x256xf32> -> vector<16x256xf32>
    %c0_9 = arith.constant 0 : index
    %c0_10 = arith.constant 0 : index
    %11 = vector.load %arg6[%c0_9, %c0_10] : memref<1x256xf32, #tpu.memory_space<vmem>>, vector<1x256xf32>
    %12 = vector.broadcast %11 : vector<1x256xf32> to vector<16x256xf32>
    %13 = arith.addf %10, %12 : vector<16x256xf32>
    %cst_11 = arith.constant 0.000000e+00 : f32
    %14 = vector.broadcast %cst_11 : f32 to vector<16x256xf32>
    %15 = arith.maximumf %13, %14 : vector<16x256xf32>
    %c0_12 = arith.constant 0 : index
    %c0_13 = arith.constant 0 : index
    %16 = vector.load %arg2[%c0_12, %c0_13] : memref<16x128xbf16, #tpu.memory_space<vmem>>, vector<16x128xbf16>
    %c0_14 = arith.constant 0 : index
    %c0_15 = arith.constant 0 : index
    %17 = vector.load %arg7[%c0_14, %c0_15] : memref<128x1024xbf16, #tpu.memory_space<vmem>>, vector<128x1024xbf16>
    %cst_16 = arith.constant dense<0.000000e+00> : vector<16x1024xf32>
    %18 = tpu.matmul %16, %17, %cst_16 {dimension_numbers = #tpu.dot_dimension_numbers<[1], [0], [0], [1], [0, 0, 1, 1], [], []>} : vector<16x128xbf16>, vector<128x1024xbf16>, vector<16x1024xf32> -> vector<16x1024xf32>
    %c0_17 = arith.constant 0 : index
    %c0_18 = arith.constant 0 : index
    %19 = vector.load %arg8[%c0_17, %c0_18] : memref<1x1024xf32, #tpu.memory_space<vmem>>, vector<1x1024xf32>
    %20 = vector.broadcast %19 : vector<1x1024xf32> to vector<16x1024xf32>
    %21 = arith.addf %18, %20 : vector<16x1024xf32>
    %cst_19 = arith.constant 0.000000e+00 : f32
    %22 = vector.broadcast %cst_19 : f32 to vector<16x1024xf32>
    %23 = arith.maximumf %21, %22 : vector<16x1024xf32>
    %24 = arith.truncf %23 : vector<16x1024xf32> to vector<16x1024xbf16>
    %c0_20 = arith.constant 0 : index
    %c0_21 = arith.constant 0 : index
    %25 = vector.load %arg9[%c0_20, %c0_21] : memref<1024x256xbf16, #tpu.memory_space<vmem>>, vector<1024x256xbf16>
    %cst_22 = arith.constant dense<0.000000e+00> : vector<16x256xf32>
    %26 = tpu.matmul %24, %25, %cst_22 {dimension_numbers = #tpu.dot_dimension_numbers<[1], [0], [0], [1], [0, 0, 1, 1], [], []>} : vector<16x1024xbf16>, vector<1024x256xbf16>, vector<16x256xf32> -> vector<16x256xf32>
    %c0_23 = arith.constant 0 : index
    %c0_24 = arith.constant 0 : index
    %27 = vector.load %arg10[%c0_23, %c0_24] : memref<1x256xf32, #tpu.memory_space<vmem>>, vector<1x256xf32>
    %28 = vector.broadcast %27 : vector<1x256xf32> to vector<16x256xf32>
    %29 = arith.addf %26, %28 : vector<16x256xf32>
    %cst_25 = arith.constant 0.000000e+00 : f32
    %30 = vector.broadcast %cst_25 : f32 to vector<16x256xf32>
    %31 = arith.maximumf %29, %30 : vector<16x256xf32>
    %32 = arith.addf %15, %31 : vector<16x256xf32>
    %33 = arith.truncf %32 : vector<16x256xf32> to vector<16x256xbf16>
    %c0_26 = arith.constant 0 : index
    %c0_27 = arith.constant 0 : index
    %34 = vector.load %arg11[%c0_26, %c0_27] : memref<256x128xbf16, #tpu.memory_space<vmem>>, vector<256x128xbf16>
    %cst_28 = arith.constant dense<0.000000e+00> : vector<16x128xf32>
    %35 = tpu.matmul %33, %34, %cst_28 {dimension_numbers = #tpu.dot_dimension_numbers<[1], [0], [0], [1], [0, 0, 1, 1], [], []>} : vector<16x256xbf16>, vector<256x128xbf16>, vector<16x128xf32> -> vector<16x128xf32>
    %c0_29 = arith.constant 0 : index
    %c0_30 = arith.constant 0 : index
    %36 = vector.load %arg12[%c0_29, %c0_30] : memref<1x128xf32, #tpu.memory_space<vmem>>, vector<1x128xf32>
    %37 = vector.broadcast %36 : vector<1x128xf32> to vector<16x128xf32>
    %38 = arith.addf %35, %37 : vector<16x128xf32>
    %cst_31 = arith.constant 0.000000e+00 : f32
    %39 = vector.broadcast %cst_31 : f32 to vector<16x128xf32>
    %40 = arith.maximumf %38, %39 : vector<16x128xf32>
    %c0_32 = arith.constant 0 : index
    %c0_33 = arith.constant 0 : index
    %41 = vector.load %arg19[%c0_32, %c0_33] : memref<16x128xf32, #tpu.memory_space<vmem>>, vector<16x128xf32>
    tpu.vector_store %arg19[%c0_32, %c0_33], %40 {strides = array<i32>} : memref<16x128xf32, #tpu.memory_space<vmem>>, vector<16x128xf32>,
    %42 = arith.truncf %40 : vector<16x128xf32> to vector<16x128xbf16>
    %c0_34 = arith.constant 0 : index
    %c0_35 = arith.constant 0 : index
    %43 = vector.load %arg13[%c0_34, %c0_35] : memref<128x256xbf16, #tpu.memory_space<vmem>>, vector<128x256xbf16>
    %cst_36 = arith.constant dense<0.000000e+00> : vector<16x256xf32>
    %44 = tpu.matmul %42, %43, %cst_36 {dimension_numbers = #tpu.dot_dimension_numbers<[1], [0], [0], [1], [0, 0, 1, 1], [], []>} : vector<16x128xbf16>, vector<128x256xbf16>, vector<16x256xf32> -> vector<16x256xf32>
    %c0_37 = arith.constant 0 : index
    %c0_38 = arith.constant 0 : index
    %45 = vector.load %arg14[%c0_37, %c0_38] : memref<1x256xf32, #tpu.memory_space<vmem>>, vector<1x256xf32>
    %46 = vector.broadcast %45 : vector<1x256xf32> to vector<16x256xf32>
    %47 = arith.addf %44, %46 : vector<16x256xf32>
    %cst_39 = arith.constant 0.000000e+00 : f32
    %48 = vector.broadcast %cst_39 : f32 to vector<16x256xf32>
    %49 = arith.maximumf %47, %48 : vector<16x256xf32>
    %50 = arith.truncf %49 : vector<16x256xf32> to vector<16x256xbf16>
    %c0_40 = arith.constant 0 : index
    %c0_41 = arith.constant 0 : index
    %51 = vector.load %arg15[%c0_40, %c0_41] : memref<256x1024xbf16, #tpu.memory_space<vmem>>, vector<256x1024xbf16>
    %cst_42 = arith.constant dense<0.000000e+00> : vector<16x1024xf32>
    %52 = tpu.matmul %50, %51, %cst_42 {dimension_numbers = #tpu.dot_dimension_numbers<[1], [0], [0], [1], [0, 0, 1, 1], [], []>} : vector<16x256xbf16>, vector<256x1024xbf16>, vector<16x1024xf32> -> vector<16x1024xf32>
    %c0_43 = arith.constant 0 : index
    %c0_44 = arith.constant 0 : index
    %53 = vector.load %arg16[%c0_43, %c0_44] : memref<1x1024xf32, #tpu.memory_space<vmem>>, vector<1x1024xf32>
    %54 = vector.broadcast %53 : vector<1x1024xf32> to vector<16x1024xf32>
    %55 = arith.addf %52, %54 : vector<16x1024xf32>
    %cst_45 = arith.constant 0.000000e+00 : f32
    %56 = vector.broadcast %cst_45 : f32 to vector<16x1024xf32>
    %57 = arith.maximumf %55, %56 : vector<16x1024xf32>
    %58 = arith.truncf %57 : vector<16x1024xf32> to vector<16x1024xbf16>
    %c0_46 = arith.constant 0 : index
    %c0_47 = arith.constant 0 : index
    %59 = vector.load %arg17[%c0_46, %c0_47] : memref<1024x256xbf16, #tpu.memory_space<vmem>>, vector<1024x256xbf16>
    %cst_48 = arith.constant dense<0.000000e+00> : vector<16x256xf32>
    %60 = tpu.matmul %58, %59, %cst_48 {dimension_numbers = #tpu.dot_dimension_numbers<[1], [0], [0], [1], [0, 0, 1, 1], [], []>} : vector<16x1024xbf16>, vector<1024x256xbf16>, vector<16x256xf32> -> vector<16x256xf32>
    %c0_49 = arith.constant 0 : index
    %c0_50 = arith.constant 0 : index
    %61 = vector.load %arg18[%c0_49, %c0_50] : memref<1x256xf32, #tpu.memory_space<vmem>>, vector<1x256xf32>
    %62 = vector.broadcast %61 : vector<1x256xf32> to vector<16x256xf32>
    %63 = arith.addf %60, %62 : vector<16x256xf32>
    %c0_51 = arith.constant 0 : index
    %c0_52 = arith.constant 0 : index
    %64 = vector.load %arg20[%c0_51, %c0_52] : memref<16x256xf32, #tpu.memory_space<vmem>>, vector<16x256xf32>
    tpu.vector_store %arg20[%c0_51, %c0_52], %63 {strides = array<i32>} : memref<16x256xf32, #tpu.memory_space<vmem>>, vector<16x256xf32>,
    return
  }
  func.func @transform_0(%arg0: i32) -> (i32, i32) {
    %c0_i32 = arith.constant 0 : i32
    %c0_i32_0 = arith.constant 0 : i32
    return %arg0, %c0_i32 : i32, i32
  }
  func.func @transform_1(%arg0: i32) -> (i32, i32) {
    %c0_i32 = arith.constant 0 : i32
    %c0_i32_0 = arith.constant 0 : i32
    return %arg0, %c0_i32 : i32, i32
  }
  func.func @transform_2(%arg0: i32) -> (i32, i32) {
    %c0_i32 = arith.constant 0 : i32
    %c0_i32_0 = arith.constant 0 : i32
    %c0_i32_1 = arith.constant 0 : i32
    return %c0_i32, %c0_i32_0 : i32, i32
  }
  func.func @transform_3(%arg0: i32) -> (i32, i32) {
    %c0_i32 = arith.constant 0 : i32
    %c0_i32_0 = arith.constant 0 : i32
    %c0_i32_1 = arith.constant 0 : i32
    return %c0_i32, %c0_i32_0 : i32, i32
  }
  func.func @transform_4(%arg0: i32) -> (i32, i32) {
    %c0_i32 = arith.constant 0 : i32
    %c0_i32_0 = arith.constant 0 : i32
    %c0_i32_1 = arith.constant 0 : i32
    return %c0_i32, %c0_i32_0 : i32, i32
  }
  func.func @transform_5(%arg0: i32) -> (i32, i32) {
    %c0_i32 = arith.constant 0 : i32
    %c0_i32_0 = arith.constant 0 : i32
    %c0_i32_1 = arith.constant 0 : i32
    return %c0_i32, %c0_i32_0 : i32, i32
  }
  func.func @transform_6(%arg0: i32) -> (i32, i32) {
    %c0_i32 = arith.constant 0 : i32
    %c0_i32_0 = arith.constant 0 : i32
    %c0_i32_1 = arith.constant 0 : i32
    return %c0_i32, %c0_i32_0 : i32, i32
  }
  func.func @transform_7(%arg0: i32) -> (i32, i32) {
    %c0_i32 = arith.constant 0 : i32
    %c0_i32_0 = arith.constant 0 : i32
    %c0_i32_1 = arith.constant 0 : i32
    return %c0_i32, %c0_i32_0 : i32, i32
  }
  func.func @transform_8(%arg0: i32) -> (i32, i32) {
    %c0_i32 = arith.constant 0 : i32
    %c0_i32_0 = arith.constant 0 : i32
    %c0_i32_1 = arith.constant 0 : i32
    return %c0_i32, %c0_i32_0 : i32, i32
  }
  func.func @transform_9(%arg0: i32) -> (i32, i32) {
    %c0_i32 = arith.constant 0 : i32
    %c0_i32_0 = arith.constant 0 : i32
    %c0_i32_1 = arith.constant 0 : i32
    return %c0_i32, %c0_i32_0 : i32, i32
  }
  func.func @transform_10(%arg0: i32) -> (i32, i32) {
    %c0_i32 = arith.constant 0 : i32
    %c0_i32_0 = arith.constant 0 : i32
    %c0_i32_1 = arith.constant 0 : i32
    return %c0_i32, %c0_i32_0 : i32, i32
  }
  func.func @transform_11(%arg0: i32) -> (i32, i32) {
    %c0_i32 = arith.constant 0 : i32
    %c0_i32_0 = arith.constant 0 : i32
    %c0_i32_1 = arith.constant 0 : i32
    return %c0_i32, %c0_i32_0 : i32, i32
  }
  func.func @transform_12(%arg0: i32) -> (i32, i32) {
    %c0_i32 = arith.constant 0 : i32
    %c0_i32_0 = arith.constant 0 : i32
    %c0_i32_1 = arith.constant 0 : i32
    return %c0_i32, %c0_i32_0 : i32, i32
  }
  func.func @transform_13(%arg0: i32) -> (i32, i32) {
    %c0_i32 = arith.constant 0 : i32
    %c0_i32_0 = arith.constant 0 : i32
    %c0_i32_1 = arith.constant 0 : i32
    return %c0_i32, %c0_i32_0 : i32, i32
  }
  func.func @transform_14(%arg0: i32) -> (i32, i32) {
    %c0_i32 = arith.constant 0 : i32
    %c0_i32_0 = arith.constant 0 : i32
    %c0_i32_1 = arith.constant 0 : i32
    return %c0_i32, %c0_i32_0 : i32, i32
  }
  func.func @transform_15(%arg0: i32) -> (i32, i32) {
    %c0_i32 = arith.constant 0 : i32
    %c0_i32_0 = arith.constant 0 : i32
    %c0_i32_1 = arith.constant 0 : i32
    return %c0_i32, %c0_i32_0 : i32, i32
  }
  func.func @transform_16(%arg0: i32) -> (i32, i32) {
    %c0_i32 = arith.constant 0 : i32
    %c0_i32_0 = arith.constant 0 : i32
    %c0_i32_1 = arith.constant 0 : i32
    return %c0_i32, %c0_i32_0 : i32, i32
  }
  func.func @transform_17(%arg0: i32) -> (i32, i32) {
    %c0_i32 = arith.constant 0 : i32
    %c0_i32_0 = arith.constant 0 : i32
    %c0_i32_1 = arith.constant 0 : i32
    return %c0_i32, %c0_i32_0 : i32, i32
  }
  func.func @transform_18(%arg0: i32) -> (i32, i32) {
    %c0_i32 = arith.constant 0 : i32
    %c0_i32_0 = arith.constant 0 : i32
    return %arg0, %c0_i32 : i32, i32
  }
  func.func @transform_19(%arg0: i32) -> (i32, i32) {
    %c0_i32 = arith.constant 0 : i32
    %c0_i32_0 = arith.constant 0 : i32
    return %arg0, %c0_i32 : i32, i32
  }
}

</mosaic_0001>

<llo_original>
// kernel: tpu_custom_call.1
$region0: #{tpu_custom_call.1}
  #allocation0 [shape = 'u32[]', space=smem, size = 0x4, offset = 0x4, fixed_abs, tag = 'smem constant byte address 0x4 - core index']
  #allocation1 [shape = 'u32[144,128]{1,0:T(1,128)}', space=vmem, size = 0x12000, scoped, tag = 'internal scratch']
  %s0 = inlined_call_operand.hbm [shape: bf16[16,64], index: 0, kind: input, shape index: {}]
  %s1 = inlined_call_operand.hbm [shape: bf16[16,128], index: 1, kind: input, shape index: {}]
  %s2 = inlined_call_operand.hbm [shape: bf16[64,1024], index: 2, kind: input, shape index: {}]
  %s3 = inlined_call_operand.vmem [shape: f32[1,1024], index: 3, kind: input, shape index: {}]
  %s4 = inlined_call_operand.hbm [shape: bf16[1024,256], index: 4, kind: input, shape index: {}]
  %s5 = inlined_call_operand.vmem [shape: f32[1,256], index: 5, kind: input, shape index: {}]
  %s6 = inlined_call_operand.hbm [shape: bf16[128,1024], index: 6, kind: input, shape index: {}]
  %s7 = inlined_call_operand.vmem [shape: f32[1,1024], index: 7, kind: input, shape index: {}]
  %s8 = inlined_call_operand.hbm [shape: bf16[1024,256], index: 8, kind: input, shape index: {}]
  %s9 = inlined_call_operand.vmem [shape: f32[1,256], index: 9, kind: input, shape index: {}]
  %s10 = inlined_call_operand.hbm [shape: bf16[256,128], index: 10, kind: input, shape index: {}]
  %s11 = inlined_call_operand.vmem [shape: f32[1,128], index: 11, kind: input, shape index: {}]
  %s12 = inlined_call_operand.hbm [shape: bf16[128,256], index: 12, kind: input, shape index: {}]
  %s13 = inlined_call_operand.vmem [shape: f32[1,256], index: 13, kind: input, shape index: {}]
  %s14 = inlined_call_operand.hbm [shape: bf16[256,1024], index: 14, kind: input, shape index: {}]
  %s15 = inlined_call_operand.vmem [shape: f32[1,1024], index: 15, kind: input, shape index: {}]
  %s16 = inlined_call_operand.hbm [shape: bf16[1024,256], index: 16, kind: input, shape index: {}]
  %s17 = inlined_call_operand.vmem [shape: f32[1,256], index: 17, kind: input, shape index: {}]
  %s18 = inlined_call_operand.hbm [shape: f32[16,128], index: 18, kind: output, shape index: {0}]
  %s19 = inlined_call_operand.hbm [shape: f32[16,256], index: 19, kind: output, shape index: {1}]
  %20 = xla_tuple %s18, %s19
  %s21 = sld [smem:[#allocation0]]
  $region130: #{tpu_custom_call.1} parent=0
    _
  %s23 = ssub.s32 1, %s21
  %s24 = scalar_select 0, %s23, %s21
  $region1: #{tpu_custom_call.1} parent=0
    #allocation2 [shape = 'u8[4096]{0}', space=vmem, size = 0x1000, scoped, tag = 'input window, operand 0, single buffered']
    #allocation3 [shape = 's32[1]{0}', space=sflag, size = 0x4, scoped, tag = 'scoped memory for tpu_custom_call.1']
    #allocation4 [shape = 's32[1]{0}', space=sflag, size = 0x4, scoped, tag = 'scoped memory for tpu_custom_call.1']
    #allocation5 [shape = 'u8[4096]{0}', space=vmem, size = 0x1000, scoped, tag = 'input window, operand 1, single buffered']
    #allocation6 [shape = 's32[1]{0}', space=sflag, size = 0x4, scoped, tag = 'scoped memory for tpu_custom_call.1']
    #allocation7 [shape = 'u8[131072]{0}', space=vmem, size = 0x20000, scoped, tag = 'input window, operand 2, single buffered']
    #allocation8 [shape = 'u8[524288]{0}', space=vmem, size = 0x80000, scoped, tag = 'input window, operand 4, single buffered']
    #allocation9 [shape = 's32[1]{0}', space=sflag, size = 0x4, scoped, tag = 'scoped memory for tpu_custom_call.1']
    #allocation10 [shape = 'u8[262144]{0}', space=vmem, size = 0x40000, scoped, tag = 'input window, operand 6, single buffered']
    #allocation11 [shape = 'u8[524288]{0}', space=vmem, size = 0x80000, scoped, tag = 'input window, operand 8, single buffered']
    #allocation12 [shape = 's32[1]{0}', space=sflag, size = 0x4, scoped, tag = 'scoped memory for tpu_custom_call.1']
    #allocation13 [shape = 'u8[65536]{0}', space=vmem, size = 0x10000, scoped, tag = 'input window, operand 10, single buffered']
    #allocation14 [shape = 'u8[65536]{0}', space=vmem, size = 0x10000, scoped, tag = 'input window, operand 12, single buffered']
    #allocation15 [shape = 's32[1]{0}', space=sflag, size = 0x4, scoped, tag = 'scoped memory for tpu_custom_call.1']
    #allocation16 [shape = 'u8[524288]{0}', space=vmem, size = 0x80000, scoped, tag = 'input window, operand 14, single buffered']
    #allocation17 [shape = 'u8[524288]{0}', space=vmem, size = 0x80000, scoped, tag = 'input window, operand 16, single buffered']
    #allocation18 [shape = 's32[1]{0}', space=sflag, size = 0x4, scoped, tag = 'scoped memory for tpu_custom_call.1']
    #allocation19 [shape = 'u8[8192]{0}', space=vmem, size = 0x2000, scoped, tag = 'output window, operand 0, single buffered']
    #allocation20 [shape = 'u8[16384]{0}', space=vmem, size = 0x4000, scoped, tag = 'output window, operand 1, single buffered']
    #allocation21 [shape = 's32[1]{0}', space=sflag, size = 0x4, scoped, tag = 'scoped memory for tpu_custom_call.1']
    %25 = vsyncpa [#allocation3], 0
    %26 = vsyncpa [#allocation6], 0
    %27 = vsyncpa [#allocation9], 0
    %28 = vsyncpa [#allocation12], 0
    %29 = vsyncpa [#allocation15], 0
    %30 = vsyncpa [#allocation18], 0
    %31 = vsyncpa [#allocation4], 0
    %32 = vsyncpa [#allocation21], 0
    // Predicated region
    $region2: #{tpu_custom_call.1} parent=1 // pred_check
      _
    $region3: #{tpu_custom_call.1} parent=1 // pred_check_branch
      %34 = sbr.rel (0) target = $region5
    $region4: #{tpu_custom_call.1} parent=1 // pred_region
      %s36 = ssub.s32 128, 128
      %37 = vsyncadd [#allocation3], %s36
      %s38 = sshll.u32 [#allocation2], 4
      %s39 = int_to_ptr.vmem [resolvable:$true] %s38
      %44 = dma.hbm_to_vmem [thread:$0]  %s0, 128, %s39, [#allocation3], 64, 64, 4
    $region5: #{tpu_custom_call.1} parent=1 // pred_fallthru
      _
    // Predicated region
    $region6: #{tpu_custom_call.1} parent=1 // pred_check
      _
    $region7: #{tpu_custom_call.1} parent=1 // pred_check_branch
      %46 = sbr.rel (0) target = $region9
    $region8: #{tpu_custom_call.1} parent=1 // pred_region
      %s48 = ssub.s32 128, 128
      %49 = vsyncadd [#allocation6], %s48
      %s50 = sshll.u32 [#allocation5], 4
      %s51 = int_to_ptr.vmem [resolvable:$true] %s50
      %56 = dma.hbm_to_vmem [thread:$0]  %s1, 128, %s51, [#allocation6], 64, 64, 4
    $region9: #{tpu_custom_call.1} parent=1 // pred_fallthru
      _
    // Predicated region
    $region10: #{tpu_custom_call.1} parent=1 // pred_check
      _
    $region11: #{tpu_custom_call.1} parent=1 // pred_check_branch
      %58 = sbr.rel (0) target = $region13
    $region12: #{tpu_custom_call.1} parent=1 // pred_region
      %s60 = ssub.s32 4096, 4096
      %61 = vsyncadd [#allocation6], %s60
      %s62 = sshll.u32 [#allocation7], 4
      %s63 = int_to_ptr.vmem [resolvable:$true] %s62
      %68 = dma.hbm_to_vmem [thread:$0]  %s2, 4096, %s63, [#allocation6], 512, 512, 32
    $region13: #{tpu_custom_call.1} parent=1 // pred_fallthru
      _
    // Predicated region
    $region14: #{tpu_custom_call.1} parent=1 // pred_check
      _
    $region15: #{tpu_custom_call.1} parent=1 // pred_check_branch
      %70 = sbr.rel (0) target = $region17
    $region16: #{tpu_custom_call.1} parent=1 // pred_region
      _
    $region17: #{tpu_custom_call.1} parent=1 // pred_fallthru
      _
    // Predicated region
    $region18: #{tpu_custom_call.1} parent=1 // pred_check
      _
    $region19: #{tpu_custom_call.1} parent=1 // pred_check_branch
      %72 = sbr.rel (0) target = $region21
    $region20: #{tpu_custom_call.1} parent=1 // pred_region
      %s74 = ssub.s32 16384, 16384
      %75 = vsyncadd [#allocation9], %s74
      %s76 = sshll.u32 [#allocation8], 4
      %s77 = int_to_ptr.vmem [resolvable:$true] %s76
      %82 = dma.hbm_to_vmem [thread:$0]  %s4, 16384, %s77, [#allocation9], 128, 128, 8
    $region21: #{tpu_custom_call.1} parent=1 // pred_fallthru
      _
    // Predicated region
    $region22: #{tpu_custom_call.1} parent=1 // pred_check
      _
    $region23: #{tpu_custom_call.1} parent=1 // pred_check_branch
      %84 = sbr.rel (0) target = $region25
    $region24: #{tpu_custom_call.1} parent=1 // pred_region
      _
    $region25: #{tpu_custom_call.1} parent=1 // pred_fallthru
      _
    // Predicated region
    $region26: #{tpu_custom_call.1} parent=1 // pred_check
      _
    $region27: #{tpu_custom_call.1} parent=1 // pred_check_branch
      %86 = sbr.rel (0) target = $region29
    $region28: #{tpu_custom_call.1} parent=1 // pred_region
      %s88 = ssub.s32 8192, 8192
      %89 = vsyncadd [#allocation9], %s88
      %s90 = sshll.u32 [#allocation10], 4
      %s91 = int_to_ptr.vmem [resolvable:$true] %s90
      %96 = dma.hbm_to_vmem [thread:$0]  %s6, 8192, %s91, [#allocation9], 512, 512, 32
    $region29: #{tpu_custom_call.1} parent=1 // pred_fallthru
      _
    // Predicated region
    $region30: #{tpu_custom_call.1} parent=1 // pred_check
      _
    $region31: #{tpu_custom_call.1} parent=1 // pred_check_branch
      %98 = sbr.rel (0) target = $region33
    $region32: #{tpu_custom_call.1} parent=1 // pred_region
      _
    $region33: #{tpu_custom_call.1} parent=1 // pred_fallthru
      _
    // Predicated region
    $region34: #{tpu_custom_call.1} parent=1 // pred_check
      _
    $region35: #{tpu_custom_call.1} parent=1 // pred_check_branch
      %100 = sbr.rel (0) target = $region37
    $region36: #{tpu_custom_call.1} parent=1 // pred_region
      %s102 = ssub.s32 16384, 16384
      %103 = vsyncadd [#allocation12], %s102
      %s104 = sshll.u32 [#allocation11], 4
      %s105 = int_to_ptr.vmem [resolvable:$true] %s104
      %110 = dma.hbm_to_vmem [thread:$0]  %s8, 16384, %s105, [#allocation12], 128, 128, 8
    $region37: #{tpu_custom_call.1} parent=1 // pred_fallthru
      _
    // Predicated region
    $region38: #{tpu_custom_call.1} parent=1 // pred_check
      _
    $region39: #{tpu_custom_call.1} parent=1 // pred_check_branch
      %112 = sbr.rel (0) target = $region41
    $region40: #{tpu_custom_call.1} parent=1 // pred_region
      _
    $region41: #{tpu_custom_call.1} parent=1 // pred_fallthru
      _
    // Predicated region
    $region42: #{tpu_custom_call.1} parent=1 // pred_check
      _
    $region43: #{tpu_custom_call.1} parent=1 // pred_check_branch
      %114 = sbr.rel (0) target = $region45
    $region44: #{tpu_custom_call.1} parent=1 // pred_region
      %s116 = ssub.s32 2048, 2048
      %117 = vsyncadd [#allocation12], %s116
      %s118 = sshll.u32 [#allocation13], 4
      %s119 = int_to_ptr.vmem [resolvable:$true] %s118
      %124 = dma.hbm_to_vmem [thread:$0]  %s10, 2048, %s119, [#allocation12], 64, 64, 4
    $region45: #{tpu_custom_call.1} parent=1 // pred_fallthru
      _
    // Predicated region
    $region46: #{tpu_custom_call.1} parent=1 // pred_check
      _
    $region47: #{tpu_custom_call.1} parent=1 // pred_check_branch
      %126 = sbr.rel (0) target = $region49
    $region48: #{tpu_custom_call.1} parent=1 // pred_region
      _
    $region49: #{tpu_custom_call.1} parent=1 // pred_fallthru
      _
    // Predicated region
    $region50: #{tpu_custom_call.1} parent=1 // pred_check
      _
    $region51: #{tpu_custom_call.1} parent=1 // pred_check_branch
      %128 = sbr.rel (0) target = $region53
    $region52: #{tpu_custom_call.1} parent=1 // pred_region
      %s130 = ssub.s32 2048, 2048
      %131 = vsyncadd [#allocation15], %s130
      %s132 = sshll.u32 [#allocation14], 4
      %s133 = int_to_ptr.vmem [resolvable:$true] %s132
      %138 = dma.hbm_to_vmem [thread:$0]  %s12, 2048, %s133, [#allocation15], 128, 128, 8
    $region53: #{tpu_custom_call.1} parent=1 // pred_fallthru
      _
    // Predicated region
    $region54: #{tpu_custom_call.1} parent=1 // pred_check
      _
    $region55: #{tpu_custom_call.1} parent=1 // pred_check_branch
      %140 = sbr.rel (0) target = $region57
    $region56: #{tpu_custom_call.1} parent=1 // pred_region
      _
    $region57: #{tpu_custom_call.1} parent=1 // pred_fallthru
      _
    // Predicated region
    $region58: #{tpu_custom_call.1} parent=1 // pred_check
      _
    $region59: #{tpu_custom_call.1} parent=1 // pred_check_branch
      %142 = sbr.rel (0) target = $region61
    $region60: #{tpu_custom_call.1} parent=1 // pred_region
      %s144 = ssub.s32 16384, 16384
      %145 = vsyncadd [#allocation15], %s144
      %s146 = sshll.u32 [#allocation16], 4
      %s147 = int_to_ptr.vmem [resolvable:$true] %s146
      %152 = dma.hbm_to_vmem [thread:$0]  %s14, 16384, %s147, [#allocation15], 512, 512, 32
    $region61: #{tpu_custom_call.1} parent=1 // pred_fallthru
      _
    // Predicated region
    $region62: #{tpu_custom_call.1} parent=1 // pred_check
      _
    $region63: #{tpu_custom_call.1} parent=1 // pred_check_branch
      %154 = sbr.rel (0) target = $region65
    $region64: #{tpu_custom_call.1} parent=1 // pred_region
      _
    $region65: #{tpu_custom_call.1} parent=1 // pred_fallthru
      _
    // Predicated region
    $region66: #{tpu_custom_call.1} parent=1 // pred_check
      _
    $region67: #{tpu_custom_call.1} parent=1 // pred_check_branch
      %156 = sbr.rel (0) target = $region69
    $region68: #{tpu_custom_call.1} parent=1 // pred_region
      %s158 = ssub.s32 16384, 16384
      %159 = vsyncadd [#allocation18], %s158
      %s160 = sshll.u32 [#allocation17], 4
      %s161 = int_to_ptr.vmem [resolvable:$true] %s160
      %166 = dma.hbm_to_vmem [thread:$0]  %s16, 16384, %s161, [#allocation18], 128, 128, 8
    $region69: #{tpu_custom_call.1} parent=1 // pred_fallthru
      _
    // Predicated region
    $region70: #{tpu_custom_call.1} parent=1 // pred_check
      _
    $region71: #{tpu_custom_call.1} parent=1 // pred_check_branch
      %168 = sbr.rel (0) target = $region73
    $region72: #{tpu_custom_call.1} parent=1 // pred_region
      _
    $region73: #{tpu_custom_call.1} parent=1 // pred_fallthru
      _
    // Predicated region
    $region74: #{tpu_custom_call.1} parent=1 // pred_check
      _
    $region75: #{tpu_custom_call.1} parent=1 // pred_check_branch
      %170 = sbr.rel (0) target = $region77
    $region76: #{tpu_custom_call.1} parent=1 // pred_region
      %171 = dma.done [#allocation3], 128
    $region77: #{tpu_custom_call.1} parent=1 // pred_fallthru
      _
    // Predicated region
    $region78: #{tpu_custom_call.1} parent=1 // pred_check
      _
    $region79: #{tpu_custom_call.1} parent=1 // pred_check_branch
      %173 = sbr.rel (0) target = $region81
    $region80: #{tpu_custom_call.1} parent=1 // pred_region
      %174 = dma.done [#allocation6], 128
    $region81: #{tpu_custom_call.1} parent=1 // pred_fallthru
      _
    // Predicated region
    $region82: #{tpu_custom_call.1} parent=1 // pred_check
      _
    $region83: #{tpu_custom_call.1} parent=1 // pred_check_branch
      %176 = sbr.rel (0) target = $region85
    $region84: #{tpu_custom_call.1} parent=1 // pred_region
      %177 = dma.done [#allocation6], 4096
    $region85: #{tpu_custom_call.1} parent=1 // pred_fallthru
      _
    // Predicated region
    $region86: #{tpu_custom_call.1} parent=1 // pred_check
      _
    $region87: #{tpu_custom_call.1} parent=1 // pred_check_branch
      %179 = sbr.rel (0) target = $region89
    $region88: #{tpu_custom_call.1} parent=1 // pred_region
      %180 = dma.done [#allocation9], 16384
    $region89: #{tpu_custom_call.1} parent=1 // pred_fallthru
      _
    // Predicated region
    $region90: #{tpu_custom_call.1} parent=1 // pred_check
      _
    $region91: #{tpu_custom_call.1} parent=1 // pred_check_branch
      %182 = sbr.rel (0) target = $region93
    $region92: #{tpu_custom_call.1} parent=1 // pred_region
      %183 = dma.done [#allocation9], 8192
    $region93: #{tpu_custom_call.1} parent=1 // pred_fallthru
      _
    // Predicated region
    $region94: #{tpu_custom_call.1} parent=1 // pred_check
      _
    $region95: #{tpu_custom_call.1} parent=1 // pred_check_branch
      %185 = sbr.rel (0) target = $region97
    $region96: #{tpu_custom_call.1} parent=1 // pred_region
      %186 = dma.done [#allocation12], 16384
    $region97: #{tpu_custom_call.1} parent=1 // pred_fallthru
      _
    // Predicated region
    $region98: #{tpu_custom_call.1} parent=1 // pred_check
      _
    $region99: #{tpu_custom_call.1} parent=1 // pred_check_branch
      %188 = sbr.rel (0) target = $region101
    $region100: #{tpu_custom_call.1} parent=1 // pred_region
      %189 = dma.done [#allocation12], 2048
    $region101: #{tpu_custom_call.1} parent=1 // pred_fallthru
      _
    // Predicated region
    $region102: #{tpu_custom_call.1} parent=1 // pred_check
      _
    $region103: #{tpu_custom_call.1} parent=1 // pred_check_branch
      %191 = sbr.rel (0) target = $region105
    $region104: #{tpu_custom_call.1} parent=1 // pred_region
      %192 = dma.done [#allocation15], 2048
    $region105: #{tpu_custom_call.1} parent=1 // pred_fallthru
      _
    // Predicated region
    $region106: #{tpu_custom_call.1} parent=1 // pred_check
      _
    $region107: #{tpu_custom_call.1} parent=1 // pred_check_branch
      %194 = sbr.rel (0) target = $region109
    $region108: #{tpu_custom_call.1} parent=1 // pred_region
      %195 = dma.done [#allocation15], 16384
    $region109: #{tpu_custom_call.1} parent=1 // pred_fallthru
      _
    // Predicated region
    $region110: #{tpu_custom_call.1} parent=1 // pred_check
      _
    $region111: #{tpu_custom_call.1} parent=1 // pred_check_branch
      %197 = sbr.rel (0) target = $region113
    $region112: #{tpu_custom_call.1} parent=1 // pred_region
      %198 = dma.done [#allocation18], 16384
    $region113: #{tpu_custom_call.1} parent=1 // pred_fallthru
      _
    %v200 = vld [vmem:[#allocation2] sm:$0xf]
    %v201 = vld [vmem:[#allocation2 + $0x4] sm:$0xf]
    %v202 = vld [vmem:[#allocation7] sm:$0xff]
    %v203 = vld [vmem:[#allocation7 + $0x8] sm:$0xff]
    %v204 = vld [vmem:[#allocation7 + $0x10] sm:$0xff]
    %v205 = vld [vmem:[#allocation7 + $0x18] sm:$0xff]
    %v206 = vld [vmem:[#allocation7 + $0x20] sm:$0xff]
    %v207 = vld [vmem:[#allocation7 + $0x28] sm:$0xff]
    %v208 = vld [vmem:[#allocation7 + $0x30] sm:$0xff]
    %v209 = vld [vmem:[#allocation7 + $0x38] sm:$0xff]
    %v210 = vld [vmem:[#allocation7 + $0x40] sm:$0xff]
    %v211 = vld [vmem:[#allocation7 + $0x48] sm:$0xff]
    %v212 = vld [vmem:[#allocation7 + $0x50] sm:$0xff]
    %v213 = vld [vmem:[#allocation7 + $0x58] sm:$0xff]
    %v214 = vld [vmem:[#allocation7 + $0x60] sm:$0xff]
    %v215 = vld [vmem:[#allocation7 + $0x68] sm:$0xff]
    %v216 = vld [vmem:[#allocation7 + $0x70] sm:$0xff]
    %v217 = vld [vmem:[#allocation7 + $0x78] sm:$0xff]
    %v218 = vld [vmem:[#allocation7 + $0x80] sm:$0xff]
    %v219 = vld [vmem:[#allocation7 + $0x88] sm:$0xff]
    %v220 = vld [vmem:[#allocation7 + $0x90] sm:$0xff]
    %v221 = vld [vmem:[#allocation7 + $0x98] sm:$0xff]
    %v222 = vld [vmem:[#allocation7 + $0xa0] sm:$0xff]
    %v223 = vld [vmem:[#allocation7 + $0xa8] sm:$0xff]
    %v224 = vld [vmem:[#allocation7 + $0xb0] sm:$0xff]
    %v225 = vld [vmem:[#allocation7 + $0xb8] sm:$0xff]
    %v226 = vld [vmem:[#allocation7 + $0xc0] sm:$0xff]
    %v227 = vld [vmem:[#allocation7 + $0xc8] sm:$0xff]
    %v228 = vld [vmem:[#allocation7 + $0xd0] sm:$0xff]
    %v229 = vld [vmem:[#allocation7 + $0xd8] sm:$0xff]
    %v230 = vld [vmem:[#allocation7 + $0xe0] sm:$0xff]
    %v231 = vld [vmem:[#allocation7 + $0xe8] sm:$0xff]
    %v232 = vld [vmem:[#allocation7 + $0xf0] sm:$0xff]
    %v233 = vld [vmem:[#allocation7 + $0xf8] sm:$0xff]
    %v234 = vld [vmem:[%s3] sm:$0xff]
    %v236 = vlaneseq
    %v237 = vshrl.u32 %v236, 7
    %v238 = vsub.s32 0, %v237
    %v239 = vrot.slane %v234, %v238
    %v240 = vlaneseq
    %v241 = vshrl.u32 %v240, 7
    %v242 = vsub.s32 1, %v241
    %v243 = vrot.slane %v234, %v242
    %v244 = vlaneseq
    %v245 = vshrl.u32 %v244, 7
    %v246 = vsub.s32 2, %v245
    %v247 = vrot.slane %v234, %v246
    %v248 = vlaneseq
    %v249 = vshrl.u32 %v248, 7
    %v250 = vsub.s32 3, %v249
    %v251 = vrot.slane %v234, %v250
    %v252 = vlaneseq
    %v253 = vshrl.u32 %v252, 7
    %v254 = vsub.s32 4, %v253
    %v255 = vrot.slane %v234, %v254
    %v256 = vlaneseq
    %v257 = vshrl.u32 %v256, 7
    %v258 = vsub.s32 5, %v257
    %v259 = vrot.slane %v234, %v258
    %v260 = vlaneseq
    %v261 = vshrl.u32 %v260, 7
    %v262 = vsub.s32 6, %v261
    %v263 = vrot.slane %v234, %v262
    %v264 = vlaneseq
    %v265 = vshrl.u32 %v264, 7
    %v266 = vsub.s32 7, %v265
    %v267 = vrot.slane %v234, %v266
    %v278 = vunpack.c.l.b16 %v200
    %v279 = vunpack.c.l.b16 %v201
    %v280 = vpack.c.b16 %v279, %v278
    %v313 = vunpack.c.l.b16 %v202
    %v314 = vunpack.c.h.b16 %v202
    %v315 = vunpack.c.l.b16 %v203
    %v316 = vunpack.c.h.b16 %v203
    %v317 = vunpack.c.l.b16 %v204
    %v318 = vunpack.c.h.b16 %v204
    %v319 = vunpack.c.l.b16 %v205
    %v320 = vunpack.c.h.b16 %v205
    %v321 = vunpack.c.l.b16 %v206
    %v322 = vunpack.c.h.b16 %v206
    %v323 = vunpack.c.l.b16 %v207
    %v324 = vunpack.c.h.b16 %v207
    %v325 = vunpack.c.l.b16 %v208
    %v326 = vunpack.c.h.b16 %v208
    %v327 = vunpack.c.l.b16 %v209
    %v328 = vunpack.c.h.b16 %v209
    %v329 = vunpack.c.l.b16 %v210
    %v330 = vunpack.c.h.b16 %v210
    %v331 = vunpack.c.l.b16 %v211
    %v332 = vunpack.c.h.b16 %v211
    %v333 = vunpack.c.l.b16 %v212
    %v334 = vunpack.c.h.b16 %v212
    %v335 = vunpack.c.l.b16 %v213
    %v336 = vunpack.c.h.b16 %v213
    %v337 = vunpack.c.l.b16 %v214
    %v338 = vunpack.c.h.b16 %v214
    %v339 = vunpack.c.l.b16 %v215
    %v340 = vunpack.c.h.b16 %v215
    %v341 = vunpack.c.l.b16 %v216
    %v342 = vunpack.c.h.b16 %v216
    %v343 = vunpack.c.l.b16 %v217
    %v344 = vunpack.c.h.b16 %v217
    %v345 = vunpack.c.l.b16 %v218
    %v346 = vunpack.c.h.b16 %v218
    %v347 = vunpack.c.l.b16 %v219
    %v348 = vunpack.c.h.b16 %v219
    %v349 = vunpack.c.l.b16 %v220
    %v350 = vunpack.c.h.b16 %v220
    %v351 = vunpack.c.l.b16 %v221
    %v352 = vunpack.c.h.b16 %v221
    %v353 = vunpack.c.l.b16 %v222
    %v354 = vunpack.c.h.b16 %v222
    %v355 = vunpack.c.l.b16 %v223
    %v356 = vunpack.c.h.b16 %v223
    %v357 = vunpack.c.l.b16 %v224
    %v358 = vunpack.c.h.b16 %v224
    %v359 = vunpack.c.l.b16 %v225
    %v360 = vunpack.c.h.b16 %v225
    %v361 = vunpack.c.l.b16 %v226
    %v362 = vunpack.c.h.b16 %v226
    %v363 = vunpack.c.l.b16 %v227
    %v364 = vunpack.c.h.b16 %v227
    %v365 = vunpack.c.l.b16 %v228
    %v366 = vunpack.c.h.b16 %v228
    %v367 = vunpack.c.l.b16 %v229
    %v368 = vunpack.c.h.b16 %v229
    %v369 = vunpack.c.l.b16 %v230
    %v370 = vunpack.c.h.b16 %v230
    %v371 = vunpack.c.l.b16 %v231
    %v372 = vunpack.c.h.b16 %v231
    %v373 = vunpack.c.l.b16 %v232
    %v374 = vunpack.c.h.b16 %v232
    %v375 = vunpack.c.l.b16 %v233
    %v376 = vunpack.c.h.b16 %v233
    %v377 = vpack.c.b16 %v321, %v313
    %v378 = vpack.c.b16 %v322, %v314
    %v379 = vpack.c.b16 %v323, %v315
    %v380 = vpack.c.b16 %v324, %v316
    %v381 = vpack.c.b16 %v325, %v317
    %v382 = vpack.c.b16 %v326, %v318
    %v383 = vpack.c.b16 %v327, %v319
    %v384 = vpack.c.b16 %v328, %v320
    %v385 = vpack.c.b16 %v337, %v329
    %v386 = vpack.c.b16 %v338, %v330
    %v387 = vpack.c.b16 %v339, %v331
    %v388 = vpack.c.b16 %v340, %v332
    %v389 = vpack.c.b16 %v341, %v333
    %v390 = vpack.c.b16 %v342, %v334
    %v391 = vpack.c.b16 %v343, %v335
    %v392 = vpack.c.b16 %v344, %v336
    %v393 = vpack.c.b16 %v353, %v345
    %v394 = vpack.c.b16 %v354, %v346
    %v395 = vpack.c.b16 %v355, %v347
    %v396 = vpack.c.b16 %v356, %v348
    %v397 = vpack.c.b16 %v357, %v349
    %v398 = vpack.c.b16 %v358, %v350
    %v399 = vpack.c.b16 %v359, %v351
    %v400 = vpack.c.b16 %v360, %v352
    %v401 = vpack.c.b16 %v369, %v361
    %v402 = vpack.c.b16 %v370, %v362
    %v403 = vpack.c.b16 %v371, %v363
    %v404 = vpack.c.b16 %v372, %v364
    %v405 = vpack.c.b16 %v373, %v365
    %v406 = vpack.c.b16 %v374, %v366
    %v407 = vpack.c.b16 %v375, %v367
    %v408 = vpack.c.b16 %v376, %v368
    %vm441 = vcmask 523264
    %v443 = vsel %vm441, %v280, 0
    %445 = vmatprep.subr.bf16.mxu0 %v378
    %446 = vmatpush1.bf16.msra.mxu0 %v377
    %447 = vmatprep.subr.bf16.mxu0 %v386
    %448 = vmatpush1.bf16.msra.mxu0 %v385
    %449 = vmatprep.subr.bf16.mxu0 %v394
    %450 = vmatpush1.bf16.msra.mxu0 %v393
    %451 = vmatprep.subr.bf16.mxu0 %v402
    %452 = vmatpush1.bf16.msra.mxu0 %v401
    %453 = vmatprep.subr.bf16.mxu0 0
    %454 = vmatpush1.bf16.msra.mxu0 0
    %455 = vmatprep.subr.bf16.mxu0 0
    %456 = vmatpush1.bf16.msra.mxu0 0
    %457 = vmatprep.subr.bf16.mxu0 0
    %458 = vmatpush1.bf16.msra.mxu0 0
    %459 = vmatprep.subr.bf16.mxu0 0
    %460 = vmatpush1.bf16.msra.mxu0 0
    %461 = vmatprep.subr.bf16.mxu0 0
    %462 = vmatpush1.bf16.msra.mxu0 0
    %463 = vmatprep.subr.bf16.mxu0 0
    %464 = vmatpush1.bf16.msra.mxu0 0
    %465 = vmatprep.subr.bf16.mxu0 0
    %466 = vmatpush1.bf16.msra.mxu0 0
    %467 = vmatprep.subr.bf16.mxu0 0
    %468 = vmatpush1.bf16.msra.mxu0 0
    %469 = vmatprep.subr.bf16.mxu0 0
    %470 = vmatpush1.bf16.msra.mxu0 0
    %471 = vmatprep.subr.bf16.mxu0 0
    %472 = vmatpush1.bf16.msra.mxu0 0
    %473 = vmatprep.subr.bf16.mxu0 0
    %474 = vmatpush1.bf16.msra.mxu0 0
    %475 = vmatprep.subr.bf16.mxu0 0
    %476 = vmatpush1.bf16.msra.mxu0 0
    %477 = vmatprep.mubr.bf16.mxu0 0
    %478 = vmatmul.mubr.bf16.gmra.mrb[0].mxu0 %v443
    %v479 = vpop.f32.mrb[0].mxu0
    %v480 = vadd.f32 %v239, %v479
    %v481 = vpop.f32.mrb[0].mxu0
    %v482 = vadd.f32 %v243, %v481
    %v483 = vpop.f32.mrb[0].mxu0
    %v484 = vadd.f32 %v239, %v483
    %v485 = vpop.f32.mrb[0].mxu0
    %v486 = vadd.f32 %v243, %v485
    %487 = vdwg.mxu0
    %488 = vmatprep.subr.bf16.mxu0 %v380
    %489 = vmatpush1.bf16.msra.mxu0 %v379
    %490 = vmatprep.subr.bf16.mxu0 %v388
    %491 = vmatpush1.bf16.msra.mxu0 %v387
    %492 = vmatprep.subr.bf16.mxu0 %v396
    %493 = vmatpush1.bf16.msra.mxu0 %v395
    %494 = vmatprep.subr.bf16.mxu0 %v404
    %495 = vmatpush1.bf16.msra.mxu0 %v403
    %496 = vmatprep.subr.bf16.mxu0 0
    %497 = vmatpush1.bf16.msra.mxu0 0
    %498 = vmatprep.subr.bf16.mxu0 0
    %499 = vmatpush1.bf16.msra.mxu0 0
    %500 = vmatprep.subr.bf16.mxu0 0
    %501 = vmatpush1.bf16.msra.mxu0 0
    %502 = vmatprep.subr.bf16.mxu0 0
    %503 = vmatpush1.bf16.msra.mxu0 0
    %504 = vmatprep.subr.bf16.mxu0 0
    %505 = vmatpush1.bf16.msra.mxu0 0
    %506 = vmatprep.subr.bf16.mxu0 0
    %507 = vmatpush1.bf16.msra.mxu0 0
    %508 = vmatprep.subr.bf16.mxu0 0
    %509 = vmatpush1.bf16.msra.mxu0 0
    %510 = vmatprep.subr.bf16.mxu0 0
    %511 = vmatpush1.bf16.msra.mxu0 0
    %512 = vmatprep.subr.bf16.mxu0 0
    %513 = vmatpush1.bf16.msra.mxu0 0
    %514 = vmatprep.subr.bf16.mxu0 0
    %515 = vmatpush1.bf16.msra.mxu0 0
    %516 = vmatprep.subr.bf16.mxu0 0
    %517 = vmatpush1.bf16.msra.mxu0 0
    %518 = vmatprep.subr.bf16.mxu0 0
    %519 = vmatpush1.bf16.msra.mxu0 0
    %520 = vmatprep.mubr.bf16.mxu0 0
    %521 = vmatmul.mubr.bf16.gmra.mrb[0].mxu0 %v443
    %v522 = vpop.f32.mrb[0].mxu0
    %v523 = vadd.f32 %v247, %v522
    %v524 = vpop.f32.mrb[0].mxu0
    %v525 = vadd.f32 %v251, %v524
    %v526 = vpop.f32.mrb[0].mxu0
    %v527 = vadd.f32 %v247, %v526
    %v528 = vpop.f32.mrb[0].mxu0
    %v529 = vadd.f32 %v251, %v528
    %530 = vdwg.mxu0
    %531 = vmatprep.subr.bf16.mxu0 %v382
    %532 = vmatpush1.bf16.msra.mxu0 %v381
    %533 = vmatprep.subr.bf16.mxu0 %v390
    %534 = vmatpush1.bf16.msra.mxu0 %v389
    %535 = vmatprep.subr.bf16.mxu0 %v398
    %536 = vmatpush1.bf16.msra.mxu0 %v397
    %537 = vmatprep.subr.bf16.mxu0 %v406
    %538 = vmatpush1.bf16.msra.mxu0 %v405
    %539 = vmatprep.subr.bf16.mxu0 0
    %540 = vmatpush1.bf16.msra.mxu0 0
    %541 = vmatprep.subr.bf16.mxu0 0
    %542 = vmatpush1.bf16.msra.mxu0 0
    %543 = vmatprep.subr.bf16.mxu0 0
    %544 = vmatpush1.bf16.msra.mxu0 0
    %545 = vmatprep.subr.bf16.mxu0 0
    %546 = vmatpush1.bf16.msra.mxu0 0
    %547 = vmatprep.subr.bf16.mxu0 0
    %548 = vmatpush1.bf16.msra.mxu0 0
    %549 = vmatprep.subr.bf16.mxu0 0
    %550 = vmatpush1.bf16.msra.mxu0 0
    %551 = vmatprep.subr.bf16.mxu0 0
    %552 = vmatpush1.bf16.msra.mxu0 0
    %553 = vmatprep.subr.bf16.mxu0 0
    %554 = vmatpush1.bf16.msra.mxu0 0
    %555 = vmatprep.subr.bf16.mxu0 0
    %556 = vmatpush1.bf16.msra.mxu0 0
    %557 = vmatprep.subr.bf16.mxu0 0
    %558 = vmatpush1.bf16.msra.mxu0 0
    %559 = vmatprep.subr.bf16.mxu0 0
    %560 = vmatpush1.bf16.msra.mxu0 0
    %561 = vmatprep.subr.bf16.mxu0 0
    %562 = vmatpush1.bf16.msra.mxu0 0
    %563 = vmatprep.mubr.bf16.mxu0 0
    %564 = vmatmul.mubr.bf16.gmra.mrb[0].mxu0 %v443
    %v565 = vpop.f32.mrb[0].mxu0
    %v566 = vadd.f32 %v255, %v565
    %v567 = vpop.f32.mrb[0].mxu0
    %v568 = vadd.f32 %v259, %v567
    %v569 = vpop.f32.mrb[0].mxu0
    %v570 = vadd.f32 %v255, %v569
    %v571 = vpop.f32.mrb[0].mxu0
    %v572 = vadd.f32 %v259, %v571
    %573 = vdwg.mxu0
    %574 = vmatprep.subr.bf16.mxu0 %v384
    %575 = vmatpush1.bf16.msra.mxu0 %v383
    %576 = vmatprep.subr.bf16.mxu0 %v392
    %577 = vmatpush1.bf16.msra.mxu0 %v391
    %578 = vmatprep.subr.bf16.mxu0 %v400
    %579 = vmatpush1.bf16.msra.mxu0 %v399
    %580 = vmatprep.subr.bf16.mxu0 %v408
    %581 = vmatpush1.bf16.msra.mxu0 %v407
    %582 = vmatprep.subr.bf16.mxu0 0
    %583 = vmatpush1.bf16.msra.mxu0 0
    %584 = vmatprep.subr.bf16.mxu0 0
    %585 = vmatpush1.bf16.msra.mxu0 0
    %586 = vmatprep.subr.bf16.mxu0 0
    %587 = vmatpush1.bf16.msra.mxu0 0
    %588 = vmatprep.subr.bf16.mxu0 0
    %589 = vmatpush1.bf16.msra.mxu0 0
    %590 = vmatprep.subr.bf16.mxu0 0
    %591 = vmatpush1.bf16.msra.mxu0 0
    %592 = vmatprep.subr.bf16.mxu0 0
    %593 = vmatpush1.bf16.msra.mxu0 0
    %594 = vmatprep.subr.bf16.mxu0 0
    %595 = vmatpush1.bf16.msra.mxu0 0
    %596 = vmatprep.subr.bf16.mxu0 0
    %597 = vmatpush1.bf16.msra.mxu0 0
    %598 = vmatprep.subr.bf16.mxu0 0
    %599 = vmatpush1.bf16.msra.mxu0 0
    %600 = vmatprep.subr.bf16.mxu0 0
    %601 = vmatpush1.bf16.msra.mxu0 0
    %602 = vmatprep.subr.bf16.mxu0 0
    %603 = vmatpush1.bf16.msra.mxu0 0
    %604 = vmatprep.subr.bf16.mxu0 0
    %605 = vmatpush1.bf16.msra.mxu0 0
    %606 = vmatprep.mubr.bf16.mxu0 0
    %607 = vmatmul.mubr.bf16.gmra.mrb[0].mxu0 %v443
    %v608 = vpop.f32.mrb[0].mxu0
    %v609 = vadd.f32 %v263, %v608
    %v610 = vpop.f32.mrb[0].mxu0
    %v611 = vadd.f32 %v267, %v610
    %v612 = vpop.f32.mrb[0].mxu0
    %v613 = vadd.f32 %v263, %v612
    %v614 = vpop.f32.mrb[0].mxu0
    %v615 = vadd.f32 %v267, %v614
    %616 = vdwg.mxu0
    %v617 = vmax.f32 %v480, 0.0
    %v618 = vmax.f32 %v482, 0.0
    %v619 = vmax.f32 %v523, 0.0
    %v620 = vmax.f32 %v525, 0.0
    %v621 = vmax.f32 %v566, 0.0
    %v622 = vmax.f32 %v568, 0.0
    %v623 = vmax.f32 %v609, 0.0
    %v624 = vmax.f32 %v611, 0.0
    %v625 = vmax.f32 %v484, 0.0
    %v626 = vmax.f32 %v486, 0.0
    %v627 = vmax.f32 %v527, 0.0
    %v628 = vmax.f32 %v529, 0.0
    %v629 = vmax.f32 %v570, 0.0
    %v630 = vmax.f32 %v572, 0.0
    %v631 = vmax.f32 %v613, 0.0
    %v632 = vmax.f32 %v615, 0.0
    %v633 = vpack.c.bf16 %v625, %v617
    %v634 = vpack.c.bf16 %v626, %v618
    %v635 = vpack.c.bf16 %v627, %v619
    %v636 = vpack.c.bf16 %v628, %v620
    %v637 = vpack.c.bf16 %v629, %v621
    %v638 = vpack.c.bf16 %v630, %v622
    %v639 = vpack.c.bf16 %v631, %v623
    %v640 = vpack.c.bf16 %v632, %v624
    %v641 = vld [vmem:[#allocation8] sm:$0xff]
    %v642 = vld [vmem:[#allocation8 + $0x8] sm:$0xff]
    %v643 = vld [vmem:[#allocation8 + $0x10] sm:$0xff]
    %v644 = vld [vmem:[#allocation8 + $0x18] sm:$0xff]
    %v645 = vld [vmem:[#allocation8 + $0x20] sm:$0xff]
    %v646 = vld [vmem:[#allocation8 + $0x28] sm:$0xff]
    %v647 = vld [vmem:[#allocation8 + $0x30] sm:$0xff]
    %v648 = vld [vmem:[#allocation8 + $0x38] sm:$0xff]
    %v649 = vld [vmem:[#allocation8 + $0x40] sm:$0xff]
    %v650 = vld [vmem:[#allocation8 + $0x48] sm:$0xff]
    %v651 = vld [vmem:[#allocation8 + $0x50] sm:$0xff]
    %v652 = vld [vmem:[#allocation8 + $0x58] sm:$0xff]
    %v653 = vld [vmem:[#allocation8 + $0x60] sm:$0xff]
    %v654 = vld [vmem:[#allocation8 + $0x68] sm:$0xff]
    %v655 = vld [vmem:[#allocation8 + $0x70] sm:$0xff]
    %v656 = vld [vmem:[#allocation8 + $0x78] sm:$0xff]
    %v657 = vld [vmem:[#allocation8 + $0x80] sm:$0xff]
    %v658 = vld [vmem:[#allocation8 + $0x88] sm:$0xff]
    %v659 = vld [vmem:[#allocation8 + $0x90] sm:$0xff]
    %v660 = vld [vmem:[#allocation8 + $0x98] sm:$0xff]
    %v661 = vld [vmem:[#allocation8 + $0xa0] sm:$0xff]
    %v662 = vld [vmem:[#allocation8 + $0xa8] sm:$0xff]
    %v663 = vld [vmem:[#allocation8 + $0xb0] sm:$0xff]
    %v664 = vld [vmem:[#allocation8 + $0xb8] sm:$0xff]
    %v665 = vld [vmem:[#allocation8 + $0xc0] sm:$0xff]
    %v666 = vld [vmem:[#allocation8 + $0xc8] sm:$0xff]
    %v667 = vld [vmem:[#allocation8 + $0xd0] sm:$0xff]
    %v668 = vld [vmem:[#allocation8 + $0xd8] sm:$0xff]
    %v669 = vld [vmem:[#allocation8 + $0xe0] sm:$0xff]
    %v670 = vld [vmem:[#allocation8 + $0xe8] sm:$0xff]
    %v671 = vld [vmem:[#allocation8 + $0xf0] sm:$0xff]
    %v672 = vld [vmem:[#allocation8 + $0xf8] sm:$0xff]
    %v673 = vld [vmem:[#allocation8 + $0x100] sm:$0xff]
    %v674 = vld [vmem:[#allocation8 + $0x108] sm:$0xff]
    %v675 = vld [vmem:[#allocation8 + $0x110] sm:$0xff]
    %v676 = vld [vmem:[#allocation8 + $0x118] sm:$0xff]
    %v677 = vld [vmem:[#allocation8 + $0x120] sm:$0xff]
    %v678 = vld [vmem:[#allocation8 + $0x128] sm:$0xff]
    %v679 = vld [vmem:[#allocation8 + $0x130] sm:$0xff]
    %v680 = vld [vmem:[#allocation8 + $0x138] sm:$0xff]
    %v681 = vld [vmem:[#allocation8 + $0x140] sm:$0xff]
    %v682 = vld [vmem:[#allocation8 + $0x148] sm:$0xff]
    %v683 = vld [vmem:[#allocation8 + $0x150] sm:$0xff]
    %v684 = vld [vmem:[#allocation8 + $0x158] sm:$0xff]
    %v685 = vld [vmem:[#allocation8 + $0x160] sm:$0xff]
    %v686 = vld [vmem:[#allocation8 + $0x168] sm:$0xff]
    %v687 = vld [vmem:[#allocation8 + $0x170] sm:$0xff]
    %v688 = vld [vmem:[#allocation8 + $0x178] sm:$0xff]
    %v689 = vld [vmem:[#allocation8 + $0x180] sm:$0xff]
    %v690 = vld [vmem:[#allocation8 + $0x188] sm:$0xff]
    %v691 = vld [vmem:[#allocation8 + $0x190] sm:$0xff]
    %v692 = vld [vmem:[#allocation8 + $0x198] sm:$0xff]
    %v693 = vld [vmem:[#allocation8 + $0x1a0] sm:$0xff]
    %v694 = vld [vmem:[#allocation8 + $0x1a8] sm:$0xff]
    %v695 = vld [vmem:[#allocation8 + $0x1b0] sm:$0xff]
    %v696 = vld [vmem:[#allocation8 + $0x1b8] sm:$0xff]
    %v697 = vld [vmem:[#allocation8 + $0x1c0] sm:$0xff]
    %v698 = vld [vmem:[#allocation8 + $0x1c8] sm:$0xff]
    %v699 = vld [vmem:[#allocation8 + $0x1d0] sm:$0xff]
    %v700 = vld [vmem:[#allocation8 + $0x1d8] sm:$0xff]
    %v701 = vld [vmem:[#allocation8 + $0x1e0] sm:$0xff]
    %v702 = vld [vmem:[#allocation8 + $0x1e8] sm:$0xff]
    %v703 = vld [vmem:[#allocation8 + $0x1f0] sm:$0xff]
    %v704 = vld [vmem:[#allocation8 + $0x1f8] sm:$0xff]
    %v705 = vld [vmem:[#allocation8 + $0x200] sm:$0xff]
    %v706 = vld [vmem:[#allocation8 + $0x208] sm:$0xff]
    %v707 = vld [vmem:[#allocation8 + $0x210] sm:$0xff]
    %v708 = vld [vmem:[#allocation8 + $0x218] sm:$0xff]
    %v709 = vld [vmem:[#allocation8 + $0x220] sm:$0xff]
    %v710 = vld [vmem:[#allocation8 + $0x228] sm:$0xff]
    %v711 = vld [vmem:[#allocation8 + $0x230] sm:$0xff]
    %v712 = vld [vmem:[#allocation8 + $0x238] sm:$0xff]
    %v713 = vld [vmem:[#allocation8 + $0x240] sm:$0xff]
    %v714 = vld [vmem:[#allocation8 + $0x248] sm:$0xff]
    %v715 = vld [vmem:[#allocation8 + $0x250] sm:$0xff]
    %v716 = vld [vmem:[#allocation8 + $0x258] sm:$0xff]
    %v717 = vld [vmem:[#allocation8 + $0x260] sm:$0xff]
    %v718 = vld [vmem:[#allocation8 + $0x268] sm:$0xff]
    %v719 = vld [vmem:[#allocation8 + $0x270] sm:$0xff]
    %v720 = vld [vmem:[#allocation8 + $0x278] sm:$0xff]
    %v721 = vld [vmem:[#allocation8 + $0x280] sm:$0xff]
    %v722 = vld [vmem:[#allocation8 + $0x288] sm:$0xff]
    %v723 = vld [vmem:[#allocation8 + $0x290] sm:$0xff]
    %v724 = vld [vmem:[#allocation8 + $0x298] sm:$0xff]
    %v725 = vld [vmem:[#allocation8 + $0x2a0] sm:$0xff]
    %v726 = vld [vmem:[#allocation8 + $0x2a8] sm:$0xff]
    %v727 = vld [vmem:[#allocation8 + $0x2b0] sm:$0xff]
    %v728 = vld [vmem:[#allocation8 + $0x2b8] sm:$0xff]
    %v729 = vld [vmem:[#allocation8 + $0x2c0] sm:$0xff]
    %v730 = vld [vmem:[#allocation8 + $0x2c8] sm:$0xff]
    %v731 = vld [vmem:[#allocation8 + $0x2d0] sm:$0xff]
    %v732 = vld [vmem:[#allocation8 + $0x2d8] sm:$0xff]
    %v733 = vld [vmem:[#allocation8 + $0x2e0] sm:$0xff]
    %v734 = vld [vmem:[#allocation8 + $0x2e8] sm:$0xff]
    %v735 = vld [vmem:[#allocation8 + $0x2f0] sm:$0xff]
    %v736 = vld [vmem:[#allocation8 + $0x2f8] sm:$0xff]
    %v737 = vld [vmem:[#allocation8 + $0x300] sm:$0xff]
    %v738 = vld [vmem:[#allocation8 + $0x308] sm:$0xff]
    %v739 = vld [vmem:[#allocation8 + $0x310] sm:$0xff]
    %v740 = vld [vmem:[#allocation8 + $0x318] sm:$0xff]
    %v741 = vld [vmem:[#allocation8 + $0x320] sm:$0xff]
    %v742 = vld [vmem:[#allocation8 + $0x328] sm:$0xff]
    %v743 = vld [vmem:[#allocation8 + $0x330] sm:$0xff]
    %v744 = vld [vmem:[#allocation8 + $0x338] sm:$0xff]
    %v745 = vld [vmem:[#allocation8 + $0x340] sm:$0xff]
    %v746 = vld [vmem:[#allocation8 + $0x348] sm:$0xff]
    %v747 = vld [vmem:[#allocation8 + $0x350] sm:$0xff]
    %v748 = vld [vmem:[#allocation8 + $0x358] sm:$0xff]
    %v749 = vld [vmem:[#allocation8 + $0x360] sm:$0xff]
    %v750 = vld [vmem:[#allocation8 + $0x368] sm:$0xff]
    %v751 = vld [vmem:[#allocation8 + $0x370] sm:$0xff]
    %v752 = vld [vmem:[#allocation8 + $0x378] sm:$0xff]
    %v753 = vld [vmem:[#allocation8 + $0x380] sm:$0xff]
    %v754 = vld [vmem:[#allocation8 + $0x388] sm:$0xff]
    %v755 = vld [vmem:[#allocation8 + $0x390] sm:$0xff]
    %v756 = vld [vmem:[#allocation8 + $0x398] sm:$0xff]
    %v757 = vld [vmem:[#allocation8 + $0x3a0] sm:$0xff]
    %v758 = vld [vmem:[#allocation8 + $0x3a8] sm:$0xff]
    %v759 = vld [vmem:[#allocation8 + $0x3b0] sm:$0xff]
    %v760 = vld [vmem:[#allocation8 + $0x3b8] sm:$0xff]
    %v761 = vld [vmem:[#allocation8 + $0x3c0] sm:$0xff]
    %v762 = vld [vmem:[#allocation8 + $0x3c8] sm:$0xff]
    %v763 = vld [vmem:[#allocation8 + $0x3d0] sm:$0xff]
    %v764 = vld [vmem:[#allocation8 + $0x3d8] sm:$0xff]
    %v765 = vld [vmem:[#allocation8 + $0x3e0] sm:$0xff]
    %v766 = vld [vmem:[#allocation8 + $0x3e8] sm:$0xff]
    %v767 = vld [vmem:[#allocation8 + $0x3f0] sm:$0xff]
    %v768 = vld [vmem:[#allocation8 + $0x3f8] sm:$0xff]
    %v769 = vld [vmem:[%s5] sm:$0x3]
    %v771 = vlaneseq
    %v772 = vshrl.u32 %v771, 7
    %v773 = vsub.s32 0, %v772
    %v774 = vrot.slane %v769, %v773
    %v775 = vlaneseq
    %v776 = vshrl.u32 %v775, 7
    %v777 = vsub.s32 1, %v776
    %v778 = vrot.slane %v769, %v777
    %v909 = vunpack.c.l.b16 %v641
    %v910 = vunpack.c.h.b16 %v641
    %v911 = vunpack.c.l.b16 %v642
    %v912 = vunpack.c.h.b16 %v642
    %v913 = vunpack.c.l.b16 %v643
    %v914 = vunpack.c.h.b16 %v643
    %v915 = vunpack.c.l.b16 %v644
    %v916 = vunpack.c.h.b16 %v644
    %v917 = vunpack.c.l.b16 %v645
    %v918 = vunpack.c.h.b16 %v645
    %v919 = vunpack.c.l.b16 %v646
    %v920 = vunpack.c.h.b16 %v646
    %v921 = vunpack.c.l.b16 %v647
    %v922 = vunpack.c.h.b16 %v647
    %v923 = vunpack.c.l.b16 %v648
    %v924 = vunpack.c.h.b16 %v648
    %v925 = vunpack.c.l.b16 %v649
    %v926 = vunpack.c.h.b16 %v649
    %v927 = vunpack.c.l.b16 %v650
    %v928 = vunpack.c.h.b16 %v650
    %v929 = vunpack.c.l.b16 %v651
    %v930 = vunpack.c.h.b16 %v651
    %v931 = vunpack.c.l.b16 %v652
    %v932 = vunpack.c.h.b16 %v652
    %v933 = vunpack.c.l.b16 %v653
    %v934 = vunpack.c.h.b16 %v653
    %v935 = vunpack.c.l.b16 %v654
    %v936 = vunpack.c.h.b16 %v654
    %v937 = vunpack.c.l.b16 %v655
    %v938 = vunpack.c.h.b16 %v655
    %v939 = vunpack.c.l.b16 %v656
    %v940 = vunpack.c.h.b16 %v656
    %v941 = vunpack.c.l.b16 %v657
    %v942 = vunpack.c.h.b16 %v657
    %v943 = vunpack.c.l.b16 %v658
    %v944 = vunpack.c.h.b16 %v658
    %v945 = vunpack.c.l.b16 %v659
    %v946 = vunpack.c.h.b16 %v659
    %v947 = vunpack.c.l.b16 %v660
    %v948 = vunpack.c.h.b16 %v660
    %v949 = vunpack.c.l.b16 %v661
    %v950 = vunpack.c.h.b16 %v661
    %v951 = vunpack.c.l.b16 %v662
    %v952 = vunpack.c.h.b16 %v662
    %v953 = vunpack.c.l.b16 %v663
    %v954 = vunpack.c.h.b16 %v663
    %v955 = vunpack.c.l.b16 %v664
    %v956 = vunpack.c.h.b16 %v664
    %v957 = vunpack.c.l.b16 %v665
    %v958 = vunpack.c.h.b16 %v665
    %v959 = vunpack.c.l.b16 %v666
    %v960 = vunpack.c.h.b16 %v666
    %v961 = vunpack.c.l.b16 %v667
    %v962 = vunpack.c.h.b16 %v667
    %v963 = vunpack.c.l.b16 %v668
    %v964 = vunpack.c.h.b16 %v668
    %v965 = vunpack.c.l.b16 %v669
    %v966 = vunpack.c.h.b16 %v669
    %v967 = vunpack.c.l.b16 %v670
    %v968 = vunpack.c.h.b16 %v670
    %v969 = vunpack.c.l.b16 %v671
    %v970 = vunpack.c.h.b16 %v671
    %v971 = vunpack.c.l.b16 %v672
    %v972 = vunpack.c.h.b16 %v672
    %v973 = vunpack.c.l.b16 %v673
    %v974 = vunpack.c.h.b16 %v673
    %v975 = vunpack.c.l.b16 %v674
    %v976 = vunpack.c.h.b16 %v674
    %v977 = vunpack.c.l.b16 %v675
    %v978 = vunpack.c.h.b16 %v675
    %v979 = vunpack.c.l.b16 %v676
    %v980 = vunpack.c.h.b16 %v676
    %v981 = vunpack.c.l.b16 %v677
    %v982 = vunpack.c.h.b16 %v677
    %v983 = vunpack.c.l.b16 %v678
    %v984 = vunpack.c.h.b16 %v678
    %v985 = vunpack.c.l.b16 %v679
    %v986 = vunpack.c.h.b16 %v679
    %v987 = vunpack.c.l.b16 %v680
    %v988 = vunpack.c.h.b16 %v680
    %v989 = vunpack.c.l.b16 %v681
    %v990 = vunpack.c.h.b16 %v681
    %v991 = vunpack.c.l.b16 %v682
    %v992 = vunpack.c.h.b16 %v682
    %v993 = vunpack.c.l.b16 %v683
    %v994 = vunpack.c.h.b16 %v683
    %v995 = vunpack.c.l.b16 %v684
    %v996 = vunpack.c.h.b16 %v684
    %v997 = vunpack.c.l.b16 %v685
    %v998 = vunpack.c.h.b16 %v685
    %v999 = vunpack.c.l.b16 %v686
    %v1000 = vunpack.c.h.b16 %v686
    %v1001 = vunpack.c.l.b16 %v687
    %v1002 = vunpack.c.h.b16 %v687
    %v1003 = vunpack.c.l.b16 %v688
    %v1004 = vunpack.c.h.b16 %v688
    %v1005 = vunpack.c.l.b16 %v689
    %v1006 = vunpack.c.h.b16 %v689
    %v1007 = vunpack.c.l.b16 %v690
    %v1008 = vunpack.c.h.b16 %v690
    %v1009 = vunpack.c.l.b16 %v691
    %v1010 = vunpack.c.h.b16 %v691
    %v1011 = vunpack.c.l.b16 %v692
    %v1012 = vunpack.c.h.b16 %v692
    %v1013 = vunpack.c.l.b16 %v693
    %v1014 = vunpack.c.h.b16 %v693
    %v1015 = vunpack.c.l.b16 %v694
    %v1016 = vunpack.c.h.b16 %v694
    %v1017 = vunpack.c.l.b16 %v695
    %v1018 = vunpack.c.h.b16 %v695
    %v1019 = vunpack.c.l.b16 %v696
    %v1020 = vunpack.c.h.b16 %v696
    %v1021 = vunpack.c.l.b16 %v697
    %v1022 = vunpack.c.h.b16 %v697
    %v1023 = vunpack.c.l.b16 %v698
    %v1024 = vunpack.c.h.b16 %v698
    %v1025 = vunpack.c.l.b16 %v699
    %v1026 = vunpack.c.h.b16 %v699
    %v1027 = vunpack.c.l.b16 %v700
    %v1028 = vunpack.c.h.b16 %v700
    %v1029 = vunpack.c.l.b16 %v701
    %v1030 = vunpack.c.h.b16 %v701
    %v1031 = vunpack.c.l.b16 %v702
    %v1032 = vunpack.c.h.b16 %v702
    %v1033 = vunpack.c.l.b16 %v703
    %v1034 = vunpack.c.h.b16 %v703
    %v1035 = vunpack.c.l.b16 %v704
    %v1036 = vunpack.c.h.b16 %v704
    %v1037 = vunpack.c.l.b16 %v705
    %v1038 = vunpack.c.h.b16 %v705
    %v1039 = vunpack.c.l.b16 %v706
    %v1040 = vunpack.c.h.b16 %v706
    %v1041 = vunpack.c.l.b16 %v707
    %v1042 = vunpack.c.h.b16 %v707
    %v1043 = vunpack.c.l.b16 %v708
    %v1044 = vunpack.c.h.b16 %v708
    %v1045 = vunpack.c.l.b16 %v709
    %v1046 = vunpack.c.h.b16 %v709
    %v1047 = vunpack.c.l.b16 %v710
    %v1048 = vunpack.c.h.b16 %v710
    %v1049 = vunpack.c.l.b16 %v711
    %v1050 = vunpack.c.h.b16 %v711
    %v1051 = vunpack.c.l.b16 %v712
    %v1052 = vunpack.c.h.b16 %v712
    %v1053 = vunpack.c.l.b16 %v713
    %v1054 = vunpack.c.h.b16 %v713
    %v1055 = vunpack.c.l.b16 %v714
    %v1056 = vunpack.c.h.b16 %v714
    %v1057 = vunpack.c.l.b16 %v715
    %v1058 = vunpack.c.h.b16 %v715
    %v1059 = vunpack.c.l.b16 %v716
    %v1060 = vunpack.c.h.b16 %v716
    %v1061 = vunpack.c.l.b16 %v717
    %v1062 = vunpack.c.h.b16 %v717
    %v1063 = vunpack.c.l.b16 %v718
    %v1064 = vunpack.c.h.b16 %v718
    %v1065 = vunpack.c.l.b16 %v719
    %v1066 = vunpack.c.h.b16 %v719
    %v1067 = vunpack.c.l.b16 %v720
    %v1068 = vunpack.c.h.b16 %v720
    %v1069 = vunpack.c.l.b16 %v721
    %v1070 = vunpack.c.h.b16 %v721
    %v1071 = vunpack.c.l.b16 %v722
    %v1072 = vunpack.c.h.b16 %v722
    %v1073 = vunpack.c.l.b16 %v723
    %v1074 = vunpack.c.h.b16 %v723
    %v1075 = vunpack.c.l.b16 %v724
    %v1076 = vunpack.c.h.b16 %v724
    %v1077 = vunpack.c.l.b16 %v725
    %v1078 = vunpack.c.h.b16 %v725
    %v1079 = vunpack.c.l.b16 %v726
    %v1080 = vunpack.c.h.b16 %v726
    %v1081 = vunpack.c.l.b16 %v727
    %v1082 = vunpack.c.h.b16 %v727
    %v1083 = vunpack.c.l.b16 %v728
    %v1084 = vunpack.c.h.b16 %v728
    %v1085 = vunpack.c.l.b16 %v729
    %v1086 = vunpack.c.h.b16 %v729
    %v1087 = vunpack.c.l.b16 %v730
    %v1088 = vunpack.c.h.b16 %v730
    %v1089 = vunpack.c.l.b16 %v731
    %v1090 = vunpack.c.h.b16 %v731
    %v1091 = vunpack.c.l.b16 %v732
    %v1092 = vunpack.c.h.b16 %v732
    %v1093 = vunpack.c.l.b16 %v733
    %v1094 = vunpack.c.h.b16 %v733
    %v1095 = vunpack.c.l.b16 %v734
    %v1096 = vunpack.c.h.b16 %v734
    %v1097 = vunpack.c.l.b16 %v735
    %v1098 = vunpack.c.h.b16 %v735
    %v1099 = vunpack.c.l.b16 %v736
    %v1100 = vunpack.c.h.b16 %v736
    %v1101 = vunpack.c.l.b16 %v737
    %v1102 = vunpack.c.h.b16 %v737
    %v1103 = vunpack.c.l.b16 %v738
    %v1104 = vunpack.c.h.b16 %v738
    %v1105 = vunpack.c.l.b16 %v739
    %v1106 = vunpack.c.h.b16 %v739
    %v1107 = vunpack.c.l.b16 %v740
    %v1108 = vunpack.c.h.b16 %v740
    %v1109 = vunpack.c.l.b16 %v741
    %v1110 = vunpack.c.h.b16 %v741
    %v1111 = vunpack.c.l.b16 %v742
    %v1112 = vunpack.c.h.b16 %v742
    %v1113 = vunpack.c.l.b16 %v743
    %v1114 = vunpack.c.h.b16 %v743
    %v1115 = vunpack.c.l.b16 %v744
    %v1116 = vunpack.c.h.b16 %v744
    %v1117 = vunpack.c.l.b16 %v745
    %v1118 = vunpack.c.h.b16 %v745
    %v1119 = vunpack.c.l.b16 %v746
    %v1120 = vunpack.c.h.b16 %v746
    %v1121 = vunpack.c.l.b16 %v747
    %v1122 = vunpack.c.h.b16 %v747
    %v1123 = vunpack.c.l.b16 %v748
    %v1124 = vunpack.c.h.b16 %v748
    %v1125 = vunpack.c.l.b16 %v749
    %v1126 = vunpack.c.h.b16 %v749
    %v1127 = vunpack.c.l.b16 %v750
    %v1128 = vunpack.c.h.b16 %v750
    %v1129 = vunpack.c.l.b16 %v751
    %v1130 = vunpack.c.h.b16 %v751
    %v1131 = vunpack.c.l.b16 %v752
    %v1132 = vunpack.c.h.b16 %v752
    %v1133 = vunpack.c.l.b16 %v753
    %v1134 = vunpack.c.h.b16 %v753
    %v1135 = vunpack.c.l.b16 %v754
    %v1136 = vunpack.c.h.b16 %v754
    %v1137 = vunpack.c.l.b16 %v755
    %v1138 = vunpack.c.h.b16 %v755
    %v1139 = vunpack.c.l.b16 %v756
    %v1140 = vunpack.c.h.b16 %v756
    %v1141 = vunpack.c.l.b16 %v757
    %v1142 = vunpack.c.h.b16 %v757
    %v1143 = vunpack.c.l.b16 %v758
    %v1144 = vunpack.c.h.b16 %v758
    %v1145 = vunpack.c.l.b16 %v759
    %v1146 = vunpack.c.h.b16 %v759
    %v1147 = vunpack.c.l.b16 %v760
    %v1148 = vunpack.c.h.b16 %v760
    %v1149 = vunpack.c.l.b16 %v761
    %v1150 = vunpack.c.h.b16 %v761
    %v1151 = vunpack.c.l.b16 %v762
    %v1152 = vunpack.c.h.b16 %v762
    %v1153 = vunpack.c.l.b16 %v763
    %v1154 = vunpack.c.h.b16 %v763
    %v1155 = vunpack.c.l.b16 %v764
    %v1156 = vunpack.c.h.b16 %v764
    %v1157 = vunpack.c.l.b16 %v765
    %v1158 = vunpack.c.h.b16 %v765
    %v1159 = vunpack.c.l.b16 %v766
    %v1160 = vunpack.c.h.b16 %v766
    %v1161 = vunpack.c.l.b16 %v767
    %v1162 = vunpack.c.h.b16 %v767
    %v1163 = vunpack.c.l.b16 %v768
    %v1164 = vunpack.c.h.b16 %v768
    %v1165 = vpack.c.b16 %v911, %v909
    %v1166 = vpack.c.b16 %v912, %v910
    %v1167 = vpack.c.b16 %v915, %v913
    %v1168 = vpack.c.b16 %v916, %v914
    %v1169 = vpack.c.b16 %v919, %v917
    %v1170 = vpack.c.b16 %v920, %v918
    %v1171 = vpack.c.b16 %v923, %v921
    %v1172 = vpack.c.b16 %v924, %v922
    %v1173 = vpack.c.b16 %v927, %v925
    %v1174 = vpack.c.b16 %v928, %v926
    %v1175 = vpack.c.b16 %v931, %v929
    %v1176 = vpack.c.b16 %v932, %v930
    %v1177 = vpack.c.b16 %v935, %v933
    %v1178 = vpack.c.b16 %v936, %v934
    %v1179 = vpack.c.b16 %v939, %v937
    %v1180 = vpack.c.b16 %v940, %v938
    %v1181 = vpack.c.b16 %v943, %v941
    %v1182 = vpack.c.b16 %v944, %v942
    %v1183 = vpack.c.b16 %v947, %v945
    %v1184 = vpack.c.b16 %v948, %v946
    %v1185 = vpack.c.b16 %v951, %v949
    %v1186 = vpack.c.b16 %v952, %v950
    %v1187 = vpack.c.b16 %v955, %v953
    %v1188 = vpack.c.b16 %v956, %v954
    %v1189 = vpack.c.b16 %v959, %v957
    %v1190 = vpack.c.b16 %v960, %v958
    %v1191 = vpack.c.b16 %v963, %v961
    %v1192 = vpack.c.b16 %v964, %v962
    %v1193 = vpack.c.b16 %v967, %v965
    %v1194 = vpack.c.b16 %v968, %v966
    %v1195 = vpack.c.b16 %v971, %v969
    %v1196 = vpack.c.b16 %v972, %v970
    %v1197 = vpack.c.b16 %v975, %v973
    %v1198 = vpack.c.b16 %v976, %v974
    %v1199 = vpack.c.b16 %v979, %v977
    %v1200 = vpack.c.b16 %v980, %v978
    %v1201 = vpack.c.b16 %v983, %v981
    %v1202 = vpack.c.b16 %v984, %v982
    %v1203 = vpack.c.b16 %v987, %v985
    %v1204 = vpack.c.b16 %v988, %v986
    %v1205 = vpack.c.b16 %v991, %v989
    %v1206 = vpack.c.b16 %v992, %v990
    %v1207 = vpack.c.b16 %v995, %v993
    %v1208 = vpack.c.b16 %v996, %v994
    %v1209 = vpack.c.b16 %v999, %v997
    %v1210 = vpack.c.b16 %v1000, %v998
    %v1211 = vpack.c.b16 %v1003, %v1001
    %v1212 = vpack.c.b16 %v1004, %v1002
    %v1213 = vpack.c.b16 %v1007, %v1005
    %v1214 = vpack.c.b16 %v1008, %v1006
    %v1215 = vpack.c.b16 %v1011, %v1009
    %v1216 = vpack.c.b16 %v1012, %v1010
    %v1217 = vpack.c.b16 %v1015, %v1013
    %v1218 = vpack.c.b16 %v1016, %v1014
    %v1219 = vpack.c.b16 %v1019, %v1017
    %v1220 = vpack.c.b16 %v1020, %v1018
    %v1221 = vpack.c.b16 %v1023, %v1021
    %v1222 = vpack.c.b16 %v1024, %v1022
    %v1223 = vpack.c.b16 %v1027, %v1025
    %v1224 = vpack.c.b16 %v1028, %v1026
    %v1225 = vpack.c.b16 %v1031, %v1029
    %v1226 = vpack.c.b16 %v1032, %v1030
    %v1227 = vpack.c.b16 %v1035, %v1033
    %v1228 = vpack.c.b16 %v1036, %v1034
    %v1229 = vpack.c.b16 %v1039, %v1037
    %v1230 = vpack.c.b16 %v1040, %v1038
    %v1231 = vpack.c.b16 %v1043, %v1041
    %v1232 = vpack.c.b16 %v1044, %v1042
    %v1233 = vpack.c.b16 %v1047, %v1045
    %v1234 = vpack.c.b16 %v1048, %v1046
    %v1235 = vpack.c.b16 %v1051, %v1049
    %v1236 = vpack.c.b16 %v1052, %v1050
    %v1237 = vpack.c.b16 %v1055, %v1053
    %v1238 = vpack.c.b16 %v1056, %v1054
    %v1239 = vpack.c.b16 %v1059, %v1057
    %v1240 = vpack.c.b16 %v1060, %v1058
    %v1241 = vpack.c.b16 %v1063, %v1061
    %v1242 = vpack.c.b16 %v1064, %v1062
    %v1243 = vpack.c.b16 %v1067, %v1065
    %v1244 = vpack.c.b16 %v1068, %v1066
    %v1245 = vpack.c.b16 %v1071, %v1069
    %v1246 = vpack.c.b16 %v1072, %v1070
    %v1247 = vpack.c.b16 %v1075, %v1073
    %v1248 = vpack.c.b16 %v1076, %v1074
    %v1249 = vpack.c.b16 %v1079, %v1077
    %v1250 = vpack.c.b16 %v1080, %v1078
    %v1251 = vpack.c.b16 %v1083, %v1081
    %v1252 = vpack.c.b16 %v1084, %v1082
    %v1253 = vpack.c.b16 %v1087, %v1085
    %v1254 = vpack.c.b16 %v1088, %v1086
    %v1255 = vpack.c.b16 %v1091, %v1089
    %v1256 = vpack.c.b16 %v1092, %v1090
    %v1257 = vpack.c.b16 %v1095, %v1093
    %v1258 = vpack.c.b16 %v1096, %v1094
    %v1259 = vpack.c.b16 %v1099, %v1097
    %v1260 = vpack.c.b16 %v1100, %v1098
    %v1261 = vpack.c.b16 %v1103, %v1101
    %v1262 = vpack.c.b16 %v1104, %v1102
    %v1263 = vpack.c.b16 %v1107, %v1105
    %v1264 = vpack.c.b16 %v1108, %v1106
    %v1265 = vpack.c.b16 %v1111, %v1109
    %v1266 = vpack.c.b16 %v1112, %v1110
    %v1267 = vpack.c.b16 %v1115, %v1113
    %v1268 = vpack.c.b16 %v1116, %v1114
    %v1269 = vpack.c.b16 %v1119, %v1117
    %v1270 = vpack.c.b16 %v1120, %v1118
    %v1271 = vpack.c.b16 %v1123, %v1121
    %v1272 = vpack.c.b16 %v1124, %v1122
    %v1273 = vpack.c.b16 %v1127, %v1125
    %v1274 = vpack.c.b16 %v1128, %v1126
    %v1275 = vpack.c.b16 %v1131, %v1129
    %v1276 = vpack.c.b16 %v1132, %v1130
    %v1277 = vpack.c.b16 %v1135, %v1133
    %v1278 = vpack.c.b16 %v1136, %v1134
    %v1279 = vpack.c.b16 %v1139, %v1137
    %v1280 = vpack.c.b16 %v1140, %v1138
    %v1281 = vpack.c.b16 %v1143, %v1141
    %v1282 = vpack.c.b16 %v1144, %v1142
    %v1283 = vpack.c.b16 %v1147, %v1145
    %v1284 = vpack.c.b16 %v1148, %v1146
    %v1285 = vpack.c.b16 %v1151, %v1149
    %v1286 = vpack.c.b16 %v1152, %v1150
    %v1287 = vpack.c.b16 %v1155, %v1153
    %v1288 = vpack.c.b16 %v1156, %v1154
    %v1289 = vpack.c.b16 %v1159, %v1157
    %v1290 = vpack.c.b16 %v1160, %v1158
    %v1291 = vpack.c.b16 %v1163, %v1161
    %v1292 = vpack.c.b16 %v1164, %v1162
    %1421 = vmatprep.subr.bf16.mxu0 %v1166
    %1422 = vmatpush1.bf16.msra.mxu0 %v1165
    %1423 = vmatprep.subr.bf16.mxu0 %v1168
    %1424 = vmatpush1.bf16.msra.mxu0 %v1167
    %1425 = vmatprep.subr.bf16.mxu0 %v1170
    %1426 = vmatpush1.bf16.msra.mxu0 %v1169
    %1427 = vmatprep.subr.bf16.mxu0 %v1172
    %1428 = vmatpush1.bf16.msra.mxu0 %v1171
    %1429 = vmatprep.subr.bf16.mxu0 %v1174
    %1430 = vmatpush1.bf16.msra.mxu0 %v1173
    %1431 = vmatprep.subr.bf16.mxu0 %v1176
    %1432 = vmatpush1.bf16.msra.mxu0 %v1175
    %1433 = vmatprep.subr.bf16.mxu0 %v1178
    %1434 = vmatpush1.bf16.msra.mxu0 %v1177
    %1435 = vmatprep.subr.bf16.mxu0 %v1180
    %1436 = vmatpush1.bf16.msra.mxu0 %v1179
    %1437 = vmatprep.subr.bf16.mxu0 %v1182
    %1438 = vmatpush1.bf16.msra.mxu0 %v1181
    %1439 = vmatprep.subr.bf16.mxu0 %v1184
    %1440 = vmatpush1.bf16.msra.mxu0 %v1183
    %1441 = vmatprep.subr.bf16.mxu0 %v1186
    %1442 = vmatpush1.bf16.msra.mxu0 %v1185
    %1443 = vmatprep.subr.bf16.mxu0 %v1188
    %1444 = vmatpush1.bf16.msra.mxu0 %v1187
    %1445 = vmatprep.subr.bf16.mxu0 %v1190
    %1446 = vmatpush1.bf16.msra.mxu0 %v1189
    %1447 = vmatprep.subr.bf16.mxu0 %v1192
    %1448 = vmatpush1.bf16.msra.mxu0 %v1191
    %1449 = vmatprep.subr.bf16.mxu0 %v1194
    %1450 = vmatpush1.bf16.msra.mxu0 %v1193
    %1451 = vmatprep.subr.bf16.mxu0 %v1196
    %1452 = vmatpush1.bf16.msra.mxu0 %v1195
    %1453 = vmatprep.mubr.bf16.mxu0 %v634
    %1454 = vmatmul.mubr.bf16.gmra.mrb[0].mxu0 %v633
    %v1455 = vpop.f32.mrb[0].mxu0
    %v1456 = vadd.f32 %v774, %v1455
    %v1457 = vpop.f32.mrb[0].mxu0
    %v1458 = vadd.f32 %v778, %v1457
    %v1459 = vpop.f32.mrb[0].mxu0
    %v1460 = vadd.f32 %v774, %v1459
    %v1461 = vpop.f32.mrb[0].mxu0
    %v1462 = vadd.f32 %v778, %v1461
    %1463 = vdwg.mxu0
    %1464 = vmatprep.subr.bf16.mxu0 %v1198
    %1465 = vmatpush1.bf16.msra.mxu0 %v1197
    %1466 = vmatprep.subr.bf16.mxu0 %v1200
    %1467 = vmatpush1.bf16.msra.mxu0 %v1199
    %1468 = vmatprep.subr.bf16.mxu0 %v1202
    %1469 = vmatpush1.bf16.msra.mxu0 %v1201
    %1470 = vmatprep.subr.bf16.mxu0 %v1204
    %1471 = vmatpush1.bf16.msra.mxu0 %v1203
    %1472 = vmatprep.subr.bf16.mxu0 %v1206
    %1473 = vmatpush1.bf16.msra.mxu0 %v1205
    %1474 = vmatprep.subr.bf16.mxu0 %v1208
    %1475 = vmatpush1.bf16.msra.mxu0 %v1207
    %1476 = vmatprep.subr.bf16.mxu0 %v1210
    %1477 = vmatpush1.bf16.msra.mxu0 %v1209
    %1478 = vmatprep.subr.bf16.mxu0 %v1212
    %1479 = vmatpush1.bf16.msra.mxu0 %v1211
    %1480 = vmatprep.subr.bf16.mxu0 %v1214
    %1481 = vmatpush1.bf16.msra.mxu0 %v1213
    %1482 = vmatprep.subr.bf16.mxu0 %v1216
    %1483 = vmatpush1.bf16.msra.mxu0 %v1215
    %1484 = vmatprep.subr.bf16.mxu0 %v1218
    %1485 = vmatpush1.bf16.msra.mxu0 %v1217
    %1486 = vmatprep.subr.bf16.mxu0 %v1220
    %1487 = vmatpush1.bf16.msra.mxu0 %v1219
    %1488 = vmatprep.subr.bf16.mxu0 %v1222
    %1489 = vmatpush1.bf16.msra.mxu0 %v1221
    %1490 = vmatprep.subr.bf16.mxu0 %v1224
    %1491 = vmatpush1.bf16.msra.mxu0 %v1223
    %1492 = vmatprep.subr.bf16.mxu0 %v1226
    %1493 = vmatpush1.bf16.msra.mxu0 %v1225
    %1494 = vmatprep.subr.bf16.mxu0 %v1228
    %1495 = vmatpush1.bf16.msra.mxu0 %v1227
    %1496 = vmatprep.mubr.bf16.mxu0 %v636
    %1497 = vmatmul.mubr.bf16.gmra.mrb[0].mxu0 %v635
    %v1498 = vpop.f32.mrb[0].mxu0
    %v1499 = vadd.f32 %v1456, %v1498
    %v1500 = vpop.f32.mrb[0].mxu0
    %v1501 = vadd.f32 %v1458, %v1500
    %v1502 = vpop.f32.mrb[0].mxu0
    %v1503 = vadd.f32 %v1460, %v1502
    %v1504 = vpop.f32.mrb[0].mxu0
    %v1505 = vadd.f32 %v1462, %v1504
    %1506 = vdwg.mxu0
    %1507 = vmatprep.subr.bf16.mxu0 %v1230
    %1508 = vmatpush1.bf16.msra.mxu0 %v1229
    %1509 = vmatprep.subr.bf16.mxu0 %v1232
    %1510 = vmatpush1.bf16.msra.mxu0 %v1231
    %1511 = vmatprep.subr.bf16.mxu0 %v1234
    %1512 = vmatpush1.bf16.msra.mxu0 %v1233
    %1513 = vmatprep.subr.bf16.mxu0 %v1236
    %1514 = vmatpush1.bf16.msra.mxu0 %v1235
    %1515 = vmatprep.subr.bf16.mxu0 %v1238
    %1516 = vmatpush1.bf16.msra.mxu0 %v1237
    %1517 = vmatprep.subr.bf16.mxu0 %v1240
    %1518 = vmatpush1.bf16.msra.mxu0 %v1239
    %1519 = vmatprep.subr.bf16.mxu0 %v1242
    %1520 = vmatpush1.bf16.msra.mxu0 %v1241
    %1521 = vmatprep.subr.bf16.mxu0 %v1244
    %1522 = vmatpush1.bf16.msra.mxu0 %v1243
    %1523 = vmatprep.subr.bf16.mxu0 %v1246
    %1524 = vmatpush1.bf16.msra.mxu0 %v1245
    %1525 = vmatprep.subr.bf16.mxu0 %v1248
    %1526 = vmatpush1.bf16.msra.mxu0 %v1247
    %1527 = vmatprep.subr.bf16.mxu0 %v1250
    %1528 = vmatpush1.bf16.msra.mxu0 %v1249
    %1529 = vmatprep.subr.bf16.mxu0 %v1252
    %1530 = vmatpush1.bf16.msra.mxu0 %v1251
    %1531 = vmatprep.subr.bf16.mxu0 %v1254
    %1532 = vmatpush1.bf16.msra.mxu0 %v1253
    %1533 = vmatprep.subr.bf16.mxu0 %v1256
    %1534 = vmatpush1.bf16.msra.mxu0 %v1255
    %1535 = vmatprep.subr.bf16.mxu0 %v1258
    %1536 = vmatpush1.bf16.msra.mxu0 %v1257
    %1537 = vmatprep.subr.bf16.mxu0 %v1260
    %1538 = vmatpush1.bf16.msra.mxu0 %v1259
    %1539 = vmatprep.mubr.bf16.mxu0 %v638
    %1540 = vmatmul.mubr.bf16.gmra.mrb[0].mxu0 %v637
    %v1541 = vpop.f32.mrb[0].mxu0
    %v1542 = vadd.f32 %v1499, %v1541
    %v1543 = vpop.f32.mrb[0].mxu0
    %v1544 = vadd.f32 %v1501, %v1543
    %v1545 = vpop.f32.mrb[0].mxu0
    %v1546 = vadd.f32 %v1503, %v1545
    %v1547 = vpop.f32.mrb[0].mxu0
    %v1548 = vadd.f32 %v1505, %v1547
    %1549 = vdwg.mxu0
    %1550 = vmatprep.subr.bf16.mxu0 %v1262
    %1551 = vmatpush1.bf16.msra.mxu0 %v1261
    %1552 = vmatprep.subr.bf16.mxu0 %v1264
    %1553 = vmatpush1.bf16.msra.mxu0 %v1263
    %1554 = vmatprep.subr.bf16.mxu0 %v1266
    %1555 = vmatpush1.bf16.msra.mxu0 %v1265
    %1556 = vmatprep.subr.bf16.mxu0 %v1268
    %1557 = vmatpush1.bf16.msra.mxu0 %v1267
    %1558 = vmatprep.subr.bf16.mxu0 %v1270
    %1559 = vmatpush1.bf16.msra.mxu0 %v1269
    %1560 = vmatprep.subr.bf16.mxu0 %v1272
    %1561 = vmatpush1.bf16.msra.mxu0 %v1271
    %1562 = vmatprep.subr.bf16.mxu0 %v1274
    %1563 = vmatpush1.bf16.msra.mxu0 %v1273
    %1564 = vmatprep.subr.bf16.mxu0 %v1276
    %1565 = vmatpush1.bf16.msra.mxu0 %v1275
    %1566 = vmatprep.subr.bf16.mxu0 %v1278
    %1567 = vmatpush1.bf16.msra.mxu0 %v1277
    %1568 = vmatprep.subr.bf16.mxu0 %v1280
    %1569 = vmatpush1.bf16.msra.mxu0 %v1279
    %1570 = vmatprep.subr.bf16.mxu0 %v1282
    %1571 = vmatpush1.bf16.msra.mxu0 %v1281
    %1572 = vmatprep.subr.bf16.mxu0 %v1284
    %1573 = vmatpush1.bf16.msra.mxu0 %v1283
    %1574 = vmatprep.subr.bf16.mxu0 %v1286
    %1575 = vmatpush1.bf16.msra.mxu0 %v1285
    %1576 = vmatprep.subr.bf16.mxu0 %v1288
    %1577 = vmatpush1.bf16.msra.mxu0 %v1287
    %1578 = vmatprep.subr.bf16.mxu0 %v1290
    %1579 = vmatpush1.bf16.msra.mxu0 %v1289
    %1580 = vmatprep.subr.bf16.mxu0 %v1292
    %1581 = vmatpush1.bf16.msra.mxu0 %v1291
    %1582 = vmatprep.mubr.bf16.mxu0 %v640
    %1583 = vmatmul.mubr.bf16.gmra.mrb[0].mxu0 %v639
    %v1584 = vpop.f32.mrb[0].mxu0
    %v1585 = vadd.f32 %v1542, %v1584
    %v1586 = vpop.f32.mrb[0].mxu0
    %v1587 = vadd.f32 %v1544, %v1586
    %v1588 = vpop.f32.mrb[0].mxu0
    %v1589 = vadd.f32 %v1546, %v1588
    %v1590 = vpop.f32.mrb[0].mxu0
    %v1591 = vadd.f32 %v1548, %v1590
    %1592 = vdwg.mxu0
    %v1593 = vmax.f32 %v1585, 0.0
    %v1594 = vmax.f32 %v1587, 0.0
    %v1595 = vmax.f32 %v1589, 0.0
    %v1596 = vmax.f32 %v1591, 0.0
    %v1597 = vld [vmem:[#allocation5] sm:$0xf]
    %v1598 = vld [vmem:[#allocation5 + $0x4] sm:$0xf]
    %v1599 = vld [vmem:[#allocation10] sm:$0xff]
    %v1600 = vld [vmem:[#allocation10 + $0x8] sm:$0xff]
    %v1601 = vld [vmem:[#allocation10 + $0x10] sm:$0xff]
    %v1602 = vld [vmem:[#allocation10 + $0x18] sm:$0xff]
    %v1603 = vld [vmem:[#allocation10 + $0x20] sm:$0xff]
    %v1604 = vld [vmem:[#allocation10 + $0x28] sm:$0xff]
    %v1605 = vld [vmem:[#allocation10 + $0x30] sm:$0xff]
    %v1606 = vld [vmem:[#allocation10 + $0x38] sm:$0xff]
    %v1607 = vld [vmem:[#allocation10 + $0x40] sm:$0xff]
    %v1608 = vld [vmem:[#allocation10 + $0x48] sm:$0xff]
    %v1609 = vld [vmem:[#allocation10 + $0x50] sm:$0xff]
    %v1610 = vld [vmem:[#allocation10 + $0x58] sm:$0xff]
    %v1611 = vld [vmem:[#allocation10 + $0x60] sm:$0xff]
    %v1612 = vld [vmem:[#allocation10 + $0x68] sm:$0xff]
    %v1613 = vld [vmem:[#allocation10 + $0x70] sm:$0xff]
    %v1614 = vld [vmem:[#allocation10 + $0x78] sm:$0xff]
    %v1615 = vld [vmem:[#allocation10 + $0x80] sm:$0xff]
    %v1616 = vld [vmem:[#allocation10 + $0x88] sm:$0xff]
    %v1617 = vld [vmem:[#allocation10 + $0x90] sm:$0xff]
    %v1618 = vld [vmem:[#allocation10 + $0x98] sm:$0xff]
    %v1619 = vld [vmem:[#allocation10 + $0xa0] sm:$0xff]
    %v1620 = vld [vmem:[#allocation10 + $0xa8] sm:$0xff]
    %v1621 = vld [vmem:[#allocation10 + $0xb0] sm:$0xff]
    %v1622 = vld [vmem:[#allocation10 + $0xb8] sm:$0xff]
    %v1623 = vld [vmem:[#allocation10 + $0xc0] sm:$0xff]
    %v1624 = vld [vmem:[#allocation10 + $0xc8] sm:$0xff]
    %v1625 = vld [vmem:[#allocation10 + $0xd0] sm:$0xff]
    %v1626 = vld [vmem:[#allocation10 + $0xd8] sm:$0xff]
    %v1627 = vld [vmem:[#allocation10 + $0xe0] sm:$0xff]
    %v1628 = vld [vmem:[#allocation10 + $0xe8] sm:$0xff]
    %v1629 = vld [vmem:[#allocation10 + $0xf0] sm:$0xff]
    %v1630 = vld [vmem:[#allocation10 + $0xf8] sm:$0xff]
    %v1631 = vld [vmem:[#allocation10 + $0x100] sm:$0xff]
    %v1632 = vld [vmem:[#allocation10 + $0x108] sm:$0xff]
    %v1633 = vld [vmem:[#allocation10 + $0x110] sm:$0xff]
    %v1634 = vld [vmem:[#allocation10 + $0x118] sm:$0xff]
    %v1635 = vld [vmem:[#allocation10 + $0x120] sm:$0xff]
    %v1636 = vld [vmem:[#allocation10 + $0x128] sm:$0xff]
    %v1637 = vld [vmem:[#allocation10 + $0x130] sm:$0xff]
    %v1638 = vld [vmem:[#allocation10 + $0x138] sm:$0xff]
    %v1639 = vld [vmem:[#allocation10 + $0x140] sm:$0xff]
    %v1640 = vld [vmem:[#allocation10 + $0x148] sm:$0xff]
    %v1641 = vld [vmem:[#allocation10 + $0x150] sm:$0xff]
    %v1642 = vld [vmem:[#allocation10 + $0x158] sm:$0xff]
    %v1643 = vld [vmem:[#allocation10 + $0x160] sm:$0xff]
    %v1644 = vld [vmem:[#allocation10 + $0x168] sm:$0xff]
    %v1645 = vld [vmem:[#allocation10 + $0x170] sm:$0xff]
    %v1646 = vld [vmem:[#allocation10 + $0x178] sm:$0xff]
    %v1647 = vld [vmem:[#allocation10 + $0x180] sm:$0xff]
    %v1648 = vld [vmem:[#allocation10 + $0x188] sm:$0xff]
    %v1649 = vld [vmem:[#allocation10 + $0x190] sm:$0xff]
    %v1650 = vld [vmem:[#allocation10 + $0x198] sm:$0xff]
    %v1651 = vld [vmem:[#allocation10 + $0x1a0] sm:$0xff]
    %v1652 = vld [vmem:[#allocation10 + $0x1a8] sm:$0xff]
    %v1653 = vld [vmem:[#allocation10 + $0x1b0] sm:$0xff]
    %v1654 = vld [vmem:[#allocation10 + $0x1b8] sm:$0xff]
    %v1655 = vld [vmem:[#allocation10 + $0x1c0] sm:$0xff]
    %v1656 = vld [vmem:[#allocation10 + $0x1c8] sm:$0xff]
    %v1657 = vld [vmem:[#allocation10 + $0x1d0] sm:$0xff]
    %v1658 = vld [vmem:[#allocation10 + $0x1d8] sm:$0xff]
    %v1659 = vld [vmem:[#allocation10 + $0x1e0] sm:$0xff]
    %v1660 = vld [vmem:[#allocation10 + $0x1e8] sm:$0xff]
    %v1661 = vld [vmem:[#allocation10 + $0x1f0] sm:$0xff]
    %v1662 = vld [vmem:[#allocation10 + $0x1f8] sm:$0xff]
    %v1663 = vld [vmem:[%s7] sm:$0xff]
    %v1665 = vlaneseq
    %v1666 = vshrl.u32 %v1665, 7
    %v1667 = vsub.s32 0, %v1666
    %v1668 = vrot.slane %v1663, %v1667
    %v1669 = vlaneseq
    %v1670 = vshrl.u32 %v1669, 7
    %v1671 = vsub.s32 1, %v1670
    %v1672 = vrot.slane %v1663, %v1671
    %v1673 = vlaneseq
    %v1674 = vshrl.u32 %v1673, 7
    %v1675 = vsub.s32 2, %v1674
    %v1676 = vrot.slane %v1663, %v1675
    %v1677 = vlaneseq
    %v1678 = vshrl.u32 %v1677, 7
    %v1679 = vsub.s32 3, %v1678
    %v1680 = vrot.slane %v1663, %v1679
    %v1681 = vlaneseq
    %v1682 = vshrl.u32 %v1681, 7
    %v1683 = vsub.s32 4, %v1682
    %v1684 = vrot.slane %v1663, %v1683
    %v1685 = vlaneseq
    %v1686 = vshrl.u32 %v1685, 7
    %v1687 = vsub.s32 5, %v1686
    %v1688 = vrot.slane %v1663, %v1687
    %v1689 = vlaneseq
    %v1690 = vshrl.u32 %v1689, 7
    %v1691 = vsub.s32 6, %v1690
    %v1692 = vrot.slane %v1663, %v1691
    %v1693 = vlaneseq
    %v1694 = vshrl.u32 %v1693, 7
    %v1695 = vsub.s32 7, %v1694
    %v1696 = vrot.slane %v1663, %v1695
    %v1707 = vunpack.c.l.b16 %v1597
    %v1708 = vunpack.c.l.b16 %v1598
    %v1709 = vpack.c.b16 %v1708, %v1707
    %v1775 = vunpack.c.l.b16 %v1599
    %v1776 = vunpack.c.h.b16 %v1599
    %v1777 = vunpack.c.l.b16 %v1600
    %v1778 = vunpack.c.h.b16 %v1600
    %v1779 = vunpack.c.l.b16 %v1601
    %v1780 = vunpack.c.h.b16 %v1601
    %v1781 = vunpack.c.l.b16 %v1602
    %v1782 = vunpack.c.h.b16 %v1602
    %v1783 = vunpack.c.l.b16 %v1603
    %v1784 = vunpack.c.h.b16 %v1603
    %v1785 = vunpack.c.l.b16 %v1604
    %v1786 = vunpack.c.h.b16 %v1604
    %v1787 = vunpack.c.l.b16 %v1605
    %v1788 = vunpack.c.h.b16 %v1605
    %v1789 = vunpack.c.l.b16 %v1606
    %v1790 = vunpack.c.h.b16 %v1606
    %v1791 = vunpack.c.l.b16 %v1607
    %v1792 = vunpack.c.h.b16 %v1607
    %v1793 = vunpack.c.l.b16 %v1608
    %v1794 = vunpack.c.h.b16 %v1608
    %v1795 = vunpack.c.l.b16 %v1609
    %v1796 = vunpack.c.h.b16 %v1609
    %v1797 = vunpack.c.l.b16 %v1610
    %v1798 = vunpack.c.h.b16 %v1610
    %v1799 = vunpack.c.l.b16 %v1611
    %v1800 = vunpack.c.h.b16 %v1611
    %v1801 = vunpack.c.l.b16 %v1612
    %v1802 = vunpack.c.h.b16 %v1612
    %v1803 = vunpack.c.l.b16 %v1613
    %v1804 = vunpack.c.h.b16 %v1613
    %v1805 = vunpack.c.l.b16 %v1614
    %v1806 = vunpack.c.h.b16 %v1614
    %v1807 = vunpack.c.l.b16 %v1615
    %v1808 = vunpack.c.h.b16 %v1615
    %v1809 = vunpack.c.l.b16 %v1616
    %v1810 = vunpack.c.h.b16 %v1616
    %v1811 = vunpack.c.l.b16 %v1617
    %v1812 = vunpack.c.h.b16 %v1617
    %v1813 = vunpack.c.l.b16 %v1618
    %v1814 = vunpack.c.h.b16 %v1618
    %v1815 = vunpack.c.l.b16 %v1619
    %v1816 = vunpack.c.h.b16 %v1619
    %v1817 = vunpack.c.l.b16 %v1620
    %v1818 = vunpack.c.h.b16 %v1620
    %v1819 = vunpack.c.l.b16 %v1621
    %v1820 = vunpack.c.h.b16 %v1621
    %v1821 = vunpack.c.l.b16 %v1622
    %v1822 = vunpack.c.h.b16 %v1622
    %v1823 = vunpack.c.l.b16 %v1623
    %v1824 = vunpack.c.h.b16 %v1623
    %v1825 = vunpack.c.l.b16 %v1624
    %v1826 = vunpack.c.h.b16 %v1624
    %v1827 = vunpack.c.l.b16 %v1625
    %v1828 = vunpack.c.h.b16 %v1625
    %v1829 = vunpack.c.l.b16 %v1626
    %v1830 = vunpack.c.h.b16 %v1626
    %v1831 = vunpack.c.l.b16 %v1627
    %v1832 = vunpack.c.h.b16 %v1627
    %v1833 = vunpack.c.l.b16 %v1628
    %v1834 = vunpack.c.h.b16 %v1628
    %v1835 = vunpack.c.l.b16 %v1629
    %v1836 = vunpack.c.h.b16 %v1629
    %v1837 = vunpack.c.l.b16 %v1630
    %v1838 = vunpack.c.h.b16 %v1630
    %v1839 = vunpack.c.l.b16 %v1631
    %v1840 = vunpack.c.h.b16 %v1631
    %v1841 = vunpack.c.l.b16 %v1632
    %v1842 = vunpack.c.h.b16 %v1632
    %v1843 = vunpack.c.l.b16 %v1633
    %v1844 = vunpack.c.h.b16 %v1633
    %v1845 = vunpack.c.l.b16 %v1634
    %v1846 = vunpack.c.h.b16 %v1634
    %v1847 = vunpack.c.l.b16 %v1635
    %v1848 = vunpack.c.h.b16 %v1635
    %v1849 = vunpack.c.l.b16 %v1636
    %v1850 = vunpack.c.h.b16 %v1636
    %v1851 = vunpack.c.l.b16 %v1637
    %v1852 = vunpack.c.h.b16 %v1637
    %v1853 = vunpack.c.l.b16 %v1638
    %v1854 = vunpack.c.h.b16 %v1638
    %v1855 = vunpack.c.l.b16 %v1639
    %v1856 = vunpack.c.h.b16 %v1639
    %v1857 = vunpack.c.l.b16 %v1640
    %v1858 = vunpack.c.h.b16 %v1640
    %v1859 = vunpack.c.l.b16 %v1641
    %v1860 = vunpack.c.h.b16 %v1641
    %v1861 = vunpack.c.l.b16 %v1642
    %v1862 = vunpack.c.h.b16 %v1642
    %v1863 = vunpack.c.l.b16 %v1643
    %v1864 = vunpack.c.h.b16 %v1643
    %v1865 = vunpack.c.l.b16 %v1644
    %v1866 = vunpack.c.h.b16 %v1644
    %v1867 = vunpack.c.l.b16 %v1645
    %v1868 = vunpack.c.h.b16 %v1645
    %v1869 = vunpack.c.l.b16 %v1646
    %v1870 = vunpack.c.h.b16 %v1646
    %v1871 = vunpack.c.l.b16 %v1647
    %v1872 = vunpack.c.h.b16 %v1647
    %v1873 = vunpack.c.l.b16 %v1648
    %v1874 = vunpack.c.h.b16 %v1648
    %v1875 = vunpack.c.l.b16 %v1649
    %v1876 = vunpack.c.h.b16 %v1649
    %v1877 = vunpack.c.l.b16 %v1650
    %v1878 = vunpack.c.h.b16 %v1650
    %v1879 = vunpack.c.l.b16 %v1651
    %v1880 = vunpack.c.h.b16 %v1651
    %v1881 = vunpack.c.l.b16 %v1652
    %v1882 = vunpack.c.h.b16 %v1652
    %v1883 = vunpack.c.l.b16 %v1653
    %v1884 = vunpack.c.h.b16 %v1653
    %v1885 = vunpack.c.l.b16 %v1654
    %v1886 = vunpack.c.h.b16 %v1654
    %v1887 = vunpack.c.l.b16 %v1655
    %v1888 = vunpack.c.h.b16 %v1655
    %v1889 = vunpack.c.l.b16 %v1656
    %v1890 = vunpack.c.h.b16 %v1656
    %v1891 = vunpack.c.l.b16 %v1657
    %v1892 = vunpack.c.h.b16 %v1657
    %v1893 = vunpack.c.l.b16 %v1658
    %v1894 = vunpack.c.h.b16 %v1658
    %v1895 = vunpack.c.l.b16 %v1659
    %v1896 = vunpack.c.h.b16 %v1659
    %v1897 = vunpack.c.l.b16 %v1660
    %v1898 = vunpack.c.h.b16 %v1660
    %v1899 = vunpack.c.l.b16 %v1661
    %v1900 = vunpack.c.h.b16 %v1661
    %v1901 = vunpack.c.l.b16 %v1662
    %v1902 = vunpack.c.h.b16 %v1662
    %v1903 = vpack.c.b16 %v1783, %v1775
    %v1904 = vpack.c.b16 %v1784, %v1776
    %v1905 = vpack.c.b16 %v1785, %v1777
    %v1906 = vpack.c.b16 %v1786, %v1778
    %v1907 = vpack.c.b16 %v1787, %v1779
    %v1908 = vpack.c.b16 %v1788, %v1780
    %v1909 = vpack.c.b16 %v1789, %v1781
    %v1910 = vpack.c.b16 %v1790, %v1782
    %v1911 = vpack.c.b16 %v1799, %v1791
    %v1912 = vpack.c.b16 %v1800, %v1792
    %v1913 = vpack.c.b16 %v1801, %v1793
    %v1914 = vpack.c.b16 %v1802, %v1794
    %v1915 = vpack.c.b16 %v1803, %v1795
    %v1916 = vpack.c.b16 %v1804, %v1796
    %v1917 = vpack.c.b16 %v1805, %v1797
    %v1918 = vpack.c.b16 %v1806, %v1798
    %v1919 = vpack.c.b16 %v1815, %v1807
    %v1920 = vpack.c.b16 %v1816, %v1808
    %v1921 = vpack.c.b16 %v1817, %v1809
    %v1922 = vpack.c.b16 %v1818, %v1810
    %v1923 = vpack.c.b16 %v1819, %v1811
    %v1924 = vpack.c.b16 %v1820, %v1812
    %v1925 = vpack.c.b16 %v1821, %v1813
    %v1926 = vpack.c.b16 %v1822, %v1814
    %v1927 = vpack.c.b16 %v1831, %v1823
    %v1928 = vpack.c.b16 %v1832, %v1824
    %v1929 = vpack.c.b16 %v1833, %v1825
    %v1930 = vpack.c.b16 %v1834, %v1826
    %v1931 = vpack.c.b16 %v1835, %v1827
    %v1932 = vpack.c.b16 %v1836, %v1828
    %v1933 = vpack.c.b16 %v1837, %v1829
    %v1934 = vpack.c.b16 %v1838, %v1830
    %v1935 = vpack.c.b16 %v1847, %v1839
    %v1936 = vpack.c.b16 %v1848, %v1840
    %v1937 = vpack.c.b16 %v1849, %v1841
    %v1938 = vpack.c.b16 %v1850, %v1842
    %v1939 = vpack.c.b16 %v1851, %v1843
    %v1940 = vpack.c.b16 %v1852, %v1844
    %v1941 = vpack.c.b16 %v1853, %v1845
    %v1942 = vpack.c.b16 %v1854, %v1846
    %v1943 = vpack.c.b16 %v1863, %v1855
    %v1944 = vpack.c.b16 %v1864, %v1856
    %v1945 = vpack.c.b16 %v1865, %v1857
    %v1946 = vpack.c.b16 %v1866, %v1858
    %v1947 = vpack.c.b16 %v1867, %v1859
    %v1948 = vpack.c.b16 %v1868, %v1860
    %v1949 = vpack.c.b16 %v1869, %v1861
    %v1950 = vpack.c.b16 %v1870, %v1862
    %v1951 = vpack.c.b16 %v1879, %v1871
    %v1952 = vpack.c.b16 %v1880, %v1872
    %v1953 = vpack.c.b16 %v1881, %v1873
    %v1954 = vpack.c.b16 %v1882, %v1874
    %v1955 = vpack.c.b16 %v1883, %v1875
    %v1956 = vpack.c.b16 %v1884, %v1876
    %v1957 = vpack.c.b16 %v1885, %v1877
    %v1958 = vpack.c.b16 %v1886, %v1878
    %v1959 = vpack.c.b16 %v1895, %v1887
    %v1960 = vpack.c.b16 %v1896, %v1888
    %v1961 = vpack.c.b16 %v1897, %v1889
    %v1962 = vpack.c.b16 %v1898, %v1890
    %v1963 = vpack.c.b16 %v1899, %v1891
    %v1964 = vpack.c.b16 %v1900, %v1892
    %v1965 = vpack.c.b16 %v1901, %v1893
    %v1966 = vpack.c.b16 %v1902, %v1894
    %2031 = vmatprep.subr.bf16.mxu0 %v1904
    %2032 = vmatpush1.bf16.msra.mxu0 %v1903
    %2033 = vmatprep.subr.bf16.mxu0 %v1912
    %2034 = vmatpush1.bf16.msra.mxu0 %v1911
    %2035 = vmatprep.subr.bf16.mxu0 %v1920
    %2036 = vmatpush1.bf16.msra.mxu0 %v1919
    %2037 = vmatprep.subr.bf16.mxu0 %v1928
    %2038 = vmatpush1.bf16.msra.mxu0 %v1927
    %2039 = vmatprep.subr.bf16.mxu0 %v1936
    %2040 = vmatpush1.bf16.msra.mxu0 %v1935
    %2041 = vmatprep.subr.bf16.mxu0 %v1944
    %2042 = vmatpush1.bf16.msra.mxu0 %v1943
    %2043 = vmatprep.subr.bf16.mxu0 %v1952
    %2044 = vmatpush1.bf16.msra.mxu0 %v1951
    %2045 = vmatprep.subr.bf16.mxu0 %v1960
    %2046 = vmatpush1.bf16.msra.mxu0 %v1959
    %2047 = vmatprep.subr.bf16.mxu0 0
    %2048 = vmatpush1.bf16.msra.mxu0 0
    %2049 = vmatprep.subr.bf16.mxu0 0
    %2050 = vmatpush1.bf16.msra.mxu0 0
    %2051 = vmatprep.subr.bf16.mxu0 0
    %2052 = vmatpush1.bf16.msra.mxu0 0
    %2053 = vmatprep.subr.bf16.mxu0 0
    %2054 = vmatpush1.bf16.msra.mxu0 0
    %2055 = vmatprep.subr.bf16.mxu0 0
    %2056 = vmatpush1.bf16.msra.mxu0 0
    %2057 = vmatprep.subr.bf16.mxu0 0
    %2058 = vmatpush1.bf16.msra.mxu0 0
    %2059 = vmatprep.subr.bf16.mxu0 0
    %2060 = vmatpush1.bf16.msra.mxu0 0
    %2061 = vmatprep.subr.bf16.mxu0 0
    %2062 = vmatpush1.bf16.msra.mxu0 0
    %2063 = vmatprep.mubr.bf16.mxu0 0
    %2064 = vmatmul.mubr.bf16.gmra.mrb[0].mxu0 %v1709
    %v2065 = vpop.f32.mrb[0].mxu0
    %v2066 = vadd.f32 %v1668, %v2065
    %v2067 = vpop.f32.mrb[0].mxu0
    %v2068 = vadd.f32 %v1672, %v2067
    %v2069 = vpop.f32.mrb[0].mxu0
    %v2070 = vadd.f32 %v1668, %v2069
    %v2071 = vpop.f32.mrb[0].mxu0
    %v2072 = vadd.f32 %v1672, %v2071
    %2073 = vdwg.mxu0
    %2074 = vmatprep.subr.bf16.mxu0 %v1906
    %2075 = vmatpush1.bf16.msra.mxu0 %v1905
    %2076 = vmatprep.subr.bf16.mxu0 %v1914
    %2077 = vmatpush1.bf16.msra.mxu0 %v1913
    %2078 = vmatprep.subr.bf16.mxu0 %v1922
    %2079 = vmatpush1.bf16.msra.mxu0 %v1921
    %2080 = vmatprep.subr.bf16.mxu0 %v1930
    %2081 = vmatpush1.bf16.msra.mxu0 %v1929
    %2082 = vmatprep.subr.bf16.mxu0 %v1938
    %2083 = vmatpush1.bf16.msra.mxu0 %v1937
    %2084 = vmatprep.subr.bf16.mxu0 %v1946
    %2085 = vmatpush1.bf16.msra.mxu0 %v1945
    %2086 = vmatprep.subr.bf16.mxu0 %v1954
    %2087 = vmatpush1.bf16.msra.mxu0 %v1953
    %2088 = vmatprep.subr.bf16.mxu0 %v1962
    %2089 = vmatpush1.bf16.msra.mxu0 %v1961
    %2090 = vmatprep.subr.bf16.mxu0 0
    %2091 = vmatpush1.bf16.msra.mxu0 0
    %2092 = vmatprep.subr.bf16.mxu0 0
    %2093 = vmatpush1.bf16.msra.mxu0 0
    %2094 = vmatprep.subr.bf16.mxu0 0
    %2095 = vmatpush1.bf16.msra.mxu0 0
    %2096 = vmatprep.subr.bf16.mxu0 0
    %2097 = vmatpush1.bf16.msra.mxu0 0
    %2098 = vmatprep.subr.bf16.mxu0 0
    %2099 = vmatpush1.bf16.msra.mxu0 0
    %2100 = vmatprep.subr.bf16.mxu0 0
    %2101 = vmatpush1.bf16.msra.mxu0 0
    %2102 = vmatprep.subr.bf16.mxu0 0
    %2103 = vmatpush1.bf16.msra.mxu0 0
    %2104 = vmatprep.subr.bf16.mxu0 0
    %2105 = vmatpush1.bf16.msra.mxu0 0
    %2106 = vmatprep.mubr.bf16.mxu0 0
    %2107 = vmatmul.mubr.bf16.gmra.mrb[0].mxu0 %v1709
    %v2108 = vpop.f32.mrb[0].mxu0
    %v2109 = vadd.f32 %v1676, %v2108
    %v2110 = vpop.f32.mrb[0].mxu0
    %v2111 = vadd.f32 %v1680, %v2110
    %v2112 = vpop.f32.mrb[0].mxu0
    %v2113 = vadd.f32 %v1676, %v2112
    %v2114 = vpop.f32.mrb[0].mxu0
    %v2115 = vadd.f32 %v1680, %v2114
    %2116 = vdwg.mxu0
    %2117 = vmatprep.subr.bf16.mxu0 %v1908
    %2118 = vmatpush1.bf16.msra.mxu0 %v1907
    %2119 = vmatprep.subr.bf16.mxu0 %v1916
    %2120 = vmatpush1.bf16.msra.mxu0 %v1915
    %2121 = vmatprep.subr.bf16.mxu0 %v1924
    %2122 = vmatpush1.bf16.msra.mxu0 %v1923
    %2123 = vmatprep.subr.bf16.mxu0 %v1932
    %2124 = vmatpush1.bf16.msra.mxu0 %v1931
    %2125 = vmatprep.subr.bf16.mxu0 %v1940
    %2126 = vmatpush1.bf16.msra.mxu0 %v1939
    %2127 = vmatprep.subr.bf16.mxu0 %v1948
    %2128 = vmatpush1.bf16.msra.mxu0 %v1947
    %2129 = vmatprep.subr.bf16.mxu0 %v1956
    %2130 = vmatpush1.bf16.msra.mxu0 %v1955
    %2131 = vmatprep.subr.bf16.mxu0 %v1964
    %2132 = vmatpush1.bf16.msra.mxu0 %v1963
    %2133 = vmatprep.subr.bf16.mxu0 0
    %2134 = vmatpush1.bf16.msra.mxu0 0
    %2135 = vmatprep.subr.bf16.mxu0 0
    %2136 = vmatpush1.bf16.msra.mxu0 0
    %2137 = vmatprep.subr.bf16.mxu0 0
    %2138 = vmatpush1.bf16.msra.mxu0 0
    %2139 = vmatprep.subr.bf16.mxu0 0
    %2140 = vmatpush1.bf16.msra.mxu0 0
    %2141 = vmatprep.subr.bf16.mxu0 0
    %2142 = vmatpush1.bf16.msra.mxu0 0
    %2143 = vmatprep.subr.bf16.mxu0 0
    %2144 = vmatpush1.bf16.msra.mxu0 0
    %2145 = vmatprep.subr.bf16.mxu0 0
    %2146 = vmatpush1.bf16.msra.mxu0 0
    %2147 = vmatprep.subr.bf16.mxu0 0
    %2148 = vmatpush1.bf16.msra.mxu0 0
    %2149 = vmatprep.mubr.bf16.mxu0 0
    %2150 = vmatmul.mubr.bf16.gmra.mrb[0].mxu0 %v1709
    %v2151 = vpop.f32.mrb[0].mxu0
    %v2152 = vadd.f32 %v1684, %v2151
    %v2153 = vpop.f32.mrb[0].mxu0
    %v2154 = vadd.f32 %v1688, %v2153
    %v2155 = vpop.f32.mrb[0].mxu0
    %v2156 = vadd.f32 %v1684, %v2155
    %v2157 = vpop.f32.mrb[0].mxu0
    %v2158 = vadd.f32 %v1688, %v2157
    %2159 = vdwg.mxu0
    %2160 = vmatprep.subr.bf16.mxu0 %v1910
    %2161 = vmatpush1.bf16.msra.mxu0 %v1909
    %2162 = vmatprep.subr.bf16.mxu0 %v1918
    %2163 = vmatpush1.bf16.msra.mxu0 %v1917
    %2164 = vmatprep.subr.bf16.mxu0 %v1926
    %2165 = vmatpush1.bf16.msra.mxu0 %v1925
    %2166 = vmatprep.subr.bf16.mxu0 %v1934
    %2167 = vmatpush1.bf16.msra.mxu0 %v1933
    %2168 = vmatprep.subr.bf16.mxu0 %v1942
    %2169 = vmatpush1.bf16.msra.mxu0 %v1941
    %2170 = vmatprep.subr.bf16.mxu0 %v1950
    %2171 = vmatpush1.bf16.msra.mxu0 %v1949
    %2172 = vmatprep.subr.bf16.mxu0 %v1958
    %2173 = vmatpush1.bf16.msra.mxu0 %v1957
    %2174 = vmatprep.subr.bf16.mxu0 %v1966
    %2175 = vmatpush1.bf16.msra.mxu0 %v1965
    %2176 = vmatprep.subr.bf16.mxu0 0
    %2177 = vmatpush1.bf16.msra.mxu0 0
    %2178 = vmatprep.subr.bf16.mxu0 0
    %2179 = vmatpush1.bf16.msra.mxu0 0
    %2180 = vmatprep.subr.bf16.mxu0 0
    %2181 = vmatpush1.bf16.msra.mxu0 0
    %2182 = vmatprep.subr.bf16.mxu0 0
    %2183 = vmatpush1.bf16.msra.mxu0 0
    %2184 = vmatprep.subr.bf16.mxu0 0
    %2185 = vmatpush1.bf16.msra.mxu0 0
    %2186 = vmatprep.subr.bf16.mxu0 0
    %2187 = vmatpush1.bf16.msra.mxu0 0
    %2188 = vmatprep.subr.bf16.mxu0 0
    %2189 = vmatpush1.bf16.msra.mxu0 0
    %2190 = vmatprep.subr.bf16.mxu0 0
    %2191 = vmatpush1.bf16.msra.mxu0 0
    %2192 = vmatprep.mubr.bf16.mxu0 0
    %2193 = vmatmul.mubr.bf16.gmra.mrb[0].mxu0 %v1709
    %v2194 = vpop.f32.mrb[0].mxu0
    %v2195 = vadd.f32 %v1692, %v2194
    %v2196 = vpop.f32.mrb[0].mxu0
    %v2197 = vadd.f32 %v1696, %v2196
    %v2198 = vpop.f32.mrb[0].mxu0
    %v2199 = vadd.f32 %v1692, %v2198
    %v2200 = vpop.f32.mrb[0].mxu0
    %v2201 = vadd.f32 %v1696, %v2200
    %2202 = vdwg.mxu0
    %v2203 = vmax.f32 %v2066, 0.0
    %v2204 = vmax.f32 %v2068, 0.0
    %v2205 = vmax.f32 %v2109, 0.0
    %v2206 = vmax.f32 %v2111, 0.0
    %v2207 = vmax.f32 %v2152, 0.0
    %v2208 = vmax.f32 %v2154, 0.0
    %v2209 = vmax.f32 %v2195, 0.0
    %v2210 = vmax.f32 %v2197, 0.0
    %v2211 = vmax.f32 %v2070, 0.0
    %v2212 = vmax.f32 %v2072, 0.0
    %v2213 = vmax.f32 %v2113, 0.0
    %v2214 = vmax.f32 %v2115, 0.0
    %v2215 = vmax.f32 %v2156, 0.0
    %v2216 = vmax.f32 %v2158, 0.0
    %v2217 = vmax.f32 %v2199, 0.0
    %v2218 = vmax.f32 %v2201, 0.0
    %v2219 = vpack.c.bf16 %v2211, %v2203
    %v2220 = vpack.c.bf16 %v2212, %v2204
    %v2221 = vpack.c.bf16 %v2213, %v2205
    %v2222 = vpack.c.bf16 %v2214, %v2206
    %v2223 = vpack.c.bf16 %v2215, %v2207
    %v2224 = vpack.c.bf16 %v2216, %v2208
    %v2225 = vpack.c.bf16 %v2217, %v2209
    %v2226 = vpack.c.bf16 %v2218, %v2210
    %v2227 = vld [vmem:[#allocation11] sm:$0xff]
    %v2228 = vld [vmem:[#allocation11 + $0x8] sm:$0xff]
    %v2229 = vld [vmem:[#allocation11 + $0x10] sm:$0xff]
    %v2230 = vld [vmem:[#allocation11 + $0x18] sm:$0xff]
    %v2231 = vld [vmem:[#allocation11 + $0x20] sm:$0xff]
    %v2232 = vld [vmem:[#allocation11 + $0x28] sm:$0xff]
    %v2233 = vld [vmem:[#allocation11 + $0x30] sm:$0xff]
    %v2234 = vld [vmem:[#allocation11 + $0x38] sm:$0xff]
    %v2235 = vld [vmem:[#allocation11 + $0x40] sm:$0xff]
    %v2236 = vld [vmem:[#allocation11 + $0x48] sm:$0xff]
    %v2237 = vld [vmem:[#allocation11 + $0x50] sm:$0xff]
    %v2238 = vld [vmem:[#allocation11 + $0x58] sm:$0xff]
    %v2239 = vld [vmem:[#allocation11 + $0x60] sm:$0xff]
    %v2240 = vld [vmem:[#allocation11 + $0x68] sm:$0xff]
    %v2241 = vld [vmem:[#allocation11 + $0x70] sm:$0xff]
    %v2242 = vld [vmem:[#allocation11 + $0x78] sm:$0xff]
    %v2243 = vld [vmem:[#allocation11 + $0x80] sm:$0xff]
    %v2244 = vld [vmem:[#allocation11 + $0x88] sm:$0xff]
    %v2245 = vld [vmem:[#allocation11 + $0x90] sm:$0xff]
    %v2246 = vld [vmem:[#allocation11 + $0x98] sm:$0xff]
    %v2247 = vld [vmem:[#allocation11 + $0xa0] sm:$0xff]
    %v2248 = vld [vmem:[#allocation11 + $0xa8] sm:$0xff]
    %v2249 = vld [vmem:[#allocation11 + $0xb0] sm:$0xff]
    %v2250 = vld [vmem:[#allocation11 + $0xb8] sm:$0xff]
    %v2251 = vld [vmem:[#allocation11 + $0xc0] sm:$0xff]
    %v2252 = vld [vmem:[#allocation11 + $0xc8] sm:$0xff]
    %v2253 = vld [vmem:[#allocation11 + $0xd0] sm:$0xff]
    %v2254 = vld [vmem:[#allocation11 + $0xd8] sm:$0xff]
    %v2255 = vld [vmem:[#allocation11 + $0xe0] sm:$0xff]
    %v2256 = vld [vmem:[#allocation11 + $0xe8] sm:$0xff]
    %v2257 = vld [vmem:[#allocation11 + $0xf0] sm:$0xff]
    %v2258 = vld [vmem:[#allocation11 + $0xf8] sm:$0xff]
    %v2259 = vld [vmem:[#allocation11 + $0x100] sm:$0xff]
    %v2260 = vld [vmem:[#allocation11 + $0x108] sm:$0xff]
    %v2261 = vld [vmem:[#allocation11 + $0x110] sm:$0xff]
    %v2262 = vld [vmem:[#allocation11 + $0x118] sm:$0xff]
    %v2263 = vld [vmem:[#allocation11 + $0x120] sm:$0xff]
    %v2264 = vld [vmem:[#allocation11 + $0x128] sm:$0xff]
    %v2265 = vld [vmem:[#allocation11 + $0x130] sm:$0xff]
    %v2266 = vld [vmem:[#allocation11 + $0x138] sm:$0xff]
    %v2267 = vld [vmem:[#allocation11 + $0x140] sm:$0xff]
    %v2268 = vld [vmem:[#allocation11 + $0x148] sm:$0xff]
    %v2269 = vld [vmem:[#allocation11 + $0x150] sm:$0xff]
    %v2270 = vld [vmem:[#allocation11 + $0x158] sm:$0xff]
    %v2271 = vld [vmem:[#allocation11 + $0x160] sm:$0xff]
    %v2272 = vld [vmem:[#allocation11 + $0x168] sm:$0xff]
    %v2273 = vld [vmem:[#allocation11 + $0x170] sm:$0xff]
    %v2274 = vld [vmem:[#allocation11 + $0x178] sm:$0xff]
    %v2275 = vld [vmem:[#allocation11 + $0x180] sm:$0xff]
    %v2276 = vld [vmem:[#allocation11 + $0x188] sm:$0xff]
    %v2277 = vld [vmem:[#allocation11 + $0x190] sm:$0xff]
    %v2278 = vld [vmem:[#allocation11 + $0x198] sm:$0xff]
    %v2279 = vld [vmem:[#allocation11 + $0x1a0] sm:$0xff]
    %v2280 = vld [vmem:[#allocation11 + $0x1a8] sm:$0xff]
    %v2281 = vld [vmem:[#allocation11 + $0x1b0] sm:$0xff]
    %v2282 = vld [vmem:[#allocation11 + $0x1b8] sm:$0xff]
    %v2283 = vld [vmem:[#allocation11 + $0x1c0] sm:$0xff]
    %v2284 = vld [vmem:[#allocation11 + $0x1c8] sm:$0xff]
    %v2285 = vld [vmem:[#allocation11 + $0x1d0] sm:$0xff]
    %v2286 = vld [vmem:[#allocation11 + $0x1d8] sm:$0xff]
    %v2287 = vld [vmem:[#allocation11 + $0x1e0] sm:$0xff]
    %v2288 = vld [vmem:[#allocation11 + $0x1e8] sm:$0xff]
    %v2289 = vld [vmem:[#allocation11 + $0x1f0] sm:$0xff]
    %v2290 = vld [vmem:[#allocation11 + $0x1f8] sm:$0xff]
    %v2291 = vld [vmem:[#allocation11 + $0x200] sm:$0xff]
    %v2292 = vld [vmem:[#allocation11 + $0x208] sm:$0xff]
    %v2293 = vld [vmem:[#allocation11 + $0x210] sm:$0xff]
    %v2294 = vld [vmem:[#allocation11 + $0x218] sm:$0xff]
    %v2295 = vld [vmem:[#allocation11 + $0x220] sm:$0xff]
    %v2296 = vld [vmem:[#allocation11 + $0x228] sm:$0xff]
    %v2297 = vld [vmem:[#allocation11 + $0x230] sm:$0xff]
    %v2298 = vld [vmem:[#allocation11 + $0x238] sm:$0xff]
    %v2299 = vld [vmem:[#allocation11 + $0x240] sm:$0xff]
    %v2300 = vld [vmem:[#allocation11 + $0x248] sm:$0xff]
    %v2301 = vld [vmem:[#allocation11 + $0x250] sm:$0xff]
    %v2302 = vld [vmem:[#allocation11 + $0x258] sm:$0xff]
    %v2303 = vld [vmem:[#allocation11 + $0x260] sm:$0xff]
    %v2304 = vld [vmem:[#allocation11 + $0x268] sm:$0xff]
    %v2305 = vld [vmem:[#allocation11 + $0x270] sm:$0xff]
    %v2306 = vld [vmem:[#allocation11 + $0x278] sm:$0xff]
    %v2307 = vld [vmem:[#allocation11 + $0x280] sm:$0xff]
    %v2308 = vld [vmem:[#allocation11 + $0x288] sm:$0xff]
    %v2309 = vld [vmem:[#allocation11 + $0x290] sm:$0xff]
    %v2310 = vld [vmem:[#allocation11 + $0x298] sm:$0xff]
    %v2311 = vld [vmem:[#allocation11 + $0x2a0] sm:$0xff]
    %v2312 = vld [vmem:[#allocation11 + $0x2a8] sm:$0xff]
    %v2313 = vld [vmem:[#allocation11 + $0x2b0] sm:$0xff]
    %v2314 = vld [vmem:[#allocation11 + $0x2b8] sm:$0xff]
    %v2315 = vld [vmem:[#allocation11 + $0x2c0] sm:$0xff]
    %v2316 = vld [vmem:[#allocation11 + $0x2c8] sm:$0xff]
    %v2317 = vld [vmem:[#allocation11 + $0x2d0] sm:$0xff]
    %v2318 = vld [vmem:[#allocation11 + $0x2d8] sm:$0xff]
    %v2319 = vld [vmem:[#allocation11 + $0x2e0] sm:$0xff]
    %v2320 = vld [vmem:[#allocation11 + $0x2e8] sm:$0xff]
    %v2321 = vld [vmem:[#allocation11 + $0x2f0] sm:$0xff]
    %v2322 = vld [vmem:[#allocation11 + $0x2f8] sm:$0xff]
    %v2323 = vld [vmem:[#allocation11 + $0x300] sm:$0xff]
    %v2324 = vld [vmem:[#allocation11 + $0x308] sm:$0xff]
    %v2325 = vld [vmem:[#allocation11 + $0x310] sm:$0xff]
    %v2326 = vld [vmem:[#allocation11 + $0x318] sm:$0xff]
    %v2327 = vld [vmem:[#allocation11 + $0x320] sm:$0xff]
    %v2328 = vld [vmem:[#allocation11 + $0x328] sm:$0xff]
    %v2329 = vld [vmem:[#allocation11 + $0x330] sm:$0xff]
    %v2330 = vld [vmem:[#allocation11 + $0x338] sm:$0xff]
    %v2331 = vld [vmem:[#allocation11 + $0x340] sm:$0xff]
    %v2332 = vld [vmem:[#allocation11 + $0x348] sm:$0xff]
    %v2333 = vld [vmem:[#allocation11 + $0x350] sm:$0xff]
    %v2334 = vld [vmem:[#allocation11 + $0x358] sm:$0xff]
    %v2335 = vld [vmem:[#allocation11 + $0x360] sm:$0xff]
    %v2336 = vld [vmem:[#allocation11 + $0x368] sm:$0xff]
    %v2337 = vld [vmem:[#allocation11 + $0x370] sm:$0xff]
    %v2338 = vld [vmem:[#allocation11 + $0x378] sm:$0xff]
    %v2339 = vld [vmem:[#allocation11 + $0x380] sm:$0xff]
    %v2340 = vld [vmem:[#allocation11 + $0x388] sm:$0xff]
    %v2341 = vld [vmem:[#allocation11 + $0x390] sm:$0xff]
    %v2342 = vld [vmem:[#allocation11 + $0x398] sm:$0xff]
    %v2343 = vld [vmem:[#allocation11 + $0x3a0] sm:$0xff]
    %v2344 = vld [vmem:[#allocation11 + $0x3a8] sm:$0xff]
    %v2345 = vld [vmem:[#allocation11 + $0x3b0] sm:$0xff]
    %v2346 = vld [vmem:[#allocation11 + $0x3b8] sm:$0xff]
    %v2347 = vld [vmem:[#allocation11 + $0x3c0] sm:$0xff]
    %v2348 = vld [vmem:[#allocation11 + $0x3c8] sm:$0xff]
    %v2349 = vld [vmem:[#allocation11 + $0x3d0] sm:$0xff]
    %v2350 = vld [vmem:[#allocation11 + $0x3d8] sm:$0xff]
    %v2351 = vld [vmem:[#allocation11 + $0x3e0] sm:$0xff]
    %v2352 = vld [vmem:[#allocation11 + $0x3e8] sm:$0xff]
    %v2353 = vld [vmem:[#allocation11 + $0x3f0] sm:$0xff]
    %v2354 = vld [vmem:[#allocation11 + $0x3f8] sm:$0xff]
    %v2355 = vld [vmem:[%s9] sm:$0x3]
    %v2357 = vlaneseq
    %v2358 = vshrl.u32 %v2357, 7
    %v2359 = vsub.s32 0, %v2358
    %v2360 = vrot.slane %v2355, %v2359
    %v2361 = vlaneseq
    %v2362 = vshrl.u32 %v2361, 7
    %v2363 = vsub.s32 1, %v2362
    %v2364 = vrot.slane %v2355, %v2363
    %v2495 = vunpack.c.l.b16 %v2227
    %v2496 = vunpack.c.h.b16 %v2227
    %v2497 = vunpack.c.l.b16 %v2228
    %v2498 = vunpack.c.h.b16 %v2228
    %v2499 = vunpack.c.l.b16 %v2229
    %v2500 = vunpack.c.h.b16 %v2229
    %v2501 = vunpack.c.l.b16 %v2230
    %v2502 = vunpack.c.h.b16 %v2230
    %v2503 = vunpack.c.l.b16 %v2231
    %v2504 = vunpack.c.h.b16 %v2231
    %v2505 = vunpack.c.l.b16 %v2232
    %v2506 = vunpack.c.h.b16 %v2232
    %v2507 = vunpack.c.l.b16 %v2233
    %v2508 = vunpack.c.h.b16 %v2233
    %v2509 = vunpack.c.l.b16 %v2234
    %v2510 = vunpack.c.h.b16 %v2234
    %v2511 = vunpack.c.l.b16 %v2235
    %v2512 = vunpack.c.h.b16 %v2235
    %v2513 = vunpack.c.l.b16 %v2236
    %v2514 = vunpack.c.h.b16 %v2236
    %v2515 = vunpack.c.l.b16 %v2237
    %v2516 = vunpack.c.h.b16 %v2237
    %v2517 = vunpack.c.l.b16 %v2238
    %v2518 = vunpack.c.h.b16 %v2238
    %v2519 = vunpack.c.l.b16 %v2239
    %v2520 = vunpack.c.h.b16 %v2239
    %v2521 = vunpack.c.l.b16 %v2240
    %v2522 = vunpack.c.h.b16 %v2240
    %v2523 = vunpack.c.l.b16 %v2241
    %v2524 = vunpack.c.h.b16 %v2241
    %v2525 = vunpack.c.l.b16 %v2242
    %v2526 = vunpack.c.h.b16 %v2242
    %v2527 = vunpack.c.l.b16 %v2243
    %v2528 = vunpack.c.h.b16 %v2243
    %v2529 = vunpack.c.l.b16 %v2244
    %v2530 = vunpack.c.h.b16 %v2244
    %v2531 = vunpack.c.l.b16 %v2245
    %v2532 = vunpack.c.h.b16 %v2245
    %v2533 = vunpack.c.l.b16 %v2246
    %v2534 = vunpack.c.h.b16 %v2246
    %v2535 = vunpack.c.l.b16 %v2247
    %v2536 = vunpack.c.h.b16 %v2247
    %v2537 = vunpack.c.l.b16 %v2248
    %v2538 = vunpack.c.h.b16 %v2248
    %v2539 = vunpack.c.l.b16 %v2249
    %v2540 = vunpack.c.h.b16 %v2249
    %v2541 = vunpack.c.l.b16 %v2250
    %v2542 = vunpack.c.h.b16 %v2250
    %v2543 = vunpack.c.l.b16 %v2251
    %v2544 = vunpack.c.h.b16 %v2251
    %v2545 = vunpack.c.l.b16 %v2252
    %v2546 = vunpack.c.h.b16 %v2252
    %v2547 = vunpack.c.l.b16 %v2253
    %v2548 = vunpack.c.h.b16 %v2253
    %v2549 = vunpack.c.l.b16 %v2254
    %v2550 = vunpack.c.h.b16 %v2254
    %v2551 = vunpack.c.l.b16 %v2255
    %v2552 = vunpack.c.h.b16 %v2255
    %v2553 = vunpack.c.l.b16 %v2256
    %v2554 = vunpack.c.h.b16 %v2256
    %v2555 = vunpack.c.l.b16 %v2257
    %v2556 = vunpack.c.h.b16 %v2257
    %v2557 = vunpack.c.l.b16 %v2258
    %v2558 = vunpack.c.h.b16 %v2258
    %v2559 = vunpack.c.l.b16 %v2259
    %v2560 = vunpack.c.h.b16 %v2259
    %v2561 = vunpack.c.l.b16 %v2260
    %v2562 = vunpack.c.h.b16 %v2260
    %v2563 = vunpack.c.l.b16 %v2261
    %v2564 = vunpack.c.h.b16 %v2261
    %v2565 = vunpack.c.l.b16 %v2262
    %v2566 = vunpack.c.h.b16 %v2262
    %v2567 = vunpack.c.l.b16 %v2263
    %v2568 = vunpack.c.h.b16 %v2263
    %v2569 = vunpack.c.l.b16 %v2264
    %v2570 = vunpack.c.h.b16 %v2264
    %v2571 = vunpack.c.l.b16 %v2265
    %v2572 = vunpack.c.h.b16 %v2265
    %v2573 = vunpack.c.l.b16 %v2266
    %v2574 = vunpack.c.h.b16 %v2266
    %v2575 = vunpack.c.l.b16 %v2267
    %v2576 = vunpack.c.h.b16 %v2267
    %v2577 = vunpack.c.l.b16 %v2268
    %v2578 = vunpack.c.h.b16 %v2268
    %v2579 = vunpack.c.l.b16 %v2269
    %v2580 = vunpack.c.h.b16 %v2269
    %v2581 = vunpack.c.l.b16 %v2270
    %v2582 = vunpack.c.h.b16 %v2270
    %v2583 = vunpack.c.l.b16 %v2271
    %v2584 = vunpack.c.h.b16 %v2271
    %v2585 = vunpack.c.l.b16 %v2272
    %v2586 = vunpack.c.h.b16 %v2272
    %v2587 = vunpack.c.l.b16 %v2273
    %v2588 = vunpack.c.h.b16 %v2273
    %v2589 = vunpack.c.l.b16 %v2274
    %v2590 = vunpack.c.h.b16 %v2274
    %v2591 = vunpack.c.l.b16 %v2275
    %v2592 = vunpack.c.h.b16 %v2275
    %v2593 = vunpack.c.l.b16 %v2276
    %v2594 = vunpack.c.h.b16 %v2276
    %v2595 = vunpack.c.l.b16 %v2277
    %v2596 = vunpack.c.h.b16 %v2277
    %v2597 = vunpack.c.l.b16 %v2278
    %v2598 = vunpack.c.h.b16 %v2278
    %v2599 = vunpack.c.l.b16 %v2279
    %v2600 = vunpack.c.h.b16 %v2279
    %v2601 = vunpack.c.l.b16 %v2280
    %v2602 = vunpack.c.h.b16 %v2280
    %v2603 = vunpack.c.l.b16 %v2281
    %v2604 = vunpack.c.h.b16 %v2281
    %v2605 = vunpack.c.l.b16 %v2282
    %v2606 = vunpack.c.h.b16 %v2282
    %v2607 = vunpack.c.l.b16 %v2283
    %v2608 = vunpack.c.h.b16 %v2283
    %v2609 = vunpack.c.l.b16 %v2284
    %v2610 = vunpack.c.h.b16 %v2284
    %v2611 = vunpack.c.l.b16 %v2285
    %v2612 = vunpack.c.h.b16 %v2285
    %v2613 = vunpack.c.l.b16 %v2286
    %v2614 = vunpack.c.h.b16 %v2286
    %v2615 = vunpack.c.l.b16 %v2287
    %v2616 = vunpack.c.h.b16 %v2287
    %v2617 = vunpack.c.l.b16 %v2288
    %v2618 = vunpack.c.h.b16 %v2288
    %v2619 = vunpack.c.l.b16 %v2289
    %v2620 = vunpack.c.h.b16 %v2289
    %v2621 = vunpack.c.l.b16 %v2290
    %v2622 = vunpack.c.h.b16 %v2290
    %v2623 = vunpack.c.l.b16 %v2291
    %v2624 = vunpack.c.h.b16 %v2291
    %v2625 = vunpack.c.l.b16 %v2292
    %v2626 = vunpack.c.h.b16 %v2292
    %v2627 = vunpack.c.l.b16 %v2293
    %v2628 = vunpack.c.h.b16 %v2293
    %v2629 = vunpack.c.l.b16 %v2294
    %v2630 = vunpack.c.h.b16 %v2294
    %v2631 = vunpack.c.l.b16 %v2295
    %v2632 = vunpack.c.h.b16 %v2295
    %v2633 = vunpack.c.l.b16 %v2296
    %v2634 = vunpack.c.h.b16 %v2296
    %v2635 = vunpack.c.l.b16 %v2297
    %v2636 = vunpack.c.h.b16 %v2297
    %v2637 = vunpack.c.l.b16 %v2298
    %v2638 = vunpack.c.h.b16 %v2298
    %v2639 = vunpack.c.l.b16 %v2299
    %v2640 = vunpack.c.h.b16 %v2299
    %v2641 = vunpack.c.l.b16 %v2300
    %v2642 = vunpack.c.h.b16 %v2300
    %v2643 = vunpack.c.l.b16 %v2301
    %v2644 = vunpack.c.h.b16 %v2301
    %v2645 = vunpack.c.l.b16 %v2302
    %v2646 = vunpack.c.h.b16 %v2302
    %v2647 = vunpack.c.l.b16 %v2303
    %v2648 = vunpack.c.h.b16 %v2303
    %v2649 = vunpack.c.l.b16 %v2304
    %v2650 = vunpack.c.h.b16 %v2304
    %v2651 = vunpack.c.l.b16 %v2305
    %v2652 = vunpack.c.h.b16 %v2305
    %v2653 = vunpack.c.l.b16 %v2306
    %v2654 = vunpack.c.h.b16 %v2306
    %v2655 = vunpack.c.l.b16 %v2307
    %v2656 = vunpack.c.h.b16 %v2307
    %v2657 = vunpack.c.l.b16 %v2308
    %v2658 = vunpack.c.h.b16 %v2308
    %v2659 = vunpack.c.l.b16 %v2309
    %v2660 = vunpack.c.h.b16 %v2309
    %v2661 = vunpack.c.l.b16 %v2310
    %v2662 = vunpack.c.h.b16 %v2310
    %v2663 = vunpack.c.l.b16 %v2311
    %v2664 = vunpack.c.h.b16 %v2311
    %v2665 = vunpack.c.l.b16 %v2312
    %v2666 = vunpack.c.h.b16 %v2312
    %v2667 = vunpack.c.l.b16 %v2313
    %v2668 = vunpack.c.h.b16 %v2313
    %v2669 = vunpack.c.l.b16 %v2314
    %v2670 = vunpack.c.h.b16 %v2314
    %v2671 = vunpack.c.l.b16 %v2315
    %v2672 = vunpack.c.h.b16 %v2315
    %v2673 = vunpack.c.l.b16 %v2316
    %v2674 = vunpack.c.h.b16 %v2316
    %v2675 = vunpack.c.l.b16 %v2317
    %v2676 = vunpack.c.h.b16 %v2317
    %v2677 = vunpack.c.l.b16 %v2318
    %v2678 = vunpack.c.h.b16 %v2318
    %v2679 = vunpack.c.l.b16 %v2319
    %v2680 = vunpack.c.h.b16 %v2319
    %v2681 = vunpack.c.l.b16 %v2320
    %v2682 = vunpack.c.h.b16 %v2320
    %v2683 = vunpack.c.l.b16 %v2321
    %v2684 = vunpack.c.h.b16 %v2321
    %v2685 = vunpack.c.l.b16 %v2322
    %v2686 = vunpack.c.h.b16 %v2322
    %v2687 = vunpack.c.l.b16 %v2323
    %v2688 = vunpack.c.h.b16 %v2323
    %v2689 = vunpack.c.l.b16 %v2324
    %v2690 = vunpack.c.h.b16 %v2324
    %v2691 = vunpack.c.l.b16 %v2325
    %v2692 = vunpack.c.h.b16 %v2325
    %v2693 = vunpack.c.l.b16 %v2326
    %v2694 = vunpack.c.h.b16 %v2326
    %v2695 = vunpack.c.l.b16 %v2327
    %v2696 = vunpack.c.h.b16 %v2327
    %v2697 = vunpack.c.l.b16 %v2328
    %v2698 = vunpack.c.h.b16 %v2328
    %v2699 = vunpack.c.l.b16 %v2329
    %v2700 = vunpack.c.h.b16 %v2329
    %v2701 = vunpack.c.l.b16 %v2330
    %v2702 = vunpack.c.h.b16 %v2330
    %v2703 = vunpack.c.l.b16 %v2331
    %v2704 = vunpack.c.h.b16 %v2331
    %v2705 = vunpack.c.l.b16 %v2332
    %v2706 = vunpack.c.h.b16 %v2332
    %v2707 = vunpack.c.l.b16 %v2333
    %v2708 = vunpack.c.h.b16 %v2333
    %v2709 = vunpack.c.l.b16 %v2334
    %v2710 = vunpack.c.h.b16 %v2334
    %v2711 = vunpack.c.l.b16 %v2335
    %v2712 = vunpack.c.h.b16 %v2335
    %v2713 = vunpack.c.l.b16 %v2336
    %v2714 = vunpack.c.h.b16 %v2336
    %v2715 = vunpack.c.l.b16 %v2337
    %v2716 = vunpack.c.h.b16 %v2337
    %v2717 = vunpack.c.l.b16 %v2338
    %v2718 = vunpack.c.h.b16 %v2338
    %v2719 = vunpack.c.l.b16 %v2339
    %v2720 = vunpack.c.h.b16 %v2339
    %v2721 = vunpack.c.l.b16 %v2340
    %v2722 = vunpack.c.h.b16 %v2340
    %v2723 = vunpack.c.l.b16 %v2341
    %v2724 = vunpack.c.h.b16 %v2341
    %v2725 = vunpack.c.l.b16 %v2342
    %v2726 = vunpack.c.h.b16 %v2342
    %v2727 = vunpack.c.l.b16 %v2343
    %v2728 = vunpack.c.h.b16 %v2343
    %v2729 = vunpack.c.l.b16 %v2344
    %v2730 = vunpack.c.h.b16 %v2344
    %v2731 = vunpack.c.l.b16 %v2345
    %v2732 = vunpack.c.h.b16 %v2345
    %v2733 = vunpack.c.l.b16 %v2346
    %v2734 = vunpack.c.h.b16 %v2346
    %v2735 = vunpack.c.l.b16 %v2347
    %v2736 = vunpack.c.h.b16 %v2347
    %v2737 = vunpack.c.l.b16 %v2348
    %v2738 = vunpack.c.h.b16 %v2348
    %v2739 = vunpack.c.l.b16 %v2349
    %v2740 = vunpack.c.h.b16 %v2349
    %v2741 = vunpack.c.l.b16 %v2350
    %v2742 = vunpack.c.h.b16 %v2350
    %v2743 = vunpack.c.l.b16 %v2351
    %v2744 = vunpack.c.h.b16 %v2351
    %v2745 = vunpack.c.l.b16 %v2352
    %v2746 = vunpack.c.h.b16 %v2352
    %v2747 = vunpack.c.l.b16 %v2353
    %v2748 = vunpack.c.h.b16 %v2353
    %v2749 = vunpack.c.l.b16 %v2354
    %v2750 = vunpack.c.h.b16 %v2354
    %v2751 = vpack.c.b16 %v2497, %v2495
    %v2752 = vpack.c.b16 %v2498, %v2496
    %v2753 = vpack.c.b16 %v2501, %v2499
    %v2754 = vpack.c.b16 %v2502, %v2500
    %v2755 = vpack.c.b16 %v2505, %v2503
    %v2756 = vpack.c.b16 %v2506, %v2504
    %v2757 = vpack.c.b16 %v2509, %v2507
    %v2758 = vpack.c.b16 %v2510, %v2508
    %v2759 = vpack.c.b16 %v2513, %v2511
    %v2760 = vpack.c.b16 %v2514, %v2512
    %v2761 = vpack.c.b16 %v2517, %v2515
    %v2762 = vpack.c.b16 %v2518, %v2516
    %v2763 = vpack.c.b16 %v2521, %v2519
    %v2764 = vpack.c.b16 %v2522, %v2520
    %v2765 = vpack.c.b16 %v2525, %v2523
    %v2766 = vpack.c.b16 %v2526, %v2524
    %v2767 = vpack.c.b16 %v2529, %v2527
    %v2768 = vpack.c.b16 %v2530, %v2528
    %v2769 = vpack.c.b16 %v2533, %v2531
    %v2770 = vpack.c.b16 %v2534, %v2532
    %v2771 = vpack.c.b16 %v2537, %v2535
    %v2772 = vpack.c.b16 %v2538, %v2536
    %v2773 = vpack.c.b16 %v2541, %v2539
    %v2774 = vpack.c.b16 %v2542, %v2540
    %v2775 = vpack.c.b16 %v2545, %v2543
    %v2776 = vpack.c.b16 %v2546, %v2544
    %v2777 = vpack.c.b16 %v2549, %v2547
    %v2778 = vpack.c.b16 %v2550, %v2548
    %v2779 = vpack.c.b16 %v2553, %v2551
    %v2780 = vpack.c.b16 %v2554, %v2552
    %v2781 = vpack.c.b16 %v2557, %v2555
    %v2782 = vpack.c.b16 %v2558, %v2556
    %v2783 = vpack.c.b16 %v2561, %v2559
    %v2784 = vpack.c.b16 %v2562, %v2560
    %v2785 = vpack.c.b16 %v2565, %v2563
    %v2786 = vpack.c.b16 %v2566, %v2564
    %v2787 = vpack.c.b16 %v2569, %v2567
    %v2788 = vpack.c.b16 %v2570, %v2568
    %v2789 = vpack.c.b16 %v2573, %v2571
    %v2790 = vpack.c.b16 %v2574, %v2572
    %v2791 = vpack.c.b16 %v2577, %v2575
    %v2792 = vpack.c.b16 %v2578, %v2576
    %v2793 = vpack.c.b16 %v2581, %v2579
    %v2794 = vpack.c.b16 %v2582, %v2580
    %v2795 = vpack.c.b16 %v2585, %v2583
    %v2796 = vpack.c.b16 %v2586, %v2584
    %v2797 = vpack.c.b16 %v2589, %v2587
    %v2798 = vpack.c.b16 %v2590, %v2588
    %v2799 = vpack.c.b16 %v2593, %v2591
    %v2800 = vpack.c.b16 %v2594, %v2592
    %v2801 = vpack.c.b16 %v2597, %v2595
    %v2802 = vpack.c.b16 %v2598, %v2596
    %v2803 = vpack.c.b16 %v2601, %v2599
    %v2804 = vpack.c.b16 %v2602, %v2600
    %v2805 = vpack.c.b16 %v2605, %v2603
    %v2806 = vpack.c.b16 %v2606, %v2604
    %v2807 = vpack.c.b16 %v2609, %v2607
    %v2808 = vpack.c.b16 %v2610, %v2608
    %v2809 = vpack.c.b16 %v2613, %v2611
    %v2810 = vpack.c.b16 %v2614, %v2612
    %v2811 = vpack.c.b16 %v2617, %v2615
    %v2812 = vpack.c.b16 %v2618, %v2616
    %v2813 = vpack.c.b16 %v2621, %v2619
    %v2814 = vpack.c.b16 %v2622, %v2620
    %v2815 = vpack.c.b16 %v2625, %v2623
    %v2816 = vpack.c.b16 %v2626, %v2624
    %v2817 = vpack.c.b16 %v2629, %v2627
    %v2818 = vpack.c.b16 %v2630, %v2628
    %v2819 = vpack.c.b16 %v2633, %v2631
    %v2820 = vpack.c.b16 %v2634, %v2632
    %v2821 = vpack.c.b16 %v2637, %v2635
    %v2822 = vpack.c.b16 %v2638, %v2636
    %v2823 = vpack.c.b16 %v2641, %v2639
    %v2824 = vpack.c.b16 %v2642, %v2640
    %v2825 = vpack.c.b16 %v2645, %v2643
    %v2826 = vpack.c.b16 %v2646, %v2644
    %v2827 = vpack.c.b16 %v2649, %v2647
    %v2828 = vpack.c.b16 %v2650, %v2648
    %v2829 = vpack.c.b16 %v2653, %v2651
    %v2830 = vpack.c.b16 %v2654, %v2652
    %v2831 = vpack.c.b16 %v2657, %v2655
    %v2832 = vpack.c.b16 %v2658, %v2656
    %v2833 = vpack.c.b16 %v2661, %v2659
    %v2834 = vpack.c.b16 %v2662, %v2660
    %v2835 = vpack.c.b16 %v2665, %v2663
    %v2836 = vpack.c.b16 %v2666, %v2664
    %v2837 = vpack.c.b16 %v2669, %v2667
    %v2838 = vpack.c.b16 %v2670, %v2668
    %v2839 = vpack.c.b16 %v2673, %v2671
    %v2840 = vpack.c.b16 %v2674, %v2672
    %v2841 = vpack.c.b16 %v2677, %v2675
    %v2842 = vpack.c.b16 %v2678, %v2676
    %v2843 = vpack.c.b16 %v2681, %v2679
    %v2844 = vpack.c.b16 %v2682, %v2680
    %v2845 = vpack.c.b16 %v2685, %v2683
    %v2846 = vpack.c.b16 %v2686, %v2684
    %v2847 = vpack.c.b16 %v2689, %v2687
    %v2848 = vpack.c.b16 %v2690, %v2688
    %v2849 = vpack.c.b16 %v2693, %v2691
    %v2850 = vpack.c.b16 %v2694, %v2692
    %v2851 = vpack.c.b16 %v2697, %v2695
    %v2852 = vpack.c.b16 %v2698, %v2696
    %v2853 = vpack.c.b16 %v2701, %v2699
    %v2854 = vpack.c.b16 %v2702, %v2700
    %v2855 = vpack.c.b16 %v2705, %v2703
    %v2856 = vpack.c.b16 %v2706, %v2704
    %v2857 = vpack.c.b16 %v2709, %v2707
    %v2858 = vpack.c.b16 %v2710, %v2708
    %v2859 = vpack.c.b16 %v2713, %v2711
    %v2860 = vpack.c.b16 %v2714, %v2712
    %v2861 = vpack.c.b16 %v2717, %v2715
    %v2862 = vpack.c.b16 %v2718, %v2716
    %v2863 = vpack.c.b16 %v2721, %v2719
    %v2864 = vpack.c.b16 %v2722, %v2720
    %v2865 = vpack.c.b16 %v2725, %v2723
    %v2866 = vpack.c.b16 %v2726, %v2724
    %v2867 = vpack.c.b16 %v2729, %v2727
    %v2868 = vpack.c.b16 %v2730, %v2728
    %v2869 = vpack.c.b16 %v2733, %v2731
    %v2870 = vpack.c.b16 %v2734, %v2732
    %v2871 = vpack.c.b16 %v2737, %v2735
    %v2872 = vpack.c.b16 %v2738, %v2736
    %v2873 = vpack.c.b16 %v2741, %v2739
    %v2874 = vpack.c.b16 %v2742, %v2740
    %v2875 = vpack.c.b16 %v2745, %v2743
    %v2876 = vpack.c.b16 %v2746, %v2744
    %v2877 = vpack.c.b16 %v2749, %v2747
    %v2878 = vpack.c.b16 %v2750, %v2748
    %3007 = vmatprep.subr.bf16.mxu0 %v2752
    %3008 = vmatpush1.bf16.msra.mxu0 %v2751
    %3009 = vmatprep.subr.bf16.mxu0 %v2754
    %3010 = vmatpush1.bf16.msra.mxu0 %v2753
    %3011 = vmatprep.subr.bf16.mxu0 %v2756
    %3012 = vmatpush1.bf16.msra.mxu0 %v2755
    %3013 = vmatprep.subr.bf16.mxu0 %v2758
    %3014 = vmatpush1.bf16.msra.mxu0 %v2757
    %3015 = vmatprep.subr.bf16.mxu0 %v2760
    %3016 = vmatpush1.bf16.msra.mxu0 %v2759
    %3017 = vmatprep.subr.bf16.mxu0 %v2762
    %3018 = vmatpush1.bf16.msra.mxu0 %v2761
    %3019 = vmatprep.subr.bf16.mxu0 %v2764
    %3020 = vmatpush1.bf16.msra.mxu0 %v2763
    %3021 = vmatprep.subr.bf16.mxu0 %v2766
    %3022 = vmatpush1.bf16.msra.mxu0 %v2765
    %3023 = vmatprep.subr.bf16.mxu0 %v2768
    %3024 = vmatpush1.bf16.msra.mxu0 %v2767
    %3025 = vmatprep.subr.bf16.mxu0 %v2770
    %3026 = vmatpush1.bf16.msra.mxu0 %v2769
    %3027 = vmatprep.subr.bf16.mxu0 %v2772
    %3028 = vmatpush1.bf16.msra.mxu0 %v2771
    %3029 = vmatprep.subr.bf16.mxu0 %v2774
    %3030 = vmatpush1.bf16.msra.mxu0 %v2773
    %3031 = vmatprep.subr.bf16.mxu0 %v2776
    %3032 = vmatpush1.bf16.msra.mxu0 %v2775
    %3033 = vmatprep.subr.bf16.mxu0 %v2778
    %3034 = vmatpush1.bf16.msra.mxu0 %v2777
    %3035 = vmatprep.subr.bf16.mxu0 %v2780
    %3036 = vmatpush1.bf16.msra.mxu0 %v2779
    %3037 = vmatprep.subr.bf16.mxu0 %v2782
    %3038 = vmatpush1.bf16.msra.mxu0 %v2781
    %3039 = vmatprep.mubr.bf16.mxu0 %v2220
    %3040 = vmatmul.mubr.bf16.gmra.mrb[0].mxu0 %v2219
    %v3041 = vpop.f32.mrb[0].mxu0
    %v3042 = vadd.f32 %v2360, %v3041
    %v3043 = vpop.f32.mrb[0].mxu0
    %v3044 = vadd.f32 %v2364, %v3043
    %v3045 = vpop.f32.mrb[0].mxu0
    %v3046 = vadd.f32 %v2360, %v3045
    %v3047 = vpop.f32.mrb[0].mxu0
    %v3048 = vadd.f32 %v2364, %v3047
    %3049 = vdwg.mxu0
    %3050 = vmatprep.subr.bf16.mxu0 %v2784
    %3051 = vmatpush1.bf16.msra.mxu0 %v2783
    %3052 = vmatprep.subr.bf16.mxu0 %v2786
    %3053 = vmatpush1.bf16.msra.mxu0 %v2785
    %3054 = vmatprep.subr.bf16.mxu0 %v2788
    %3055 = vmatpush1.bf16.msra.mxu0 %v2787
    %3056 = vmatprep.subr.bf16.mxu0 %v2790
    %3057 = vmatpush1.bf16.msra.mxu0 %v2789
    %3058 = vmatprep.subr.bf16.mxu0 %v2792
    %3059 = vmatpush1.bf16.msra.mxu0 %v2791
    %3060 = vmatprep.subr.bf16.mxu0 %v2794
    %3061 = vmatpush1.bf16.msra.mxu0 %v2793
    %3062 = vmatprep.subr.bf16.mxu0 %v2796
    %3063 = vmatpush1.bf16.msra.mxu0 %v2795
    %3064 = vmatprep.subr.bf16.mxu0 %v2798
    %3065 = vmatpush1.bf16.msra.mxu0 %v2797
    %3066 = vmatprep.subr.bf16.mxu0 %v2800
    %3067 = vmatpush1.bf16.msra.mxu0 %v2799
    %3068 = vmatprep.subr.bf16.mxu0 %v2802
    %3069 = vmatpush1.bf16.msra.mxu0 %v2801
    %3070 = vmatprep.subr.bf16.mxu0 %v2804
    %3071 = vmatpush1.bf16.msra.mxu0 %v2803
    %3072 = vmatprep.subr.bf16.mxu0 %v2806
    %3073 = vmatpush1.bf16.msra.mxu0 %v2805
    %3074 = vmatprep.subr.bf16.mxu0 %v2808
    %3075 = vmatpush1.bf16.msra.mxu0 %v2807
    %3076 = vmatprep.subr.bf16.mxu0 %v2810
    %3077 = vmatpush1.bf16.msra.mxu0 %v2809
    %3078 = vmatprep.subr.bf16.mxu0 %v2812
    %3079 = vmatpush1.bf16.msra.mxu0 %v2811
    %3080 = vmatprep.subr.bf16.mxu0 %v2814
    %3081 = vmatpush1.bf16.msra.mxu0 %v2813
    %3082 = vmatprep.mubr.bf16.mxu0 %v2222
    %3083 = vmatmul.mubr.bf16.gmra.mrb[0].mxu0 %v2221
    %v3084 = vpop.f32.mrb[0].mxu0
    %v3085 = vadd.f32 %v3042, %v3084
    %v3086 = vpop.f32.mrb[0].mxu0
    %v3087 = vadd.f32 %v3044, %v3086
    %v3088 = vpop.f32.mrb[0].mxu0
    %v3089 = vadd.f32 %v3046, %v3088
    %v3090 = vpop.f32.mrb[0].mxu0
    %v3091 = vadd.f32 %v3048, %v3090
    %3092 = vdwg.mxu0
    %3093 = vmatprep.subr.bf16.mxu0 %v2816
    %3094 = vmatpush1.bf16.msra.mxu0 %v2815
    %3095 = vmatprep.subr.bf16.mxu0 %v2818
    %3096 = vmatpush1.bf16.msra.mxu0 %v2817
    %3097 = vmatprep.subr.bf16.mxu0 %v2820
    %3098 = vmatpush1.bf16.msra.mxu0 %v2819
    %3099 = vmatprep.subr.bf16.mxu0 %v2822
    %3100 = vmatpush1.bf16.msra.mxu0 %v2821
    %3101 = vmatprep.subr.bf16.mxu0 %v2824
    %3102 = vmatpush1.bf16.msra.mxu0 %v2823
    %3103 = vmatprep.subr.bf16.mxu0 %v2826
    %3104 = vmatpush1.bf16.msra.mxu0 %v2825
    %3105 = vmatprep.subr.bf16.mxu0 %v2828
    %3106 = vmatpush1.bf16.msra.mxu0 %v2827
    %3107 = vmatprep.subr.bf16.mxu0 %v2830
    %3108 = vmatpush1.bf16.msra.mxu0 %v2829
    %3109 = vmatprep.subr.bf16.mxu0 %v2832
    %3110 = vmatpush1.bf16.msra.mxu0 %v2831
    %3111 = vmatprep.subr.bf16.mxu0 %v2834
    %3112 = vmatpush1.bf16.msra.mxu0 %v2833
    %3113 = vmatprep.subr.bf16.mxu0 %v2836
    %3114 = vmatpush1.bf16.msra.mxu0 %v2835
    %3115 = vmatprep.subr.bf16.mxu0 %v2838
    %3116 = vmatpush1.bf16.msra.mxu0 %v2837
    %3117 = vmatprep.subr.bf16.mxu0 %v2840
    %3118 = vmatpush1.bf16.msra.mxu0 %v2839
    %3119 = vmatprep.subr.bf16.mxu0 %v2842
    %3120 = vmatpush1.bf16.msra.mxu0 %v2841
    %3121 = vmatprep.subr.bf16.mxu0 %v2844
    %3122 = vmatpush1.bf16.msra.mxu0 %v2843
    %3123 = vmatprep.subr.bf16.mxu0 %v2846
    %3124 = vmatpush1.bf16.msra.mxu0 %v2845
    %3125 = vmatprep.mubr.bf16.mxu0 %v2224
    %3126 = vmatmul.mubr.bf16.gmra.mrb[0].mxu0 %v2223
    %v3127 = vpop.f32.mrb[0].mxu0
    %v3128 = vadd.f32 %v3085, %v3127
    %v3129 = vpop.f32.mrb[0].mxu0
    %v3130 = vadd.f32 %v3087, %v3129
    %v3131 = vpop.f32.mrb[0].mxu0
    %v3132 = vadd.f32 %v3089, %v3131
    %v3133 = vpop.f32.mrb[0].mxu0
    %v3134 = vadd.f32 %v3091, %v3133
    %3135 = vdwg.mxu0
    %3136 = vmatprep.subr.bf16.mxu0 %v2848
    %3137 = vmatpush1.bf16.msra.mxu0 %v2847
    %3138 = vmatprep.subr.bf16.mxu0 %v2850
    %3139 = vmatpush1.bf16.msra.mxu0 %v2849
    %3140 = vmatprep.subr.bf16.mxu0 %v2852
    %3141 = vmatpush1.bf16.msra.mxu0 %v2851
    %3142 = vmatprep.subr.bf16.mxu0 %v2854
    %3143 = vmatpush1.bf16.msra.mxu0 %v2853
    %3144 = vmatprep.subr.bf16.mxu0 %v2856
    %3145 = vmatpush1.bf16.msra.mxu0 %v2855
    %3146 = vmatprep.subr.bf16.mxu0 %v2858
    %3147 = vmatpush1.bf16.msra.mxu0 %v2857
    %3148 = vmatprep.subr.bf16.mxu0 %v2860
    %3149 = vmatpush1.bf16.msra.mxu0 %v2859
    %3150 = vmatprep.subr.bf16.mxu0 %v2862
    %3151 = vmatpush1.bf16.msra.mxu0 %v2861
    %3152 = vmatprep.subr.bf16.mxu0 %v2864
    %3153 = vmatpush1.bf16.msra.mxu0 %v2863
    %3154 = vmatprep.subr.bf16.mxu0 %v2866
    %3155 = vmatpush1.bf16.msra.mxu0 %v2865
    %3156 = vmatprep.subr.bf16.mxu0 %v2868
    %3157 = vmatpush1.bf16.msra.mxu0 %v2867
    %3158 = vmatprep.subr.bf16.mxu0 %v2870
    %3159 = vmatpush1.bf16.msra.mxu0 %v2869
    %3160 = vmatprep.subr.bf16.mxu0 %v2872
    %3161 = vmatpush1.bf16.msra.mxu0 %v2871
    %3162 = vmatprep.subr.bf16.mxu0 %v2874
    %3163 = vmatpush1.bf16.msra.mxu0 %v2873
    %3164 = vmatprep.subr.bf16.mxu0 %v2876
    %3165 = vmatpush1.bf16.msra.mxu0 %v2875
    %3166 = vmatprep.subr.bf16.mxu0 %v2878
    %3167 = vmatpush1.bf16.msra.mxu0 %v2877
    %3168 = vmatprep.mubr.bf16.mxu0 %v2226
    %3169 = vmatmul.mubr.bf16.gmra.mrb[0].mxu0 %v2225
    %v3170 = vpop.f32.mrb[0].mxu0
    %v3171 = vadd.f32 %v3128, %v3170
    %v3172 = vpop.f32.mrb[0].mxu0
    %v3173 = vadd.f32 %v3130, %v3172
    %v3174 = vpop.f32.mrb[0].mxu0
    %v3175 = vadd.f32 %v3132, %v3174
    %v3176 = vpop.f32.mrb[0].mxu0
    %v3177 = vadd.f32 %v3134, %v3176
    %3178 = vdwg.mxu0
    %v3179 = vmax.f32 %v3171, 0.0
    %v3180 = vmax.f32 %v3173, 0.0
    %v3181 = vmax.f32 %v3175, 0.0
    %v3182 = vmax.f32 %v3177, 0.0
    %v3183 = vadd.f32 %v1593, %v3179
    %v3184 = vadd.f32 %v1594, %v3180
    %v3185 = vadd.f32 %v1595, %v3181
    %v3186 = vadd.f32 %v1596, %v3182
    %v3187 = vpack.c.bf16 %v3185, %v3183
    %v3188 = vpack.c.bf16 %v3186, %v3184
    %v3189 = vld [vmem:[#allocation13] sm:$0xf]
    %v3190 = vld [vmem:[#allocation13 + $0x4] sm:$0xf]
    %v3191 = vld [vmem:[#allocation13 + $0x8] sm:$0xf]
    %v3192 = vld [vmem:[#allocation13 + $0xc] sm:$0xf]
    %v3193 = vld [vmem:[#allocation13 + $0x10] sm:$0xf]
    %v3194 = vld [vmem:[#allocation13 + $0x14] sm:$0xf]
    %v3195 = vld [vmem:[#allocation13 + $0x18] sm:$0xf]
    %v3196 = vld [vmem:[#allocation13 + $0x1c] sm:$0xf]
    %v3197 = vld [vmem:[#allocation13 + $0x20] sm:$0xf]
    %v3198 = vld [vmem:[#allocation13 + $0x24] sm:$0xf]
    %v3199 = vld [vmem:[#allocation13 + $0x28] sm:$0xf]
    %v3200 = vld [vmem:[#allocation13 + $0x2c] sm:$0xf]
    %v3201 = vld [vmem:[#allocation13 + $0x30] sm:$0xf]
    %v3202 = vld [vmem:[#allocation13 + $0x34] sm:$0xf]
    %v3203 = vld [vmem:[#allocation13 + $0x38] sm:$0xf]
    %v3204 = vld [vmem:[#allocation13 + $0x3c] sm:$0xf]
    %v3205 = vld [vmem:[#allocation13 + $0x40] sm:$0xf]
    %v3206 = vld [vmem:[#allocation13 + $0x44] sm:$0xf]
    %v3207 = vld [vmem:[#allocation13 + $0x48] sm:$0xf]
    %v3208 = vld [vmem:[#allocation13 + $0x4c] sm:$0xf]
    %v3209 = vld [vmem:[#allocation13 + $0x50] sm:$0xf]
    %v3210 = vld [vmem:[#allocation13 + $0x54] sm:$0xf]
    %v3211 = vld [vmem:[#allocation13 + $0x58] sm:$0xf]
    %v3212 = vld [vmem:[#allocation13 + $0x5c] sm:$0xf]
    %v3213 = vld [vmem:[#allocation13 + $0x60] sm:$0xf]
    %v3214 = vld [vmem:[#allocation13 + $0x64] sm:$0xf]
    %v3215 = vld [vmem:[#allocation13 + $0x68] sm:$0xf]
    %v3216 = vld [vmem:[#allocation13 + $0x6c] sm:$0xf]
    %v3217 = vld [vmem:[#allocation13 + $0x70] sm:$0xf]
    %v3218 = vld [vmem:[#allocation13 + $0x74] sm:$0xf]
    %v3219 = vld [vmem:[#allocation13 + $0x78] sm:$0xf]
    %v3220 = vld [vmem:[#allocation13 + $0x7c] sm:$0xf]
    %v3221 = vld [vmem:[%s11] sm:$0x1]
    %v3223 = vlaneseq
    %v3224 = vshrl.u32 %v3223, 7
    %v3225 = vsub.s32 0, %v3224
    %v3226 = vrot.slane %v3221, %v3225
    %v3260 = vunpack.c.l.b16 %v3189
    %v3261 = vunpack.c.l.b16 %v3190
    %v3262 = vunpack.c.l.b16 %v3191
    %v3263 = vunpack.c.l.b16 %v3192
    %v3264 = vunpack.c.l.b16 %v3193
    %v3265 = vunpack.c.l.b16 %v3194
    %v3266 = vunpack.c.l.b16 %v3195
    %v3267 = vunpack.c.l.b16 %v3196
    %v3268 = vunpack.c.l.b16 %v3197
    %v3269 = vunpack.c.l.b16 %v3198
    %v3270 = vunpack.c.l.b16 %v3199
    %v3271 = vunpack.c.l.b16 %v3200
    %v3272 = vunpack.c.l.b16 %v3201
    %v3273 = vunpack.c.l.b16 %v3202
    %v3274 = vunpack.c.l.b16 %v3203
    %v3275 = vunpack.c.l.b16 %v3204
    %v3276 = vunpack.c.l.b16 %v3205
    %v3277 = vunpack.c.l.b16 %v3206
    %v3278 = vunpack.c.l.b16 %v3207
    %v3279 = vunpack.c.l.b16 %v3208
    %v3280 = vunpack.c.l.b16 %v3209
    %v3281 = vunpack.c.l.b16 %v3210
    %v3282 = vunpack.c.l.b16 %v3211
    %v3283 = vunpack.c.l.b16 %v3212
    %v3284 = vunpack.c.l.b16 %v3213
    %v3285 = vunpack.c.l.b16 %v3214
    %v3286 = vunpack.c.l.b16 %v3215
    %v3287 = vunpack.c.l.b16 %v3216
    %v3288 = vunpack.c.l.b16 %v3217
    %v3289 = vunpack.c.l.b16 %v3218
    %v3290 = vunpack.c.l.b16 %v3219
    %v3291 = vunpack.c.l.b16 %v3220
    %v3292 = vpack.c.b16 %v3261, %v3260
    %v3293 = vpack.c.b16 %v3263, %v3262
    %v3294 = vpack.c.b16 %v3265, %v3264
    %v3295 = vpack.c.b16 %v3267, %v3266
    %v3296 = vpack.c.b16 %v3269, %v3268
    %v3297 = vpack.c.b16 %v3271, %v3270
    %v3298 = vpack.c.b16 %v3273, %v3272
    %v3299 = vpack.c.b16 %v3275, %v3274
    %v3300 = vpack.c.b16 %v3277, %v3276
    %v3301 = vpack.c.b16 %v3279, %v3278
    %v3302 = vpack.c.b16 %v3281, %v3280
    %v3303 = vpack.c.b16 %v3283, %v3282
    %v3304 = vpack.c.b16 %v3285, %v3284
    %v3305 = vpack.c.b16 %v3287, %v3286
    %v3306 = vpack.c.b16 %v3289, %v3288
    %v3307 = vpack.c.b16 %v3291, %v3290
    %3324 = vmatprep.subr.bf16.mxu0 0
    %3325 = vmatpush1.bf16.msra.mxu0 %v3292
    %3326 = vmatprep.subr.bf16.mxu0 0
    %3327 = vmatpush1.bf16.msra.mxu0 %v3293
    %3328 = vmatprep.subr.bf16.mxu0 0
    %3329 = vmatpush1.bf16.msra.mxu0 %v3294
    %3330 = vmatprep.subr.bf16.mxu0 0
    %3331 = vmatpush1.bf16.msra.mxu0 %v3295
    %3332 = vmatprep.subr.bf16.mxu0 0
    %3333 = vmatpush1.bf16.msra.mxu0 %v3296
    %3334 = vmatprep.subr.bf16.mxu0 0
    %3335 = vmatpush1.bf16.msra.mxu0 %v3297
    %3336 = vmatprep.subr.bf16.mxu0 0
    %3337 = vmatpush1.bf16.msra.mxu0 %v3298
    %3338 = vmatprep.subr.bf16.mxu0 0
    %3339 = vmatpush1.bf16.msra.mxu0 %v3299
    %3340 = vmatprep.subr.bf16.mxu0 0
    %3341 = vmatpush1.bf16.msra.mxu0 %v3300
    %3342 = vmatprep.subr.bf16.mxu0 0
    %3343 = vmatpush1.bf16.msra.mxu0 %v3301
    %3344 = vmatprep.subr.bf16.mxu0 0
    %3345 = vmatpush1.bf16.msra.mxu0 %v3302
    %3346 = vmatprep.subr.bf16.mxu0 0
    %3347 = vmatpush1.bf16.msra.mxu0 %v3303
    %3348 = vmatprep.subr.bf16.mxu0 0
    %3349 = vmatpush1.bf16.msra.mxu0 %v3304
    %3350 = vmatprep.subr.bf16.mxu0 0
    %3351 = vmatpush1.bf16.msra.mxu0 %v3305
    %3352 = vmatprep.subr.bf16.mxu0 0
    %3353 = vmatpush1.bf16.msra.mxu0 %v3306
    %3354 = vmatprep.subr.bf16.mxu0 0
    %3355 = vmatpush1.bf16.msra.mxu0 %v3307
    %3356 = vmatprep.mubr.bf16.mxu0 %v3188
    %3357 = vmatmul.mubr.bf16.gmra.mrb[0].mxu0 %v3187
    %v3358 = vpop.f32.mrb[0].mxu0
    %v3359 = vadd.f32 %v3226, %v3358
    %v3360 = vpop.f32.mrb[0].mxu0
    %v3361 = vpop.f32.mrb[0].mxu0
    %v3362 = vadd.f32 %v3226, %v3361
    %v3363 = vpop.f32.mrb[0].mxu0
    %3364 = vdwg.mxu0
    %v3365 = vmax.f32 %v3359, 0.0
    %v3366 = vmax.f32 %v3362, 0.0
    %3367 = vst [vmem:[#allocation19] sm:$0xff] %v3365
    %3368 = vst [vmem:[#allocation19 + $0x8] sm:$0xff] %v3366
    %v3369 = vpack.c.bf16 %v3366, %v3365
    %v3370 = vld [vmem:[#allocation14] sm:$0xff]
    %v3371 = vld [vmem:[#allocation14 + $0x8] sm:$0xff]
    %v3372 = vld [vmem:[#allocation14 + $0x10] sm:$0xff]
    %v3373 = vld [vmem:[#allocation14 + $0x18] sm:$0xff]
    %v3374 = vld [vmem:[#allocation14 + $0x20] sm:$0xff]
    %v3375 = vld [vmem:[#allocation14 + $0x28] sm:$0xff]
    %v3376 = vld [vmem:[#allocation14 + $0x30] sm:$0xff]
    %v3377 = vld [vmem:[#allocation14 + $0x38] sm:$0xff]
    %v3378 = vld [vmem:[#allocation14 + $0x40] sm:$0xff]
    %v3379 = vld [vmem:[#allocation14 + $0x48] sm:$0xff]
    %v3380 = vld [vmem:[#allocation14 + $0x50] sm:$0xff]
    %v3381 = vld [vmem:[#allocation14 + $0x58] sm:$0xff]
    %v3382 = vld [vmem:[#allocation14 + $0x60] sm:$0xff]
    %v3383 = vld [vmem:[#allocation14 + $0x68] sm:$0xff]
    %v3384 = vld [vmem:[#allocation14 + $0x70] sm:$0xff]
    %v3385 = vld [vmem:[#allocation14 + $0x78] sm:$0xff]
    %v3386 = vld [vmem:[%s13] sm:$0x3]
    %v3388 = vlaneseq
    %v3389 = vshrl.u32 %v3388, 7
    %v3390 = vsub.s32 0, %v3389
    %v3391 = vrot.slane %v3386, %v3390
    %v3392 = vlaneseq
    %v3393 = vshrl.u32 %v3392, 7
    %v3394 = vsub.s32 1, %v3393
    %v3395 = vrot.slane %v3386, %v3394
    %v3414 = vunpack.c.l.b16 %v3370
    %v3415 = vunpack.c.h.b16 %v3370
    %v3416 = vunpack.c.l.b16 %v3371
    %v3417 = vunpack.c.h.b16 %v3371
    %v3418 = vunpack.c.l.b16 %v3372
    %v3419 = vunpack.c.h.b16 %v3372
    %v3420 = vunpack.c.l.b16 %v3373
    %v3421 = vunpack.c.h.b16 %v3373
    %v3422 = vunpack.c.l.b16 %v3374
    %v3423 = vunpack.c.h.b16 %v3374
    %v3424 = vunpack.c.l.b16 %v3375
    %v3425 = vunpack.c.h.b16 %v3375
    %v3426 = vunpack.c.l.b16 %v3376
    %v3427 = vunpack.c.h.b16 %v3376
    %v3428 = vunpack.c.l.b16 %v3377
    %v3429 = vunpack.c.h.b16 %v3377
    %v3430 = vunpack.c.l.b16 %v3378
    %v3431 = vunpack.c.h.b16 %v3378
    %v3432 = vunpack.c.l.b16 %v3379
    %v3433 = vunpack.c.h.b16 %v3379
    %v3434 = vunpack.c.l.b16 %v3380
    %v3435 = vunpack.c.h.b16 %v3380
    %v3436 = vunpack.c.l.b16 %v3381
    %v3437 = vunpack.c.h.b16 %v3381
    %v3438 = vunpack.c.l.b16 %v3382
    %v3439 = vunpack.c.h.b16 %v3382
    %v3440 = vunpack.c.l.b16 %v3383
    %v3441 = vunpack.c.h.b16 %v3383
    %v3442 = vunpack.c.l.b16 %v3384
    %v3443 = vunpack.c.h.b16 %v3384
    %v3444 = vunpack.c.l.b16 %v3385
    %v3445 = vunpack.c.h.b16 %v3385
    %v3446 = vpack.c.b16 %v3416, %v3414
    %v3447 = vpack.c.b16 %v3417, %v3415
    %v3448 = vpack.c.b16 %v3420, %v3418
    %v3449 = vpack.c.b16 %v3421, %v3419
    %v3450 = vpack.c.b16 %v3424, %v3422
    %v3451 = vpack.c.b16 %v3425, %v3423
    %v3452 = vpack.c.b16 %v3428, %v3426
    %v3453 = vpack.c.b16 %v3429, %v3427
    %v3454 = vpack.c.b16 %v3432, %v3430
    %v3455 = vpack.c.b16 %v3433, %v3431
    %v3456 = vpack.c.b16 %v3436, %v3434
    %v3457 = vpack.c.b16 %v3437, %v3435
    %v3458 = vpack.c.b16 %v3440, %v3438
    %v3459 = vpack.c.b16 %v3441, %v3439
    %v3460 = vpack.c.b16 %v3444, %v3442
    %v3461 = vpack.c.b16 %v3445, %v3443
    %3478 = vmatprep.subr.bf16.mxu0 %v3447
    %3479 = vmatpush1.bf16.msra.mxu0 %v3446
    %3480 = vmatprep.subr.bf16.mxu0 %v3449
    %3481 = vmatpush1.bf16.msra.mxu0 %v3448
    %3482 = vmatprep.subr.bf16.mxu0 %v3451
    %3483 = vmatpush1.bf16.msra.mxu0 %v3450
    %3484 = vmatprep.subr.bf16.mxu0 %v3453
    %3485 = vmatpush1.bf16.msra.mxu0 %v3452
    %3486 = vmatprep.subr.bf16.mxu0 %v3455
    %3487 = vmatpush1.bf16.msra.mxu0 %v3454
    %3488 = vmatprep.subr.bf16.mxu0 %v3457
    %3489 = vmatpush1.bf16.msra.mxu0 %v3456
    %3490 = vmatprep.subr.bf16.mxu0 %v3459
    %3491 = vmatpush1.bf16.msra.mxu0 %v3458
    %3492 = vmatprep.subr.bf16.mxu0 %v3461
    %3493 = vmatpush1.bf16.msra.mxu0 %v3460
    %3494 = vmatprep.subr.bf16.mxu0 0
    %3495 = vmatpush1.bf16.msra.mxu0 0
    %3496 = vmatprep.subr.bf16.mxu0 0
    %3497 = vmatpush1.bf16.msra.mxu0 0
    %3498 = vmatprep.subr.bf16.mxu0 0
    %3499 = vmatpush1.bf16.msra.mxu0 0
    %3500 = vmatprep.subr.bf16.mxu0 0
    %3501 = vmatpush1.bf16.msra.mxu0 0
    %3502 = vmatprep.subr.bf16.mxu0 0
    %3503 = vmatpush1.bf16.msra.mxu0 0
    %3504 = vmatprep.subr.bf16.mxu0 0
    %3505 = vmatpush1.bf16.msra.mxu0 0
    %3506 = vmatprep.subr.bf16.mxu0 0
    %3507 = vmatpush1.bf16.msra.mxu0 0
    %3508 = vmatprep.subr.bf16.mxu0 0
    %3509 = vmatpush1.bf16.msra.mxu0 0
    %3510 = vmatprep.mubr.bf16.mxu0 0
    %3511 = vmatmul.mubr.bf16.gmra.mrb[0].mxu0 %v3369
    %v3512 = vpop.f32.mrb[0].mxu0
    %v3513 = vadd.f32 %v3391, %v3512
    %v3514 = vpop.f32.mrb[0].mxu0
    %v3515 = vadd.f32 %v3395, %v3514
    %v3516 = vpop.f32.mrb[0].mxu0
    %v3517 = vadd.f32 %v3391, %v3516
    %v3518 = vpop.f32.mrb[0].mxu0
    %v3519 = vadd.f32 %v3395, %v3518
    %3520 = vdwg.mxu0
    %v3521 = vmax.f32 %v3513, 0.0
    %v3522 = vmax.f32 %v3515, 0.0
    %v3523 = vmax.f32 %v3517, 0.0
    %v3524 = vmax.f32 %v3519, 0.0
    %v3525 = vpack.c.bf16 %v3523, %v3521
    %v3526 = vpack.c.bf16 %v3524, %v3522
    %v3527 = vld [vmem:[#allocation16] sm:$0xff]
    %v3528 = vld [vmem:[#allocation16 + $0x8] sm:$0xff]
    %v3529 = vld [vmem:[#allocation16 + $0x10] sm:$0xff]
    %v3530 = vld [vmem:[#allocation16 + $0x18] sm:$0xff]
    %v3531 = vld [vmem:[#allocation16 + $0x20] sm:$0xff]
    %v3532 = vld [vmem:[#allocation16 + $0x28] sm:$0xff]
    %v3533 = vld [vmem:[#allocation16 + $0x30] sm:$0xff]
    %v3534 = vld [vmem:[#allocation16 + $0x38] sm:$0xff]
    %v3535 = vld [vmem:[#allocation16 + $0x40] sm:$0xff]
    %v3536 = vld [vmem:[#allocation16 + $0x48] sm:$0xff]
    %v3537 = vld [vmem:[#allocation16 + $0x50] sm:$0xff]
    %v3538 = vld [vmem:[#allocation16 + $0x58] sm:$0xff]
    %v3539 = vld [vmem:[#allocation16 + $0x60] sm:$0xff]
    %v3540 = vld [vmem:[#allocation16 + $0x68] sm:$0xff]
    %v3541 = vld [vmem:[#allocation16 + $0x70] sm:$0xff]
    %v3542 = vld [vmem:[#allocation16 + $0x78] sm:$0xff]
    %v3543 = vld [vmem:[#allocation16 + $0x80] sm:$0xff]
    %v3544 = vld [vmem:[#allocation16 + $0x88] sm:$0xff]
    %v3545 = vld [vmem:[#allocation16 + $0x90] sm:$0xff]
    %v3546 = vld [vmem:[#allocation16 + $0x98] sm:$0xff]
    %v3547 = vld [vmem:[#allocation16 + $0xa0] sm:$0xff]
    %v3548 = vld [vmem:[#allocation16 + $0xa8] sm:$0xff]
    %v3549 = vld [vmem:[#allocation16 + $0xb0] sm:$0xff]
    %v3550 = vld [vmem:[#allocation16 + $0xb8] sm:$0xff]
    %v3551 = vld [vmem:[#allocation16 + $0xc0] sm:$0xff]
    %v3552 = vld [vmem:[#allocation16 + $0xc8] sm:$0xff]
    %v3553 = vld [vmem:[#allocation16 + $0xd0] sm:$0xff]
    %v3554 = vld [vmem:[#allocation16 + $0xd8] sm:$0xff]
    %v3555 = vld [vmem:[#allocation16 + $0xe0] sm:$0xff]
    %v3556 = vld [vmem:[#allocation16 + $0xe8] sm:$0xff]
    %v3557 = vld [vmem:[#allocation16 + $0xf0] sm:$0xff]
    %v3558 = vld [vmem:[#allocation16 + $0xf8] sm:$0xff]
    %v3559 = vld [vmem:[#allocation16 + $0x100] sm:$0xff]
    %v3560 = vld [vmem:[#allocation16 + $0x108] sm:$0xff]
    %v3561 = vld [vmem:[#allocation16 + $0x110] sm:$0xff]
    %v3562 = vld [vmem:[#allocation16 + $0x118] sm:$0xff]
    %v3563 = vld [vmem:[#allocation16 + $0x120] sm:$0xff]
    %v3564 = vld [vmem:[#allocation16 + $0x128] sm:$0xff]
    %v3565 = vld [vmem:[#allocation16 + $0x130] sm:$0xff]
    %v3566 = vld [vmem:[#allocation16 + $0x138] sm:$0xff]
    %v3567 = vld [vmem:[#allocation16 + $0x140] sm:$0xff]
    %v3568 = vld [vmem:[#allocation16 + $0x148] sm:$0xff]
    %v3569 = vld [vmem:[#allocation16 + $0x150] sm:$0xff]
    %v3570 = vld [vmem:[#allocation16 + $0x158] sm:$0xff]
    %v3571 = vld [vmem:[#allocation16 + $0x160] sm:$0xff]
    %v3572 = vld [vmem:[#allocation16 + $0x168] sm:$0xff]
    %v3573 = vld [vmem:[#allocation16 + $0x170] sm:$0xff]
    %v3574 = vld [vmem:[#allocation16 + $0x178] sm:$0xff]
    %v3575 = vld [vmem:[#allocation16 + $0x180] sm:$0xff]
    %v3576 = vld [vmem:[#allocation16 + $0x188] sm:$0xff]
    %v3577 = vld [vmem:[#allocation16 + $0x190] sm:$0xff]
    %v3578 = vld [vmem:[#allocation16 + $0x198] sm:$0xff]
    %v3579 = vld [vmem:[#allocation16 + $0x1a0] sm:$0xff]
    %v3580 = vld [vmem:[#allocation16 + $0x1a8] sm:$0xff]
    %v3581 = vld [vmem:[#allocation16 + $0x1b0] sm:$0xff]
    %v3582 = vld [vmem:[#allocation16 + $0x1b8] sm:$0xff]
    %v3583 = vld [vmem:[#allocation16 + $0x1c0] sm:$0xff]
    %v3584 = vld [vmem:[#allocation16 + $0x1c8] sm:$0xff]
    %v3585 = vld [vmem:[#allocation16 + $0x1d0] sm:$0xff]
    %v3586 = vld [vmem:[#allocation16 + $0x1d8] sm:$0xff]
    %v3587 = vld [vmem:[#allocation16 + $0x1e0] sm:$0xff]
    %v3588 = vld [vmem:[#allocation16 + $0x1e8] sm:$0xff]
    %v3589 = vld [vmem:[#allocation16 + $0x1f0] sm:$0xff]
    %v3590 = vld [vmem:[#allocation16 + $0x1f8] sm:$0xff]
    %v3591 = vld [vmem:[#allocation16 + $0x200] sm:$0xff]
    %v3592 = vld [vmem:[#allocation16 + $0x208] sm:$0xff]
    %v3593 = vld [vmem:[#allocation16 + $0x210] sm:$0xff]
    %v3594 = vld [vmem:[#allocation16 + $0x218] sm:$0xff]
    %v3595 = vld [vmem:[#allocation16 + $0x220] sm:$0xff]
    %v3596 = vld [vmem:[#allocation16 + $0x228] sm:$0xff]
    %v3597 = vld [vmem:[#allocation16 + $0x230] sm:$0xff]
    %v3598 = vld [vmem:[#allocation16 + $0x238] sm:$0xff]
    %v3599 = vld [vmem:[#allocation16 + $0x240] sm:$0xff]
    %v3600 = vld [vmem:[#allocation16 + $0x248] sm:$0xff]
    %v3601 = vld [vmem:[#allocation16 + $0x250] sm:$0xff]
    %v3602 = vld [vmem:[#allocation16 + $0x258] sm:$0xff]
    %v3603 = vld [vmem:[#allocation16 + $0x260] sm:$0xff]
    %v3604 = vld [vmem:[#allocation16 + $0x268] sm:$0xff]
    %v3605 = vld [vmem:[#allocation16 + $0x270] sm:$0xff]
    %v3606 = vld [vmem:[#allocation16 + $0x278] sm:$0xff]
    %v3607 = vld [vmem:[#allocation16 + $0x280] sm:$0xff]
    %v3608 = vld [vmem:[#allocation16 + $0x288] sm:$0xff]
    %v3609 = vld [vmem:[#allocation16 + $0x290] sm:$0xff]
    %v3610 = vld [vmem:[#allocation16 + $0x298] sm:$0xff]
    %v3611 = vld [vmem:[#allocation16 + $0x2a0] sm:$0xff]
    %v3612 = vld [vmem:[#allocation16 + $0x2a8] sm:$0xff]
    %v3613 = vld [vmem:[#allocation16 + $0x2b0] sm:$0xff]
    %v3614 = vld [vmem:[#allocation16 + $0x2b8] sm:$0xff]
    %v3615 = vld [vmem:[#allocation16 + $0x2c0] sm:$0xff]
    %v3616 = vld [vmem:[#allocation16 + $0x2c8] sm:$0xff]
    %v3617 = vld [vmem:[#allocation16 + $0x2d0] sm:$0xff]
    %v3618 = vld [vmem:[#allocation16 + $0x2d8] sm:$0xff]
    %v3619 = vld [vmem:[#allocation16 + $0x2e0] sm:$0xff]
    %v3620 = vld [vmem:[#allocation16 + $0x2e8] sm:$0xff]
    %v3621 = vld [vmem:[#allocation16 + $0x2f0] sm:$0xff]
    %v3622 = vld [vmem:[#allocation16 + $0x2f8] sm:$0xff]
    %v3623 = vld [vmem:[#allocation16 + $0x300] sm:$0xff]
    %v3624 = vld [vmem:[#allocation16 + $0x308] sm:$0xff]
    %v3625 = vld [vmem:[#allocation16 + $0x310] sm:$0xff]
    %v3626 = vld [vmem:[#allocation16 + $0x318] sm:$0xff]
    %v3627 = vld [vmem:[#allocation16 + $0x320] sm:$0xff]
    %v3628 = vld [vmem:[#allocation16 + $0x328] sm:$0xff]
    %v3629 = vld [vmem:[#allocation16 + $0x330] sm:$0xff]
    %v3630 = vld [vmem:[#allocation16 + $0x338] sm:$0xff]
    %v3631 = vld [vmem:[#allocation16 + $0x340] sm:$0xff]
    %v3632 = vld [vmem:[#allocation16 + $0x348] sm:$0xff]
    %v3633 = vld [vmem:[#allocation16 + $0x350] sm:$0xff]
    %v3634 = vld [vmem:[#allocation16 + $0x358] sm:$0xff]
    %v3635 = vld [vmem:[#allocation16 + $0x360] sm:$0xff]
    %v3636 = vld [vmem:[#allocation16 + $0x368] sm:$0xff]
    %v3637 = vld [vmem:[#allocation16 + $0x370] sm:$0xff]
    %v3638 = vld [vmem:[#allocation16 + $0x378] sm:$0xff]
    %v3639 = vld [vmem:[#allocation16 + $0x380] sm:$0xff]
    %v3640 = vld [vmem:[#allocation16 + $0x388] sm:$0xff]
    %v3641 = vld [vmem:[#allocation16 + $0x390] sm:$0xff]
    %v3642 = vld [vmem:[#allocation16 + $0x398] sm:$0xff]
    %v3643 = vld [vmem:[#allocation16 + $0x3a0] sm:$0xff]
    %v3644 = vld [vmem:[#allocation16 + $0x3a8] sm:$0xff]
    %v3645 = vld [vmem:[#allocation16 + $0x3b0] sm:$0xff]
    %v3646 = vld [vmem:[#allocation16 + $0x3b8] sm:$0xff]
    %v3647 = vld [vmem:[#allocation16 + $0x3c0] sm:$0xff]
    %v3648 = vld [vmem:[#allocation16 + $0x3c8] sm:$0xff]
    %v3649 = vld [vmem:[#allocation16 + $0x3d0] sm:$0xff]
    %v3650 = vld [vmem:[#allocation16 + $0x3d8] sm:$0xff]
    %v3651 = vld [vmem:[#allocation16 + $0x3e0] sm:$0xff]
    %v3652 = vld [vmem:[#allocation16 + $0x3e8] sm:$0xff]
    %v3653 = vld [vmem:[#allocation16 + $0x3f0] sm:$0xff]
    %v3654 = vld [vmem:[#allocation16 + $0x3f8] sm:$0xff]
    %v3655 = vld [vmem:[%s15] sm:$0xff]
    %v3657 = vlaneseq
    %v3658 = vshrl.u32 %v3657, 7
    %v3659 = vsub.s32 0, %v3658
    %v3660 = vrot.slane %v3655, %v3659
    %v3661 = vlaneseq
    %v3662 = vshrl.u32 %v3661, 7
    %v3663 = vsub.s32 1, %v3662
    %v3664 = vrot.slane %v3655, %v3663
    %v3665 = vlaneseq
    %v3666 = vshrl.u32 %v3665, 7
    %v3667 = vsub.s32 2, %v3666
    %v3668 = vrot.slane %v3655, %v3667
    %v3669 = vlaneseq
    %v3670 = vshrl.u32 %v3669, 7
    %v3671 = vsub.s32 3, %v3670
    %v3672 = vrot.slane %v3655, %v3671
    %v3673 = vlaneseq
    %v3674 = vshrl.u32 %v3673, 7
    %v3675 = vsub.s32 4, %v3674
    %v3676 = vrot.slane %v3655, %v3675
    %v3677 = vlaneseq
    %v3678 = vshrl.u32 %v3677, 7
    %v3679 = vsub.s32 5, %v3678
    %v3680 = vrot.slane %v3655, %v3679
    %v3681 = vlaneseq
    %v3682 = vshrl.u32 %v3681, 7
    %v3683 = vsub.s32 6, %v3682
    %v3684 = vrot.slane %v3655, %v3683
    %v3685 = vlaneseq
    %v3686 = vshrl.u32 %v3685, 7
    %v3687 = vsub.s32 7, %v3686
    %v3688 = vrot.slane %v3655, %v3687
    %v3825 = vunpack.c.l.b16 %v3527
    %v3826 = vunpack.c.h.b16 %v3527
    %v3827 = vunpack.c.l.b16 %v3528
    %v3828 = vunpack.c.h.b16 %v3528
    %v3829 = vunpack.c.l.b16 %v3529
    %v3830 = vunpack.c.h.b16 %v3529
    %v3831 = vunpack.c.l.b16 %v3530
    %v3832 = vunpack.c.h.b16 %v3530
    %v3833 = vunpack.c.l.b16 %v3531
    %v3834 = vunpack.c.h.b16 %v3531
    %v3835 = vunpack.c.l.b16 %v3532
    %v3836 = vunpack.c.h.b16 %v3532
    %v3837 = vunpack.c.l.b16 %v3533
    %v3838 = vunpack.c.h.b16 %v3533
    %v3839 = vunpack.c.l.b16 %v3534
    %v3840 = vunpack.c.h.b16 %v3534
    %v3841 = vunpack.c.l.b16 %v3535
    %v3842 = vunpack.c.h.b16 %v3535
    %v3843 = vunpack.c.l.b16 %v3536
    %v3844 = vunpack.c.h.b16 %v3536
    %v3845 = vunpack.c.l.b16 %v3537
    %v3846 = vunpack.c.h.b16 %v3537
    %v3847 = vunpack.c.l.b16 %v3538
    %v3848 = vunpack.c.h.b16 %v3538
    %v3849 = vunpack.c.l.b16 %v3539
    %v3850 = vunpack.c.h.b16 %v3539
    %v3851 = vunpack.c.l.b16 %v3540
    %v3852 = vunpack.c.h.b16 %v3540
    %v3853 = vunpack.c.l.b16 %v3541
    %v3854 = vunpack.c.h.b16 %v3541
    %v3855 = vunpack.c.l.b16 %v3542
    %v3856 = vunpack.c.h.b16 %v3542
    %v3857 = vunpack.c.l.b16 %v3543
    %v3858 = vunpack.c.h.b16 %v3543
    %v3859 = vunpack.c.l.b16 %v3544
    %v3860 = vunpack.c.h.b16 %v3544
    %v3861 = vunpack.c.l.b16 %v3545
    %v3862 = vunpack.c.h.b16 %v3545
    %v3863 = vunpack.c.l.b16 %v3546
    %v3864 = vunpack.c.h.b16 %v3546
    %v3865 = vunpack.c.l.b16 %v3547
    %v3866 = vunpack.c.h.b16 %v3547
    %v3867 = vunpack.c.l.b16 %v3548
    %v3868 = vunpack.c.h.b16 %v3548
    %v3869 = vunpack.c.l.b16 %v3549
    %v3870 = vunpack.c.h.b16 %v3549
    %v3871 = vunpack.c.l.b16 %v3550
    %v3872 = vunpack.c.h.b16 %v3550
    %v3873 = vunpack.c.l.b16 %v3551
    %v3874 = vunpack.c.h.b16 %v3551
    %v3875 = vunpack.c.l.b16 %v3552
    %v3876 = vunpack.c.h.b16 %v3552
    %v3877 = vunpack.c.l.b16 %v3553
    %v3878 = vunpack.c.h.b16 %v3553
    %v3879 = vunpack.c.l.b16 %v3554
    %v3880 = vunpack.c.h.b16 %v3554
    %v3881 = vunpack.c.l.b16 %v3555
    %v3882 = vunpack.c.h.b16 %v3555
    %v3883 = vunpack.c.l.b16 %v3556
    %v3884 = vunpack.c.h.b16 %v3556
    %v3885 = vunpack.c.l.b16 %v3557
    %v3886 = vunpack.c.h.b16 %v3557
    %v3887 = vunpack.c.l.b16 %v3558
    %v3888 = vunpack.c.h.b16 %v3558
    %v3889 = vunpack.c.l.b16 %v3559
    %v3890 = vunpack.c.h.b16 %v3559
    %v3891 = vunpack.c.l.b16 %v3560
    %v3892 = vunpack.c.h.b16 %v3560
    %v3893 = vunpack.c.l.b16 %v3561
    %v3894 = vunpack.c.h.b16 %v3561
    %v3895 = vunpack.c.l.b16 %v3562
    %v3896 = vunpack.c.h.b16 %v3562
    %v3897 = vunpack.c.l.b16 %v3563
    %v3898 = vunpack.c.h.b16 %v3563
    %v3899 = vunpack.c.l.b16 %v3564
    %v3900 = vunpack.c.h.b16 %v3564
    %v3901 = vunpack.c.l.b16 %v3565
    %v3902 = vunpack.c.h.b16 %v3565
    %v3903 = vunpack.c.l.b16 %v3566
    %v3904 = vunpack.c.h.b16 %v3566
    %v3905 = vunpack.c.l.b16 %v3567
    %v3906 = vunpack.c.h.b16 %v3567
    %v3907 = vunpack.c.l.b16 %v3568
    %v3908 = vunpack.c.h.b16 %v3568
    %v3909 = vunpack.c.l.b16 %v3569
    %v3910 = vunpack.c.h.b16 %v3569
    %v3911 = vunpack.c.l.b16 %v3570
    %v3912 = vunpack.c.h.b16 %v3570
    %v3913 = vunpack.c.l.b16 %v3571
    %v3914 = vunpack.c.h.b16 %v3571
    %v3915 = vunpack.c.l.b16 %v3572
    %v3916 = vunpack.c.h.b16 %v3572
    %v3917 = vunpack.c.l.b16 %v3573
    %v3918 = vunpack.c.h.b16 %v3573
    %v3919 = vunpack.c.l.b16 %v3574
    %v3920 = vunpack.c.h.b16 %v3574
    %v3921 = vunpack.c.l.b16 %v3575
    %v3922 = vunpack.c.h.b16 %v3575
    %v3923 = vunpack.c.l.b16 %v3576
    %v3924 = vunpack.c.h.b16 %v3576
    %v3925 = vunpack.c.l.b16 %v3577
    %v3926 = vunpack.c.h.b16 %v3577
    %v3927 = vunpack.c.l.b16 %v3578
    %v3928 = vunpack.c.h.b16 %v3578
    %v3929 = vunpack.c.l.b16 %v3579
    %v3930 = vunpack.c.h.b16 %v3579
    %v3931 = vunpack.c.l.b16 %v3580
    %v3932 = vunpack.c.h.b16 %v3580
    %v3933 = vunpack.c.l.b16 %v3581
    %v3934 = vunpack.c.h.b16 %v3581
    %v3935 = vunpack.c.l.b16 %v3582
    %v3936 = vunpack.c.h.b16 %v3582
    %v3937 = vunpack.c.l.b16 %v3583
    %v3938 = vunpack.c.h.b16 %v3583
    %v3939 = vunpack.c.l.b16 %v3584
    %v3940 = vunpack.c.h.b16 %v3584
    %v3941 = vunpack.c.l.b16 %v3585
    %v3942 = vunpack.c.h.b16 %v3585
    %v3943 = vunpack.c.l.b16 %v3586
    %v3944 = vunpack.c.h.b16 %v3586
    %v3945 = vunpack.c.l.b16 %v3587
    %v3946 = vunpack.c.h.b16 %v3587
    %v3947 = vunpack.c.l.b16 %v3588
    %v3948 = vunpack.c.h.b16 %v3588
    %v3949 = vunpack.c.l.b16 %v3589
    %v3950 = vunpack.c.h.b16 %v3589
    %v3951 = vunpack.c.l.b16 %v3590
    %v3952 = vunpack.c.h.b16 %v3590
    %v3953 = vunpack.c.l.b16 %v3591
    %v3954 = vunpack.c.h.b16 %v3591
    %v3955 = vunpack.c.l.b16 %v3592
    %v3956 = vunpack.c.h.b16 %v3592
    %v3957 = vunpack.c.l.b16 %v3593
    %v3958 = vunpack.c.h.b16 %v3593
    %v3959 = vunpack.c.l.b16 %v3594
    %v3960 = vunpack.c.h.b16 %v3594
    %v3961 = vunpack.c.l.b16 %v3595
    %v3962 = vunpack.c.h.b16 %v3595
    %v3963 = vunpack.c.l.b16 %v3596
    %v3964 = vunpack.c.h.b16 %v3596
    %v3965 = vunpack.c.l.b16 %v3597
    %v3966 = vunpack.c.h.b16 %v3597
    %v3967 = vunpack.c.l.b16 %v3598
    %v3968 = vunpack.c.h.b16 %v3598
    %v3969 = vunpack.c.l.b16 %v3599
    %v3970 = vunpack.c.h.b16 %v3599
    %v3971 = vunpack.c.l.b16 %v3600
    %v3972 = vunpack.c.h.b16 %v3600
    %v3973 = vunpack.c.l.b16 %v3601
    %v3974 = vunpack.c.h.b16 %v3601
    %v3975 = vunpack.c.l.b16 %v3602
    %v3976 = vunpack.c.h.b16 %v3602
    %v3977 = vunpack.c.l.b16 %v3603
    %v3978 = vunpack.c.h.b16 %v3603
    %v3979 = vunpack.c.l.b16 %v3604
    %v3980 = vunpack.c.h.b16 %v3604
    %v3981 = vunpack.c.l.b16 %v3605
    %v3982 = vunpack.c.h.b16 %v3605
    %v3983 = vunpack.c.l.b16 %v3606
    %v3984 = vunpack.c.h.b16 %v3606
    %v3985 = vunpack.c.l.b16 %v3607
    %v3986 = vunpack.c.h.b16 %v3607
    %v3987 = vunpack.c.l.b16 %v3608
    %v3988 = vunpack.c.h.b16 %v3608
    %v3989 = vunpack.c.l.b16 %v3609
    %v3990 = vunpack.c.h.b16 %v3609
    %v3991 = vunpack.c.l.b16 %v3610
    %v3992 = vunpack.c.h.b16 %v3610
    %v3993 = vunpack.c.l.b16 %v3611
    %v3994 = vunpack.c.h.b16 %v3611
    %v3995 = vunpack.c.l.b16 %v3612
    %v3996 = vunpack.c.h.b16 %v3612
    %v3997 = vunpack.c.l.b16 %v3613
    %v3998 = vunpack.c.h.b16 %v3613
    %v3999 = vunpack.c.l.b16 %v3614
    %v4000 = vunpack.c.h.b16 %v3614
    %v4001 = vunpack.c.l.b16 %v3615
    %v4002 = vunpack.c.h.b16 %v3615
    %v4003 = vunpack.c.l.b16 %v3616
    %v4004 = vunpack.c.h.b16 %v3616
    %v4005 = vunpack.c.l.b16 %v3617
    %v4006 = vunpack.c.h.b16 %v3617
    %v4007 = vunpack.c.l.b16 %v3618
    %v4008 = vunpack.c.h.b16 %v3618
    %v4009 = vunpack.c.l.b16 %v3619
    %v4010 = vunpack.c.h.b16 %v3619
    %v4011 = vunpack.c.l.b16 %v3620
    %v4012 = vunpack.c.h.b16 %v3620
    %v4013 = vunpack.c.l.b16 %v3621
    %v4014 = vunpack.c.h.b16 %v3621
    %v4015 = vunpack.c.l.b16 %v3622
    %v4016 = vunpack.c.h.b16 %v3622
    %v4017 = vunpack.c.l.b16 %v3623
    %v4018 = vunpack.c.h.b16 %v3623
    %v4019 = vunpack.c.l.b16 %v3624
    %v4020 = vunpack.c.h.b16 %v3624
    %v4021 = vunpack.c.l.b16 %v3625
    %v4022 = vunpack.c.h.b16 %v3625
    %v4023 = vunpack.c.l.b16 %v3626
    %v4024 = vunpack.c.h.b16 %v3626
    %v4025 = vunpack.c.l.b16 %v3627
    %v4026 = vunpack.c.h.b16 %v3627
    %v4027 = vunpack.c.l.b16 %v3628
    %v4028 = vunpack.c.h.b16 %v3628
    %v4029 = vunpack.c.l.b16 %v3629
    %v4030 = vunpack.c.h.b16 %v3629
    %v4031 = vunpack.c.l.b16 %v3630
    %v4032 = vunpack.c.h.b16 %v3630
    %v4033 = vunpack.c.l.b16 %v3631
    %v4034 = vunpack.c.h.b16 %v3631
    %v4035 = vunpack.c.l.b16 %v3632
    %v4036 = vunpack.c.h.b16 %v3632
    %v4037 = vunpack.c.l.b16 %v3633
    %v4038 = vunpack.c.h.b16 %v3633
    %v4039 = vunpack.c.l.b16 %v3634
    %v4040 = vunpack.c.h.b16 %v3634
    %v4041 = vunpack.c.l.b16 %v3635
    %v4042 = vunpack.c.h.b16 %v3635
    %v4043 = vunpack.c.l.b16 %v3636
    %v4044 = vunpack.c.h.b16 %v3636
    %v4045 = vunpack.c.l.b16 %v3637
    %v4046 = vunpack.c.h.b16 %v3637
    %v4047 = vunpack.c.l.b16 %v3638
    %v4048 = vunpack.c.h.b16 %v3638
    %v4049 = vunpack.c.l.b16 %v3639
    %v4050 = vunpack.c.h.b16 %v3639
    %v4051 = vunpack.c.l.b16 %v3640
    %v4052 = vunpack.c.h.b16 %v3640
    %v4053 = vunpack.c.l.b16 %v3641
    %v4054 = vunpack.c.h.b16 %v3641
    %v4055 = vunpack.c.l.b16 %v3642
    %v4056 = vunpack.c.h.b16 %v3642
    %v4057 = vunpack.c.l.b16 %v3643
    %v4058 = vunpack.c.h.b16 %v3643
    %v4059 = vunpack.c.l.b16 %v3644
    %v4060 = vunpack.c.h.b16 %v3644
    %v4061 = vunpack.c.l.b16 %v3645
    %v4062 = vunpack.c.h.b16 %v3645
    %v4063 = vunpack.c.l.b16 %v3646
    %v4064 = vunpack.c.h.b16 %v3646
    %v4065 = vunpack.c.l.b16 %v3647
    %v4066 = vunpack.c.h.b16 %v3647
    %v4067 = vunpack.c.l.b16 %v3648
    %v4068 = vunpack.c.h.b16 %v3648
    %v4069 = vunpack.c.l.b16 %v3649
    %v4070 = vunpack.c.h.b16 %v3649
    %v4071 = vunpack.c.l.b16 %v3650
    %v4072 = vunpack.c.h.b16 %v3650
    %v4073 = vunpack.c.l.b16 %v3651
    %v4074 = vunpack.c.h.b16 %v3651
    %v4075 = vunpack.c.l.b16 %v3652
    %v4076 = vunpack.c.h.b16 %v3652
    %v4077 = vunpack.c.l.b16 %v3653
    %v4078 = vunpack.c.h.b16 %v3653
    %v4079 = vunpack.c.l.b16 %v3654
    %v4080 = vunpack.c.h.b16 %v3654
    %v4081 = vpack.c.b16 %v3833, %v3825
    %v4082 = vpack.c.b16 %v3834, %v3826
    %v4083 = vpack.c.b16 %v3835, %v3827
    %v4084 = vpack.c.b16 %v3836, %v3828
    %v4085 = vpack.c.b16 %v3837, %v3829
    %v4086 = vpack.c.b16 %v3838, %v3830
    %v4087 = vpack.c.b16 %v3839, %v3831
    %v4088 = vpack.c.b16 %v3840, %v3832
    %v4089 = vpack.c.b16 %v3849, %v3841
    %v4090 = vpack.c.b16 %v3850, %v3842
    %v4091 = vpack.c.b16 %v3851, %v3843
    %v4092 = vpack.c.b16 %v3852, %v3844
    %v4093 = vpack.c.b16 %v3853, %v3845
    %v4094 = vpack.c.b16 %v3854, %v3846
    %v4095 = vpack.c.b16 %v3855, %v3847
    %v4096 = vpack.c.b16 %v3856, %v3848
    %v4097 = vpack.c.b16 %v3865, %v3857
    %v4098 = vpack.c.b16 %v3866, %v3858
    %v4099 = vpack.c.b16 %v3867, %v3859
    %v4100 = vpack.c.b16 %v3868, %v3860
    %v4101 = vpack.c.b16 %v3869, %v3861
    %v4102 = vpack.c.b16 %v3870, %v3862
    %v4103 = vpack.c.b16 %v3871, %v3863
    %v4104 = vpack.c.b16 %v3872, %v3864
    %v4105 = vpack.c.b16 %v3881, %v3873
    %v4106 = vpack.c.b16 %v3882, %v3874
    %v4107 = vpack.c.b16 %v3883, %v3875
    %v4108 = vpack.c.b16 %v3884, %v3876
    %v4109 = vpack.c.b16 %v3885, %v3877
    %v4110 = vpack.c.b16 %v3886, %v3878
    %v4111 = vpack.c.b16 %v3887, %v3879
    %v4112 = vpack.c.b16 %v3888, %v3880
    %v4113 = vpack.c.b16 %v3897, %v3889
    %v4114 = vpack.c.b16 %v3898, %v3890
    %v4115 = vpack.c.b16 %v3899, %v3891
    %v4116 = vpack.c.b16 %v3900, %v3892
    %v4117 = vpack.c.b16 %v3901, %v3893
    %v4118 = vpack.c.b16 %v3902, %v3894
    %v4119 = vpack.c.b16 %v3903, %v3895
    %v4120 = vpack.c.b16 %v3904, %v3896
    %v4121 = vpack.c.b16 %v3913, %v3905
    %v4122 = vpack.c.b16 %v3914, %v3906
    %v4123 = vpack.c.b16 %v3915, %v3907
    %v4124 = vpack.c.b16 %v3916, %v3908
    %v4125 = vpack.c.b16 %v3917, %v3909
    %v4126 = vpack.c.b16 %v3918, %v3910
    %v4127 = vpack.c.b16 %v3919, %v3911
    %v4128 = vpack.c.b16 %v3920, %v3912
    %v4129 = vpack.c.b16 %v3929, %v3921
    %v4130 = vpack.c.b16 %v3930, %v3922
    %v4131 = vpack.c.b16 %v3931, %v3923
    %v4132 = vpack.c.b16 %v3932, %v3924
    %v4133 = vpack.c.b16 %v3933, %v3925
    %v4134 = vpack.c.b16 %v3934, %v3926
    %v4135 = vpack.c.b16 %v3935, %v3927
    %v4136 = vpack.c.b16 %v3936, %v3928
    %v4137 = vpack.c.b16 %v3945, %v3937
    %v4138 = vpack.c.b16 %v3946, %v3938
    %v4139 = vpack.c.b16 %v3947, %v3939
    %v4140 = vpack.c.b16 %v3948, %v3940
    %v4141 = vpack.c.b16 %v3949, %v3941
    %v4142 = vpack.c.b16 %v3950, %v3942
    %v4143 = vpack.c.b16 %v3951, %v3943
    %v4144 = vpack.c.b16 %v3952, %v3944
    %v4145 = vpack.c.b16 %v3961, %v3953
    %v4146 = vpack.c.b16 %v3962, %v3954
    %v4147 = vpack.c.b16 %v3963, %v3955
    %v4148 = vpack.c.b16 %v3964, %v3956
    %v4149 = vpack.c.b16 %v3965, %v3957
    %v4150 = vpack.c.b16 %v3966, %v3958
    %v4151 = vpack.c.b16 %v3967, %v3959
    %v4152 = vpack.c.b16 %v3968, %v3960
    %v4153 = vpack.c.b16 %v3977, %v3969
    %v4154 = vpack.c.b16 %v3978, %v3970
    %v4155 = vpack.c.b16 %v3979, %v3971
    %v4156 = vpack.c.b16 %v3980, %v3972
    %v4157 = vpack.c.b16 %v3981, %v3973
    %v4158 = vpack.c.b16 %v3982, %v3974
    %v4159 = vpack.c.b16 %v3983, %v3975
    %v4160 = vpack.c.b16 %v3984, %v3976
    %v4161 = vpack.c.b16 %v3993, %v3985
    %v4162 = vpack.c.b16 %v3994, %v3986
    %v4163 = vpack.c.b16 %v3995, %v3987
    %v4164 = vpack.c.b16 %v3996, %v3988
    %v4165 = vpack.c.b16 %v3997, %v3989
    %v4166 = vpack.c.b16 %v3998, %v3990
    %v4167 = vpack.c.b16 %v3999, %v3991
    %v4168 = vpack.c.b16 %v4000, %v3992
    %v4169 = vpack.c.b16 %v4009, %v4001
    %v4170 = vpack.c.b16 %v4010, %v4002
    %v4171 = vpack.c.b16 %v4011, %v4003
    %v4172 = vpack.c.b16 %v4012, %v4004
    %v4173 = vpack.c.b16 %v4013, %v4005
    %v4174 = vpack.c.b16 %v4014, %v4006
    %v4175 = vpack.c.b16 %v4015, %v4007
    %v4176 = vpack.c.b16 %v4016, %v4008
    %v4177 = vpack.c.b16 %v4025, %v4017
    %v4178 = vpack.c.b16 %v4026, %v4018
    %v4179 = vpack.c.b16 %v4027, %v4019
    %v4180 = vpack.c.b16 %v4028, %v4020
    %v4181 = vpack.c.b16 %v4029, %v4021
    %v4182 = vpack.c.b16 %v4030, %v4022
    %v4183 = vpack.c.b16 %v4031, %v4023
    %v4184 = vpack.c.b16 %v4032, %v4024
    %v4185 = vpack.c.b16 %v4041, %v4033
    %v4186 = vpack.c.b16 %v4042, %v4034
    %v4187 = vpack.c.b16 %v4043, %v4035
    %v4188 = vpack.c.b16 %v4044, %v4036
    %v4189 = vpack.c.b16 %v4045, %v4037
    %v4190 = vpack.c.b16 %v4046, %v4038
    %v4191 = vpack.c.b16 %v4047, %v4039
    %v4192 = vpack.c.b16 %v4048, %v4040
    %v4193 = vpack.c.b16 %v4057, %v4049
    %v4194 = vpack.c.b16 %v4058, %v4050
    %v4195 = vpack.c.b16 %v4059, %v4051
    %v4196 = vpack.c.b16 %v4060, %v4052
    %v4197 = vpack.c.b16 %v4061, %v4053
    %v4198 = vpack.c.b16 %v4062, %v4054
    %v4199 = vpack.c.b16 %v4063, %v4055
    %v4200 = vpack.c.b16 %v4064, %v4056
    %v4201 = vpack.c.b16 %v4073, %v4065
    %v4202 = vpack.c.b16 %v4074, %v4066
    %v4203 = vpack.c.b16 %v4075, %v4067
    %v4204 = vpack.c.b16 %v4076, %v4068
    %v4205 = vpack.c.b16 %v4077, %v4069
    %v4206 = vpack.c.b16 %v4078, %v4070
    %v4207 = vpack.c.b16 %v4079, %v4071
    %v4208 = vpack.c.b16 %v4080, %v4072
    %4337 = vmatprep.subr.bf16.mxu0 %v4082
    %4338 = vmatpush1.bf16.msra.mxu0 %v4081
    %4339 = vmatprep.subr.bf16.mxu0 %v4090
    %4340 = vmatpush1.bf16.msra.mxu0 %v4089
    %4341 = vmatprep.subr.bf16.mxu0 %v4098
    %4342 = vmatpush1.bf16.msra.mxu0 %v4097
    %4343 = vmatprep.subr.bf16.mxu0 %v4106
    %4344 = vmatpush1.bf16.msra.mxu0 %v4105
    %4345 = vmatprep.subr.bf16.mxu0 %v4114
    %4346 = vmatpush1.bf16.msra.mxu0 %v4113
    %4347 = vmatprep.subr.bf16.mxu0 %v4122
    %4348 = vmatpush1.bf16.msra.mxu0 %v4121
    %4349 = vmatprep.subr.bf16.mxu0 %v4130
    %4350 = vmatpush1.bf16.msra.mxu0 %v4129
    %4351 = vmatprep.subr.bf16.mxu0 %v4138
    %4352 = vmatpush1.bf16.msra.mxu0 %v4137
    %4353 = vmatprep.subr.bf16.mxu0 %v4146
    %4354 = vmatpush1.bf16.msra.mxu0 %v4145
    %4355 = vmatprep.subr.bf16.mxu0 %v4154
    %4356 = vmatpush1.bf16.msra.mxu0 %v4153
    %4357 = vmatprep.subr.bf16.mxu0 %v4162
    %4358 = vmatpush1.bf16.msra.mxu0 %v4161
    %4359 = vmatprep.subr.bf16.mxu0 %v4170
    %4360 = vmatpush1.bf16.msra.mxu0 %v4169
    %4361 = vmatprep.subr.bf16.mxu0 %v4178
    %4362 = vmatpush1.bf16.msra.mxu0 %v4177
    %4363 = vmatprep.subr.bf16.mxu0 %v4186
    %4364 = vmatpush1.bf16.msra.mxu0 %v4185
    %4365 = vmatprep.subr.bf16.mxu0 %v4194
    %4366 = vmatpush1.bf16.msra.mxu0 %v4193
    %4367 = vmatprep.subr.bf16.mxu0 %v4202
    %4368 = vmatpush1.bf16.msra.mxu0 %v4201
    %4369 = vmatprep.mubr.bf16.mxu0 %v3526
    %4370 = vmatmul.mubr.bf16.gmra.mrb[0].mxu0 %v3525
    %v4371 = vpop.f32.mrb[0].mxu0
    %v4372 = vadd.f32 %v3660, %v4371
    %v4373 = vpop.f32.mrb[0].mxu0
    %v4374 = vadd.f32 %v3664, %v4373
    %v4375 = vpop.f32.mrb[0].mxu0
    %v4376 = vadd.f32 %v3660, %v4375
    %v4377 = vpop.f32.mrb[0].mxu0
    %v4378 = vadd.f32 %v3664, %v4377
    %4379 = vdwg.mxu0
    %4380 = vmatprep.subr.bf16.mxu0 %v4084
    %4381 = vmatpush1.bf16.msra.mxu0 %v4083
    %4382 = vmatprep.subr.bf16.mxu0 %v4092
    %4383 = vmatpush1.bf16.msra.mxu0 %v4091
    %4384 = vmatprep.subr.bf16.mxu0 %v4100
    %4385 = vmatpush1.bf16.msra.mxu0 %v4099
    %4386 = vmatprep.subr.bf16.mxu0 %v4108
    %4387 = vmatpush1.bf16.msra.mxu0 %v4107
    %4388 = vmatprep.subr.bf16.mxu0 %v4116
    %4389 = vmatpush1.bf16.msra.mxu0 %v4115
    %4390 = vmatprep.subr.bf16.mxu0 %v4124
    %4391 = vmatpush1.bf16.msra.mxu0 %v4123
    %4392 = vmatprep.subr.bf16.mxu0 %v4132
    %4393 = vmatpush1.bf16.msra.mxu0 %v4131
    %4394 = vmatprep.subr.bf16.mxu0 %v4140
    %4395 = vmatpush1.bf16.msra.mxu0 %v4139
    %4396 = vmatprep.subr.bf16.mxu0 %v4148
    %4397 = vmatpush1.bf16.msra.mxu0 %v4147
    %4398 = vmatprep.subr.bf16.mxu0 %v4156
    %4399 = vmatpush1.bf16.msra.mxu0 %v4155
    %4400 = vmatprep.subr.bf16.mxu0 %v4164
    %4401 = vmatpush1.bf16.msra.mxu0 %v4163
    %4402 = vmatprep.subr.bf16.mxu0 %v4172
    %4403 = vmatpush1.bf16.msra.mxu0 %v4171
    %4404 = vmatprep.subr.bf16.mxu0 %v4180
    %4405 = vmatpush1.bf16.msra.mxu0 %v4179
    %4406 = vmatprep.subr.bf16.mxu0 %v4188
    %4407 = vmatpush1.bf16.msra.mxu0 %v4187
    %4408 = vmatprep.subr.bf16.mxu0 %v4196
    %4409 = vmatpush1.bf16.msra.mxu0 %v4195
    %4410 = vmatprep.subr.bf16.mxu0 %v4204
    %4411 = vmatpush1.bf16.msra.mxu0 %v4203
    %4412 = vmatprep.mubr.bf16.mxu0 %v3526
    %4413 = vmatmul.mubr.bf16.gmra.mrb[0].mxu0 %v3525
    %v4414 = vpop.f32.mrb[0].mxu0
    %v4415 = vadd.f32 %v3668, %v4414
    %v4416 = vpop.f32.mrb[0].mxu0
    %v4417 = vadd.f32 %v3672, %v4416
    %v4418 = vpop.f32.mrb[0].mxu0
    %v4419 = vadd.f32 %v3668, %v4418
    %v4420 = vpop.f32.mrb[0].mxu0
    %v4421 = vadd.f32 %v3672, %v4420
    %4422 = vdwg.mxu0
    %4423 = vmatprep.subr.bf16.mxu0 %v4086
    %4424 = vmatpush1.bf16.msra.mxu0 %v4085
    %4425 = vmatprep.subr.bf16.mxu0 %v4094
    %4426 = vmatpush1.bf16.msra.mxu0 %v4093
    %4427 = vmatprep.subr.bf16.mxu0 %v4102
    %4428 = vmatpush1.bf16.msra.mxu0 %v4101
    %4429 = vmatprep.subr.bf16.mxu0 %v4110
    %4430 = vmatpush1.bf16.msra.mxu0 %v4109
    %4431 = vmatprep.subr.bf16.mxu0 %v4118
    %4432 = vmatpush1.bf16.msra.mxu0 %v4117
    %4433 = vmatprep.subr.bf16.mxu0 %v4126
    %4434 = vmatpush1.bf16.msra.mxu0 %v4125
    %4435 = vmatprep.subr.bf16.mxu0 %v4134
    %4436 = vmatpush1.bf16.msra.mxu0 %v4133
    %4437 = vmatprep.subr.bf16.mxu0 %v4142
    %4438 = vmatpush1.bf16.msra.mxu0 %v4141
    %4439 = vmatprep.subr.bf16.mxu0 %v4150
    %4440 = vmatpush1.bf16.msra.mxu0 %v4149
    %4441 = vmatprep.subr.bf16.mxu0 %v4158
    %4442 = vmatpush1.bf16.msra.mxu0 %v4157
    %4443 = vmatprep.subr.bf16.mxu0 %v4166
    %4444 = vmatpush1.bf16.msra.mxu0 %v4165
    %4445 = vmatprep.subr.bf16.mxu0 %v4174
    %4446 = vmatpush1.bf16.msra.mxu0 %v4173
    %4447 = vmatprep.subr.bf16.mxu0 %v4182
    %4448 = vmatpush1.bf16.msra.mxu0 %v4181
    %4449 = vmatprep.subr.bf16.mxu0 %v4190
    %4450 = vmatpush1.bf16.msra.mxu0 %v4189
    %4451 = vmatprep.subr.bf16.mxu0 %v4198
    %4452 = vmatpush1.bf16.msra.mxu0 %v4197
    %4453 = vmatprep.subr.bf16.mxu0 %v4206
    %4454 = vmatpush1.bf16.msra.mxu0 %v4205
    %4455 = vmatprep.mubr.bf16.mxu0 %v3526
    %4456 = vmatmul.mubr.bf16.gmra.mrb[0].mxu0 %v3525
    %v4457 = vpop.f32.mrb[0].mxu0
    %v4458 = vadd.f32 %v3676, %v4457
    %v4459 = vpop.f32.mrb[0].mxu0
    %v4460 = vadd.f32 %v3680, %v4459
    %v4461 = vpop.f32.mrb[0].mxu0
    %v4462 = vadd.f32 %v3676, %v4461
    %v4463 = vpop.f32.mrb[0].mxu0
    %v4464 = vadd.f32 %v3680, %v4463
    %4465 = vdwg.mxu0
    %4466 = vmatprep.subr.bf16.mxu0 %v4088
    %4467 = vmatpush1.bf16.msra.mxu0 %v4087
    %4468 = vmatprep.subr.bf16.mxu0 %v4096
    %4469 = vmatpush1.bf16.msra.mxu0 %v4095
    %4470 = vmatprep.subr.bf16.mxu0 %v4104
    %4471 = vmatpush1.bf16.msra.mxu0 %v4103
    %4472 = vmatprep.subr.bf16.mxu0 %v4112
    %4473 = vmatpush1.bf16.msra.mxu0 %v4111
    %4474 = vmatprep.subr.bf16.mxu0 %v4120
    %4475 = vmatpush1.bf16.msra.mxu0 %v4119
    %4476 = vmatprep.subr.bf16.mxu0 %v4128
    %4477 = vmatpush1.bf16.msra.mxu0 %v4127
    %4478 = vmatprep.subr.bf16.mxu0 %v4136
    %4479 = vmatpush1.bf16.msra.mxu0 %v4135
    %4480 = vmatprep.subr.bf16.mxu0 %v4144
    %4481 = vmatpush1.bf16.msra.mxu0 %v4143
    %4482 = vmatprep.subr.bf16.mxu0 %v4152
    %4483 = vmatpush1.bf16.msra.mxu0 %v4151
    %4484 = vmatprep.subr.bf16.mxu0 %v4160
    %4485 = vmatpush1.bf16.msra.mxu0 %v4159
    %4486 = vmatprep.subr.bf16.mxu0 %v4168
    %4487 = vmatpush1.bf16.msra.mxu0 %v4167
    %4488 = vmatprep.subr.bf16.mxu0 %v4176
    %4489 = vmatpush1.bf16.msra.mxu0 %v4175
    %4490 = vmatprep.subr.bf16.mxu0 %v4184
    %4491 = vmatpush1.bf16.msra.mxu0 %v4183
    %4492 = vmatprep.subr.bf16.mxu0 %v4192
    %4493 = vmatpush1.bf16.msra.mxu0 %v4191
    %4494 = vmatprep.subr.bf16.mxu0 %v4200
    %4495 = vmatpush1.bf16.msra.mxu0 %v4199
    %4496 = vmatprep.subr.bf16.mxu0 %v4208
    %4497 = vmatpush1.bf16.msra.mxu0 %v4207
    %4498 = vmatprep.mubr.bf16.mxu0 %v3526
    %4499 = vmatmul.mubr.bf16.gmra.mrb[0].mxu0 %v3525
    %v4500 = vpop.f32.mrb[0].mxu0
    %v4501 = vadd.f32 %v3684, %v4500
    %v4502 = vpop.f32.mrb[0].mxu0
    %v4503 = vadd.f32 %v3688, %v4502
    %v4504 = vpop.f32.mrb[0].mxu0
    %v4505 = vadd.f32 %v3684, %v4504
    %v4506 = vpop.f32.mrb[0].mxu0
    %v4507 = vadd.f32 %v3688, %v4506
    %4508 = vdwg.mxu0
    %v4509 = vmax.f32 %v4372, 0.0
    %v4510 = vmax.f32 %v4374, 0.0
    %v4511 = vmax.f32 %v4415, 0.0
    %v4512 = vmax.f32 %v4417, 0.0
    %v4513 = vmax.f32 %v4458, 0.0
    %v4514 = vmax.f32 %v4460, 0.0
    %v4515 = vmax.f32 %v4501, 0.0
    %v4516 = vmax.f32 %v4503, 0.0
    %v4517 = vmax.f32 %v4376, 0.0
    %v4518 = vmax.f32 %v4378, 0.0
    %v4519 = vmax.f32 %v4419, 0.0
    %v4520 = vmax.f32 %v4421, 0.0
    %v4521 = vmax.f32 %v4462, 0.0
    %v4522 = vmax.f32 %v4464, 0.0
    %v4523 = vmax.f32 %v4505, 0.0
    %v4524 = vmax.f32 %v4507, 0.0
    %v4525 = vpack.c.bf16 %v4517, %v4509
    %v4526 = vpack.c.bf16 %v4518, %v4510
    %v4527 = vpack.c.bf16 %v4519, %v4511
    %v4528 = vpack.c.bf16 %v4520, %v4512
    %v4529 = vpack.c.bf16 %v4521, %v4513
    %v4530 = vpack.c.bf16 %v4522, %v4514
    %v4531 = vpack.c.bf16 %v4523, %v4515
    %v4532 = vpack.c.bf16 %v4524, %v4516
    %v4533 = vld [vmem:[#allocation17] sm:$0xff]
    %v4534 = vld [vmem:[#allocation17 + $0x8] sm:$0xff]
    %v4535 = vld [vmem:[#allocation17 + $0x10] sm:$0xff]
    %v4536 = vld [vmem:[#allocation17 + $0x18] sm:$0xff]
    %v4537 = vld [vmem:[#allocation17 + $0x20] sm:$0xff]
    %v4538 = vld [vmem:[#allocation17 + $0x28] sm:$0xff]
    %v4539 = vld [vmem:[#allocation17 + $0x30] sm:$0xff]
    %v4540 = vld [vmem:[#allocation17 + $0x38] sm:$0xff]
    %v4541 = vld [vmem:[#allocation17 + $0x40] sm:$0xff]
    %v4542 = vld [vmem:[#allocation17 + $0x48] sm:$0xff]
    %v4543 = vld [vmem:[#allocation17 + $0x50] sm:$0xff]
    %v4544 = vld [vmem:[#allocation17 + $0x58] sm:$0xff]
    %v4545 = vld [vmem:[#allocation17 + $0x60] sm:$0xff]
    %v4546 = vld [vmem:[#allocation17 + $0x68] sm:$0xff]
    %v4547 = vld [vmem:[#allocation17 + $0x70] sm:$0xff]
    %v4548 = vld [vmem:[#allocation17 + $0x78] sm:$0xff]
    %v4549 = vld [vmem:[#allocation17 + $0x80] sm:$0xff]
    %v4550 = vld [vmem:[#allocation17 + $0x88] sm:$0xff]
    %v4551 = vld [vmem:[#allocation17 + $0x90] sm:$0xff]
    %v4552 = vld [vmem:[#allocation17 + $0x98] sm:$0xff]
    %v4553 = vld [vmem:[#allocation17 + $0xa0] sm:$0xff]
    %v4554 = vld [vmem:[#allocation17 + $0xa8] sm:$0xff]
    %v4555 = vld [vmem:[#allocation17 + $0xb0] sm:$0xff]
    %v4556 = vld [vmem:[#allocation17 + $0xb8] sm:$0xff]
    %v4557 = vld [vmem:[#allocation17 + $0xc0] sm:$0xff]
    %v4558 = vld [vmem:[#allocation17 + $0xc8] sm:$0xff]
    %v4559 = vld [vmem:[#allocation17 + $0xd0] sm:$0xff]
    %v4560 = vld [vmem:[#allocation17 + $0xd8] sm:$0xff]
    %v4561 = vld [vmem:[#allocation17 + $0xe0] sm:$0xff]
    %v4562 = vld [vmem:[#allocation17 + $0xe8] sm:$0xff]
    %v4563 = vld [vmem:[#allocation17 + $0xf0] sm:$0xff]
    %v4564 = vld [vmem:[#allocation17 + $0xf8] sm:$0xff]
    %v4565 = vld [vmem:[#allocation17 + $0x100] sm:$0xff]
    %v4566 = vld [vmem:[#allocation17 + $0x108] sm:$0xff]
    %v4567 = vld [vmem:[#allocation17 + $0x110] sm:$0xff]
    %v4568 = vld [vmem:[#allocation17 + $0x118] sm:$0xff]
    %v4569 = vld [vmem:[#allocation17 + $0x120] sm:$0xff]
    %v4570 = vld [vmem:[#allocation17 + $0x128] sm:$0xff]
    %v4571 = vld [vmem:[#allocation17 + $0x130] sm:$0xff]
    %v4572 = vld [vmem:[#allocation17 + $0x138] sm:$0xff]
    %v4573 = vld [vmem:[#allocation17 + $0x140] sm:$0xff]
    %v4574 = vld [vmem:[#allocation17 + $0x148] sm:$0xff]
    %v4575 = vld [vmem:[#allocation17 + $0x150] sm:$0xff]
    %v4576 = vld [vmem:[#allocation17 + $0x158] sm:$0xff]
    %v4577 = vld [vmem:[#allocation17 + $0x160] sm:$0xff]
    %v4578 = vld [vmem:[#allocation17 + $0x168] sm:$0xff]
    %v4579 = vld [vmem:[#allocation17 + $0x170] sm:$0xff]
    %v4580 = vld [vmem:[#allocation17 + $0x178] sm:$0xff]
    %v4581 = vld [vmem:[#allocation17 + $0x180] sm:$0xff]
    %v4582 = vld [vmem:[#allocation17 + $0x188] sm:$0xff]
    %v4583 = vld [vmem:[#allocation17 + $0x190] sm:$0xff]
    %v4584 = vld [vmem:[#allocation17 + $0x198] sm:$0xff]
    %v4585 = vld [vmem:[#allocation17 + $0x1a0] sm:$0xff]
    %v4586 = vld [vmem:[#allocation17 + $0x1a8] sm:$0xff]
    %v4587 = vld [vmem:[#allocation17 + $0x1b0] sm:$0xff]
    %v4588 = vld [vmem:[#allocation17 + $0x1b8] sm:$0xff]
    %v4589 = vld [vmem:[#allocation17 + $0x1c0] sm:$0xff]
    %v4590 = vld [vmem:[#allocation17 + $0x1c8] sm:$0xff]
    %v4591 = vld [vmem:[#allocation17 + $0x1d0] sm:$0xff]
    %v4592 = vld [vmem:[#allocation17 + $0x1d8] sm:$0xff]
    %v4593 = vld [vmem:[#allocation17 + $0x1e0] sm:$0xff]
    %v4594 = vld [vmem:[#allocation17 + $0x1e8] sm:$0xff]
    %v4595 = vld [vmem:[#allocation17 + $0x1f0] sm:$0xff]
    %v4596 = vld [vmem:[#allocation17 + $0x1f8] sm:$0xff]
    %v4597 = vld [vmem:[#allocation17 + $0x200] sm:$0xff]
    %v4598 = vld [vmem:[#allocation17 + $0x208] sm:$0xff]
    %v4599 = vld [vmem:[#allocation17 + $0x210] sm:$0xff]
    %v4600 = vld [vmem:[#allocation17 + $0x218] sm:$0xff]
    %v4601 = vld [vmem:[#allocation17 + $0x220] sm:$0xff]
    %v4602 = vld [vmem:[#allocation17 + $0x228] sm:$0xff]
    %v4603 = vld [vmem:[#allocation17 + $0x230] sm:$0xff]
    %v4604 = vld [vmem:[#allocation17 + $0x238] sm:$0xff]
    %v4605 = vld [vmem:[#allocation17 + $0x240] sm:$0xff]
    %v4606 = vld [vmem:[#allocation17 + $0x248] sm:$0xff]
    %v4607 = vld [vmem:[#allocation17 + $0x250] sm:$0xff]
    %v4608 = vld [vmem:[#allocation17 + $0x258] sm:$0xff]
    %v4609 = vld [vmem:[#allocation17 + $0x260] sm:$0xff]
    %v4610 = vld [vmem:[#allocation17 + $0x268] sm:$0xff]
    %v4611 = vld [vmem:[#allocation17 + $0x270] sm:$0xff]
    %v4612 = vld [vmem:[#allocation17 + $0x278] sm:$0xff]
    %v4613 = vld [vmem:[#allocation17 + $0x280] sm:$0xff]
    %v4614 = vld [vmem:[#allocation17 + $0x288] sm:$0xff]
    %v4615 = vld [vmem:[#allocation17 + $0x290] sm:$0xff]
    %v4616 = vld [vmem:[#allocation17 + $0x298] sm:$0xff]
    %v4617 = vld [vmem:[#allocation17 + $0x2a0] sm:$0xff]
    %v4618 = vld [vmem:[#allocation17 + $0x2a8] sm:$0xff]
    %v4619 = vld [vmem:[#allocation17 + $0x2b0] sm:$0xff]
    %v4620 = vld [vmem:[#allocation17 + $0x2b8] sm:$0xff]
    %v4621 = vld [vmem:[#allocation17 + $0x2c0] sm:$0xff]
    %v4622 = vld [vmem:[#allocation17 + $0x2c8] sm:$0xff]
    %v4623 = vld [vmem:[#allocation17 + $0x2d0] sm:$0xff]
    %v4624 = vld [vmem:[#allocation17 + $0x2d8] sm:$0xff]
    %v4625 = vld [vmem:[#allocation17 + $0x2e0] sm:$0xff]
    %v4626 = vld [vmem:[#allocation17 + $0x2e8] sm:$0xff]
    %v4627 = vld [vmem:[#allocation17 + $0x2f0] sm:$0xff]
    %v4628 = vld [vmem:[#allocation17 + $0x2f8] sm:$0xff]
    %v4629 = vld [vmem:[#allocation17 + $0x300] sm:$0xff]
    %v4630 = vld [vmem:[#allocation17 + $0x308] sm:$0xff]
    %v4631 = vld [vmem:[#allocation17 + $0x310] sm:$0xff]
    %v4632 = vld [vmem:[#allocation17 + $0x318] sm:$0xff]
    %v4633 = vld [vmem:[#allocation17 + $0x320] sm:$0xff]
    %v4634 = vld [vmem:[#allocation17 + $0x328] sm:$0xff]
    %v4635 = vld [vmem:[#allocation17 + $0x330] sm:$0xff]
    %v4636 = vld [vmem:[#allocation17 + $0x338] sm:$0xff]
    %v4637 = vld [vmem:[#allocation17 + $0x340] sm:$0xff]
    %v4638 = vld [vmem:[#allocation17 + $0x348] sm:$0xff]
    %v4639 = vld [vmem:[#allocation17 + $0x350] sm:$0xff]
    %v4640 = vld [vmem:[#allocation17 + $0x358] sm:$0xff]
    %v4641 = vld [vmem:[#allocation17 + $0x360] sm:$0xff]
    %v4642 = vld [vmem:[#allocation17 + $0x368] sm:$0xff]
    %v4643 = vld [vmem:[#allocation17 + $0x370] sm:$0xff]
    %v4644 = vld [vmem:[#allocation17 + $0x378] sm:$0xff]
    %v4645 = vld [vmem:[#allocation17 + $0x380] sm:$0xff]
    %v4646 = vld [vmem:[#allocation17 + $0x388] sm:$0xff]
    %v4647 = vld [vmem:[#allocation17 + $0x390] sm:$0xff]
    %v4648 = vld [vmem:[#allocation17 + $0x398] sm:$0xff]
    %v4649 = vld [vmem:[#allocation17 + $0x3a0] sm:$0xff]
    %v4650 = vld [vmem:[#allocation17 + $0x3a8] sm:$0xff]
    %v4651 = vld [vmem:[#allocation17 + $0x3b0] sm:$0xff]
    %v4652 = vld [vmem:[#allocation17 + $0x3b8] sm:$0xff]
    %v4653 = vld [vmem:[#allocation17 + $0x3c0] sm:$0xff]
    %v4654 = vld [vmem:[#allocation17 + $0x3c8] sm:$0xff]
    %v4655 = vld [vmem:[#allocation17 + $0x3d0] sm:$0xff]
    %v4656 = vld [vmem:[#allocation17 + $0x3d8] sm:$0xff]
    %v4657 = vld [vmem:[#allocation17 + $0x3e0] sm:$0xff]
    %v4658 = vld [vmem:[#allocation17 + $0x3e8] sm:$0xff]
    %v4659 = vld [vmem:[#allocation17 + $0x3f0] sm:$0xff]
    %v4660 = vld [vmem:[#allocation17 + $0x3f8] sm:$0xff]
    %v4661 = vld [vmem:[%s17] sm:$0x3]
    %v4663 = vlaneseq
    %v4664 = vshrl.u32 %v4663, 7
    %v4665 = vsub.s32 0, %v4664
    %v4666 = vrot.slane %v4661, %v4665
    %v4667 = vlaneseq
    %v4668 = vshrl.u32 %v4667, 7
    %v4669 = vsub.s32 1, %v4668
    %v4670 = vrot.slane %v4661, %v4669
    %v4801 = vunpack.c.l.b16 %v4533
    %v4802 = vunpack.c.h.b16 %v4533
    %v4803 = vunpack.c.l.b16 %v4534
    %v4804 = vunpack.c.h.b16 %v4534
    %v4805 = vunpack.c.l.b16 %v4535
    %v4806 = vunpack.c.h.b16 %v4535
    %v4807 = vunpack.c.l.b16 %v4536
    %v4808 = vunpack.c.h.b16 %v4536
    %v4809 = vunpack.c.l.b16 %v4537
    %v4810 = vunpack.c.h.b16 %v4537
    %v4811 = vunpack.c.l.b16 %v4538
    %v4812 = vunpack.c.h.b16 %v4538
    %v4813 = vunpack.c.l.b16 %v4539
    %v4814 = vunpack.c.h.b16 %v4539
    %v4815 = vunpack.c.l.b16 %v4540
    %v4816 = vunpack.c.h.b16 %v4540
    %v4817 = vunpack.c.l.b16 %v4541
    %v4818 = vunpack.c.h.b16 %v4541
    %v4819 = vunpack.c.l.b16 %v4542
    %v4820 = vunpack.c.h.b16 %v4542
    %v4821 = vunpack.c.l.b16 %v4543
    %v4822 = vunpack.c.h.b16 %v4543
    %v4823 = vunpack.c.l.b16 %v4544
    %v4824 = vunpack.c.h.b16 %v4544
    %v4825 = vunpack.c.l.b16 %v4545
    %v4826 = vunpack.c.h.b16 %v4545
    %v4827 = vunpack.c.l.b16 %v4546
    %v4828 = vunpack.c.h.b16 %v4546
    %v4829 = vunpack.c.l.b16 %v4547
    %v4830 = vunpack.c.h.b16 %v4547
    %v4831 = vunpack.c.l.b16 %v4548
    %v4832 = vunpack.c.h.b16 %v4548
    %v4833 = vunpack.c.l.b16 %v4549
    %v4834 = vunpack.c.h.b16 %v4549
    %v4835 = vunpack.c.l.b16 %v4550
    %v4836 = vunpack.c.h.b16 %v4550
    %v4837 = vunpack.c.l.b16 %v4551
    %v4838 = vunpack.c.h.b16 %v4551
    %v4839 = vunpack.c.l.b16 %v4552
    %v4840 = vunpack.c.h.b16 %v4552
    %v4841 = vunpack.c.l.b16 %v4553
    %v4842 = vunpack.c.h.b16 %v4553
    %v4843 = vunpack.c.l.b16 %v4554
    %v4844 = vunpack.c.h.b16 %v4554
    %v4845 = vunpack.c.l.b16 %v4555
    %v4846 = vunpack.c.h.b16 %v4555
    %v4847 = vunpack.c.l.b16 %v4556
    %v4848 = vunpack.c.h.b16 %v4556
    %v4849 = vunpack.c.l.b16 %v4557
    %v4850 = vunpack.c.h.b16 %v4557
    %v4851 = vunpack.c.l.b16 %v4558
    %v4852 = vunpack.c.h.b16 %v4558
    %v4853 = vunpack.c.l.b16 %v4559
    %v4854 = vunpack.c.h.b16 %v4559
    %v4855 = vunpack.c.l.b16 %v4560
    %v4856 = vunpack.c.h.b16 %v4560
    %v4857 = vunpack.c.l.b16 %v4561
    %v4858 = vunpack.c.h.b16 %v4561
    %v4859 = vunpack.c.l.b16 %v4562
    %v4860 = vunpack.c.h.b16 %v4562
    %v4861 = vunpack.c.l.b16 %v4563
    %v4862 = vunpack.c.h.b16 %v4563
    %v4863 = vunpack.c.l.b16 %v4564
    %v4864 = vunpack.c.h.b16 %v4564
    %v4865 = vunpack.c.l.b16 %v4565
    %v4866 = vunpack.c.h.b16 %v4565
    %v4867 = vunpack.c.l.b16 %v4566
    %v4868 = vunpack.c.h.b16 %v4566
    %v4869 = vunpack.c.l.b16 %v4567
    %v4870 = vunpack.c.h.b16 %v4567
    %v4871 = vunpack.c.l.b16 %v4568
    %v4872 = vunpack.c.h.b16 %v4568
    %v4873 = vunpack.c.l.b16 %v4569
    %v4874 = vunpack.c.h.b16 %v4569
    %v4875 = vunpack.c.l.b16 %v4570
    %v4876 = vunpack.c.h.b16 %v4570
    %v4877 = vunpack.c.l.b16 %v4571
    %v4878 = vunpack.c.h.b16 %v4571
    %v4879 = vunpack.c.l.b16 %v4572
    %v4880 = vunpack.c.h.b16 %v4572
    %v4881 = vunpack.c.l.b16 %v4573
    %v4882 = vunpack.c.h.b16 %v4573
    %v4883 = vunpack.c.l.b16 %v4574
    %v4884 = vunpack.c.h.b16 %v4574
    %v4885 = vunpack.c.l.b16 %v4575
    %v4886 = vunpack.c.h.b16 %v4575
    %v4887 = vunpack.c.l.b16 %v4576
    %v4888 = vunpack.c.h.b16 %v4576
    %v4889 = vunpack.c.l.b16 %v4577
    %v4890 = vunpack.c.h.b16 %v4577
    %v4891 = vunpack.c.l.b16 %v4578
    %v4892 = vunpack.c.h.b16 %v4578
    %v4893 = vunpack.c.l.b16 %v4579
    %v4894 = vunpack.c.h.b16 %v4579
    %v4895 = vunpack.c.l.b16 %v4580
    %v4896 = vunpack.c.h.b16 %v4580
    %v4897 = vunpack.c.l.b16 %v4581
    %v4898 = vunpack.c.h.b16 %v4581
    %v4899 = vunpack.c.l.b16 %v4582
    %v4900 = vunpack.c.h.b16 %v4582
    %v4901 = vunpack.c.l.b16 %v4583
    %v4902 = vunpack.c.h.b16 %v4583
    %v4903 = vunpack.c.l.b16 %v4584
    %v4904 = vunpack.c.h.b16 %v4584
    %v4905 = vunpack.c.l.b16 %v4585
    %v4906 = vunpack.c.h.b16 %v4585
    %v4907 = vunpack.c.l.b16 %v4586
    %v4908 = vunpack.c.h.b16 %v4586
    %v4909 = vunpack.c.l.b16 %v4587
    %v4910 = vunpack.c.h.b16 %v4587
    %v4911 = vunpack.c.l.b16 %v4588
    %v4912 = vunpack.c.h.b16 %v4588
    %v4913 = vunpack.c.l.b16 %v4589
    %v4914 = vunpack.c.h.b16 %v4589
    %v4915 = vunpack.c.l.b16 %v4590
    %v4916 = vunpack.c.h.b16 %v4590
    %v4917 = vunpack.c.l.b16 %v4591
    %v4918 = vunpack.c.h.b16 %v4591
    %v4919 = vunpack.c.l.b16 %v4592
    %v4920 = vunpack.c.h.b16 %v4592
    %v4921 = vunpack.c.l.b16 %v4593
    %v4922 = vunpack.c.h.b16 %v4593
    %v4923 = vunpack.c.l.b16 %v4594
    %v4924 = vunpack.c.h.b16 %v4594
    %v4925 = vunpack.c.l.b16 %v4595
    %v4926 = vunpack.c.h.b16 %v4595
    %v4927 = vunpack.c.l.b16 %v4596
    %v4928 = vunpack.c.h.b16 %v4596
    %v4929 = vunpack.c.l.b16 %v4597
    %v4930 = vunpack.c.h.b16 %v4597
    %v4931 = vunpack.c.l.b16 %v4598
    %v4932 = vunpack.c.h.b16 %v4598
    %v4933 = vunpack.c.l.b16 %v4599
    %v4934 = vunpack.c.h.b16 %v4599
    %v4935 = vunpack.c.l.b16 %v4600
    %v4936 = vunpack.c.h.b16 %v4600
    %v4937 = vunpack.c.l.b16 %v4601
    %v4938 = vunpack.c.h.b16 %v4601
    %v4939 = vunpack.c.l.b16 %v4602
    %v4940 = vunpack.c.h.b16 %v4602
    %v4941 = vunpack.c.l.b16 %v4603
    %v4942 = vunpack.c.h.b16 %v4603
    %v4943 = vunpack.c.l.b16 %v4604
    %v4944 = vunpack.c.h.b16 %v4604
    %v4945 = vunpack.c.l.b16 %v4605
    %v4946 = vunpack.c.h.b16 %v4605
    %v4947 = vunpack.c.l.b16 %v4606
    %v4948 = vunpack.c.h.b16 %v4606
    %v4949 = vunpack.c.l.b16 %v4607
    %v4950 = vunpack.c.h.b16 %v4607
    %v4951 = vunpack.c.l.b16 %v4608
    %v4952 = vunpack.c.h.b16 %v4608
    %v4953 = vunpack.c.l.b16 %v4609
    %v4954 = vunpack.c.h.b16 %v4609
    %v4955 = vunpack.c.l.b16 %v4610
    %v4956 = vunpack.c.h.b16 %v4610
    %v4957 = vunpack.c.l.b16 %v4611
    %v4958 = vunpack.c.h.b16 %v4611
    %v4959 = vunpack.c.l.b16 %v4612
    %v4960 = vunpack.c.h.b16 %v4612
    %v4961 = vunpack.c.l.b16 %v4613
    %v4962 = vunpack.c.h.b16 %v4613
    %v4963 = vunpack.c.l.b16 %v4614
    %v4964 = vunpack.c.h.b16 %v4614
    %v4965 = vunpack.c.l.b16 %v4615
    %v4966 = vunpack.c.h.b16 %v4615
    %v4967 = vunpack.c.l.b16 %v4616
    %v4968 = vunpack.c.h.b16 %v4616
    %v4969 = vunpack.c.l.b16 %v4617
    %v4970 = vunpack.c.h.b16 %v4617
    %v4971 = vunpack.c.l.b16 %v4618
    %v4972 = vunpack.c.h.b16 %v4618
    %v4973 = vunpack.c.l.b16 %v4619
    %v4974 = vunpack.c.h.b16 %v4619
    %v4975 = vunpack.c.l.b16 %v4620
    %v4976 = vunpack.c.h.b16 %v4620
    %v4977 = vunpack.c.l.b16 %v4621
    %v4978 = vunpack.c.h.b16 %v4621
    %v4979 = vunpack.c.l.b16 %v4622
    %v4980 = vunpack.c.h.b16 %v4622
    %v4981 = vunpack.c.l.b16 %v4623
    %v4982 = vunpack.c.h.b16 %v4623
    %v4983 = vunpack.c.l.b16 %v4624
    %v4984 = vunpack.c.h.b16 %v4624
    %v4985 = vunpack.c.l.b16 %v4625
    %v4986 = vunpack.c.h.b16 %v4625
    %v4987 = vunpack.c.l.b16 %v4626
    %v4988 = vunpack.c.h.b16 %v4626
    %v4989 = vunpack.c.l.b16 %v4627
    %v4990 = vunpack.c.h.b16 %v4627
    %v4991 = vunpack.c.l.b16 %v4628
    %v4992 = vunpack.c.h.b16 %v4628
    %v4993 = vunpack.c.l.b16 %v4629
    %v4994 = vunpack.c.h.b16 %v4629
    %v4995 = vunpack.c.l.b16 %v4630
    %v4996 = vunpack.c.h.b16 %v4630
    %v4997 = vunpack.c.l.b16 %v4631
    %v4998 = vunpack.c.h.b16 %v4631
    %v4999 = vunpack.c.l.b16 %v4632
    %v5000 = vunpack.c.h.b16 %v4632
    %v5001 = vunpack.c.l.b16 %v4633
    %v5002 = vunpack.c.h.b16 %v4633
    %v5003 = vunpack.c.l.b16 %v4634
    %v5004 = vunpack.c.h.b16 %v4634
    %v5005 = vunpack.c.l.b16 %v4635
    %v5006 = vunpack.c.h.b16 %v4635
    %v5007 = vunpack.c.l.b16 %v4636
    %v5008 = vunpack.c.h.b16 %v4636
    %v5009 = vunpack.c.l.b16 %v4637
    %v5010 = vunpack.c.h.b16 %v4637
    %v5011 = vunpack.c.l.b16 %v4638
    %v5012 = vunpack.c.h.b16 %v4638
    %v5013 = vunpack.c.l.b16 %v4639
    %v5014 = vunpack.c.h.b16 %v4639
    %v5015 = vunpack.c.l.b16 %v4640
    %v5016 = vunpack.c.h.b16 %v4640
    %v5017 = vunpack.c.l.b16 %v4641
    %v5018 = vunpack.c.h.b16 %v4641
    %v5019 = vunpack.c.l.b16 %v4642
    %v5020 = vunpack.c.h.b16 %v4642
    %v5021 = vunpack.c.l.b16 %v4643
    %v5022 = vunpack.c.h.b16 %v4643
    %v5023 = vunpack.c.l.b16 %v4644
    %v5024 = vunpack.c.h.b16 %v4644
    %v5025 = vunpack.c.l.b16 %v4645
    %v5026 = vunpack.c.h.b16 %v4645
    %v5027 = vunpack.c.l.b16 %v4646
    %v5028 = vunpack.c.h.b16 %v4646
    %v5029 = vunpack.c.l.b16 %v4647
    %v5030 = vunpack.c.h.b16 %v4647
    %v5031 = vunpack.c.l.b16 %v4648
    %v5032 = vunpack.c.h.b16 %v4648
    %v5033 = vunpack.c.l.b16 %v4649
    %v5034 = vunpack.c.h.b16 %v4649
    %v5035 = vunpack.c.l.b16 %v4650
    %v5036 = vunpack.c.h.b16 %v4650
    %v5037 = vunpack.c.l.b16 %v4651
    %v5038 = vunpack.c.h.b16 %v4651
    %v5039 = vunpack.c.l.b16 %v4652
    %v5040 = vunpack.c.h.b16 %v4652
    %v5041 = vunpack.c.l.b16 %v4653
    %v5042 = vunpack.c.h.b16 %v4653
    %v5043 = vunpack.c.l.b16 %v4654
    %v5044 = vunpack.c.h.b16 %v4654
    %v5045 = vunpack.c.l.b16 %v4655
    %v5046 = vunpack.c.h.b16 %v4655
    %v5047 = vunpack.c.l.b16 %v4656
    %v5048 = vunpack.c.h.b16 %v4656
    %v5049 = vunpack.c.l.b16 %v4657
    %v5050 = vunpack.c.h.b16 %v4657
    %v5051 = vunpack.c.l.b16 %v4658
    %v5052 = vunpack.c.h.b16 %v4658
    %v5053 = vunpack.c.l.b16 %v4659
    %v5054 = vunpack.c.h.b16 %v4659
    %v5055 = vunpack.c.l.b16 %v4660
    %v5056 = vunpack.c.h.b16 %v4660
    %v5057 = vpack.c.b16 %v4803, %v4801
    %v5058 = vpack.c.b16 %v4804, %v4802
    %v5059 = vpack.c.b16 %v4807, %v4805
    %v5060 = vpack.c.b16 %v4808, %v4806
    %v5061 = vpack.c.b16 %v4811, %v4809
    %v5062 = vpack.c.b16 %v4812, %v4810
    %v5063 = vpack.c.b16 %v4815, %v4813
    %v5064 = vpack.c.b16 %v4816, %v4814
    %v5065 = vpack.c.b16 %v4819, %v4817
    %v5066 = vpack.c.b16 %v4820, %v4818
    %v5067 = vpack.c.b16 %v4823, %v4821
    %v5068 = vpack.c.b16 %v4824, %v4822
    %v5069 = vpack.c.b16 %v4827, %v4825
    %v5070 = vpack.c.b16 %v4828, %v4826
    %v5071 = vpack.c.b16 %v4831, %v4829
    %v5072 = vpack.c.b16 %v4832, %v4830
    %v5073 = vpack.c.b16 %v4835, %v4833
    %v5074 = vpack.c.b16 %v4836, %v4834
    %v5075 = vpack.c.b16 %v4839, %v4837
    %v5076 = vpack.c.b16 %v4840, %v4838
    %v5077 = vpack.c.b16 %v4843, %v4841
    %v5078 = vpack.c.b16 %v4844, %v4842
    %v5079 = vpack.c.b16 %v4847, %v4845
    %v5080 = vpack.c.b16 %v4848, %v4846
    %v5081 = vpack.c.b16 %v4851, %v4849
    %v5082 = vpack.c.b16 %v4852, %v4850
    %v5083 = vpack.c.b16 %v4855, %v4853
    %v5084 = vpack.c.b16 %v4856, %v4854
    %v5085 = vpack.c.b16 %v4859, %v4857
    %v5086 = vpack.c.b16 %v4860, %v4858
    %v5087 = vpack.c.b16 %v4863, %v4861
    %v5088 = vpack.c.b16 %v4864, %v4862
    %v5089 = vpack.c.b16 %v4867, %v4865
    %v5090 = vpack.c.b16 %v4868, %v4866
    %v5091 = vpack.c.b16 %v4871, %v4869
    %v5092 = vpack.c.b16 %v4872, %v4870
    %v5093 = vpack.c.b16 %v4875, %v4873
    %v5094 = vpack.c.b16 %v4876, %v4874
    %v5095 = vpack.c.b16 %v4879, %v4877
    %v5096 = vpack.c.b16 %v4880, %v4878
    %v5097 = vpack.c.b16 %v4883, %v4881
    %v5098 = vpack.c.b16 %v4884, %v4882
    %v5099 = vpack.c.b16 %v4887, %v4885
    %v5100 = vpack.c.b16 %v4888, %v4886
    %v5101 = vpack.c.b16 %v4891, %v4889
    %v5102 = vpack.c.b16 %v4892, %v4890
    %v5103 = vpack.c.b16 %v4895, %v4893
    %v5104 = vpack.c.b16 %v4896, %v4894
    %v5105 = vpack.c.b16 %v4899, %v4897
    %v5106 = vpack.c.b16 %v4900, %v4898
    %v5107 = vpack.c.b16 %v4903, %v4901
    %v5108 = vpack.c.b16 %v4904, %v4902
    %v5109 = vpack.c.b16 %v4907, %v4905
    %v5110 = vpack.c.b16 %v4908, %v4906
    %v5111 = vpack.c.b16 %v4911, %v4909
    %v5112 = vpack.c.b16 %v4912, %v4910
    %v5113 = vpack.c.b16 %v4915, %v4913
    %v5114 = vpack.c.b16 %v4916, %v4914
    %v5115 = vpack.c.b16 %v4919, %v4917
    %v5116 = vpack.c.b16 %v4920, %v4918
    %v5117 = vpack.c.b16 %v4923, %v4921
    %v5118 = vpack.c.b16 %v4924, %v4922
    %v5119 = vpack.c.b16 %v4927, %v4925
    %v5120 = vpack.c.b16 %v4928, %v4926
    %v5121 = vpack.c.b16 %v4931, %v4929
    %v5122 = vpack.c.b16 %v4932, %v4930
    %v5123 = vpack.c.b16 %v4935, %v4933
    %v5124 = vpack.c.b16 %v4936, %v4934
    %v5125 = vpack.c.b16 %v4939, %v4937
    %v5126 = vpack.c.b16 %v4940, %v4938
    %v5127 = vpack.c.b16 %v4943, %v4941
    %v5128 = vpack.c.b16 %v4944, %v4942
    %v5129 = vpack.c.b16 %v4947, %v4945
    %v5130 = vpack.c.b16 %v4948, %v4946
    %v5131 = vpack.c.b16 %v4951, %v4949
    %v5132 = vpack.c.b16 %v4952, %v4950
    %v5133 = vpack.c.b16 %v4955, %v4953
    %v5134 = vpack.c.b16 %v4956, %v4954
    %v5135 = vpack.c.b16 %v4959, %v4957
    %v5136 = vpack.c.b16 %v4960, %v4958
    %v5137 = vpack.c.b16 %v4963, %v4961
    %v5138 = vpack.c.b16 %v4964, %v4962
    %v5139 = vpack.c.b16 %v4967, %v4965
    %v5140 = vpack.c.b16 %v4968, %v4966
    %v5141 = vpack.c.b16 %v4971, %v4969
    %v5142 = vpack.c.b16 %v4972, %v4970
    %v5143 = vpack.c.b16 %v4975, %v4973
    %v5144 = vpack.c.b16 %v4976, %v4974
    %v5145 = vpack.c.b16 %v4979, %v4977
    %v5146 = vpack.c.b16 %v4980, %v4978
    %v5147 = vpack.c.b16 %v4983, %v4981
    %v5148 = vpack.c.b16 %v4984, %v4982
    %v5149 = vpack.c.b16 %v4987, %v4985
    %v5150 = vpack.c.b16 %v4988, %v4986
    %v5151 = vpack.c.b16 %v4991, %v4989
    %v5152 = vpack.c.b16 %v4992, %v4990
    %v5153 = vpack.c.b16 %v4995, %v4993
    %v5154 = vpack.c.b16 %v4996, %v4994
    %v5155 = vpack.c.b16 %v4999, %v4997
    %v5156 = vpack.c.b16 %v5000, %v4998
    %v5157 = vpack.c.b16 %v5003, %v5001
    %v5158 = vpack.c.b16 %v5004, %v5002
    %v5159 = vpack.c.b16 %v5007, %v5005
    %v5160 = vpack.c.b16 %v5008, %v5006
    %v5161 = vpack.c.b16 %v5011, %v5009
    %v5162 = vpack.c.b16 %v5012, %v5010
    %v5163 = vpack.c.b16 %v5015, %v5013
    %v5164 = vpack.c.b16 %v5016, %v5014
    %v5165 = vpack.c.b16 %v5019, %v5017
    %v5166 = vpack.c.b16 %v5020, %v5018
    %v5167 = vpack.c.b16 %v5023, %v5021
    %v5168 = vpack.c.b16 %v5024, %v5022
    %v5169 = vpack.c.b16 %v5027, %v5025
    %v5170 = vpack.c.b16 %v5028, %v5026
    %v5171 = vpack.c.b16 %v5031, %v5029
    %v5172 = vpack.c.b16 %v5032, %v5030
    %v5173 = vpack.c.b16 %v5035, %v5033
    %v5174 = vpack.c.b16 %v5036, %v5034
    %v5175 = vpack.c.b16 %v5039, %v5037
    %v5176 = vpack.c.b16 %v5040, %v5038
    %v5177 = vpack.c.b16 %v5043, %v5041
    %v5178 = vpack.c.b16 %v5044, %v5042
    %v5179 = vpack.c.b16 %v5047, %v5045
    %v5180 = vpack.c.b16 %v5048, %v5046
    %v5181 = vpack.c.b16 %v5051, %v5049
    %v5182 = vpack.c.b16 %v5052, %v5050
    %v5183 = vpack.c.b16 %v5055, %v5053
    %v5184 = vpack.c.b16 %v5056, %v5054
    %5313 = vmatprep.subr.bf16.mxu0 %v5058
    %5314 = vmatpush1.bf16.msra.mxu0 %v5057
    %5315 = vmatprep.subr.bf16.mxu0 %v5060
    %5316 = vmatpush1.bf16.msra.mxu0 %v5059
    %5317 = vmatprep.subr.bf16.mxu0 %v5062
    %5318 = vmatpush1.bf16.msra.mxu0 %v5061
    %5319 = vmatprep.subr.bf16.mxu0 %v5064
    %5320 = vmatpush1.bf16.msra.mxu0 %v5063
    %5321 = vmatprep.subr.bf16.mxu0 %v5066
    %5322 = vmatpush1.bf16.msra.mxu0 %v5065
    %5323 = vmatprep.subr.bf16.mxu0 %v5068
    %5324 = vmatpush1.bf16.msra.mxu0 %v5067
    %5325 = vmatprep.subr.bf16.mxu0 %v5070
    %5326 = vmatpush1.bf16.msra.mxu0 %v5069
    %5327 = vmatprep.subr.bf16.mxu0 %v5072
    %5328 = vmatpush1.bf16.msra.mxu0 %v5071
    %5329 = vmatprep.subr.bf16.mxu0 %v5074
    %5330 = vmatpush1.bf16.msra.mxu0 %v5073
    %5331 = vmatprep.subr.bf16.mxu0 %v5076
    %5332 = vmatpush1.bf16.msra.mxu0 %v5075
    %5333 = vmatprep.subr.bf16.mxu0 %v5078
    %5334 = vmatpush1.bf16.msra.mxu0 %v5077
    %5335 = vmatprep.subr.bf16.mxu0 %v5080
    %5336 = vmatpush1.bf16.msra.mxu0 %v5079
    %5337 = vmatprep.subr.bf16.mxu0 %v5082
    %5338 = vmatpush1.bf16.msra.mxu0 %v5081
    %5339 = vmatprep.subr.bf16.mxu0 %v5084
    %5340 = vmatpush1.bf16.msra.mxu0 %v5083
    %5341 = vmatprep.subr.bf16.mxu0 %v5086
    %5342 = vmatpush1.bf16.msra.mxu0 %v5085
    %5343 = vmatprep.subr.bf16.mxu0 %v5088
    %5344 = vmatpush1.bf16.msra.mxu0 %v5087
    %5345 = vmatprep.mubr.bf16.mxu0 %v4526
    %5346 = vmatmul.mubr.bf16.gmra.mrb[0].mxu0 %v4525
    %v5347 = vpop.f32.mrb[0].mxu0
    %v5348 = vadd.f32 %v4666, %v5347
    %v5349 = vpop.f32.mrb[0].mxu0
    %v5350 = vadd.f32 %v4670, %v5349
    %v5351 = vpop.f32.mrb[0].mxu0
    %v5352 = vadd.f32 %v4666, %v5351
    %v5353 = vpop.f32.mrb[0].mxu0
    %v5354 = vadd.f32 %v4670, %v5353
    %5355 = vdwg.mxu0
    %5356 = vmatprep.subr.bf16.mxu0 %v5090
    %5357 = vmatpush1.bf16.msra.mxu0 %v5089
    %5358 = vmatprep.subr.bf16.mxu0 %v5092
    %5359 = vmatpush1.bf16.msra.mxu0 %v5091
    %5360 = vmatprep.subr.bf16.mxu0 %v5094
    %5361 = vmatpush1.bf16.msra.mxu0 %v5093
    %5362 = vmatprep.subr.bf16.mxu0 %v5096
    %5363 = vmatpush1.bf16.msra.mxu0 %v5095
    %5364 = vmatprep.subr.bf16.mxu0 %v5098
    %5365 = vmatpush1.bf16.msra.mxu0 %v5097
    %5366 = vmatprep.subr.bf16.mxu0 %v5100
    %5367 = vmatpush1.bf16.msra.mxu0 %v5099
    %5368 = vmatprep.subr.bf16.mxu0 %v5102
    %5369 = vmatpush1.bf16.msra.mxu0 %v5101
    %5370 = vmatprep.subr.bf16.mxu0 %v5104
    %5371 = vmatpush1.bf16.msra.mxu0 %v5103
    %5372 = vmatprep.subr.bf16.mxu0 %v5106
    %5373 = vmatpush1.bf16.msra.mxu0 %v5105
    %5374 = vmatprep.subr.bf16.mxu0 %v5108
    %5375 = vmatpush1.bf16.msra.mxu0 %v5107
    %5376 = vmatprep.subr.bf16.mxu0 %v5110
    %5377 = vmatpush1.bf16.msra.mxu0 %v5109
    %5378 = vmatprep.subr.bf16.mxu0 %v5112
    %5379 = vmatpush1.bf16.msra.mxu0 %v5111
    %5380 = vmatprep.subr.bf16.mxu0 %v5114
    %5381 = vmatpush1.bf16.msra.mxu0 %v5113
    %5382 = vmatprep.subr.bf16.mxu0 %v5116
    %5383 = vmatpush1.bf16.msra.mxu0 %v5115
    %5384 = vmatprep.subr.bf16.mxu0 %v5118
    %5385 = vmatpush1.bf16.msra.mxu0 %v5117
    %5386 = vmatprep.subr.bf16.mxu0 %v5120
    %5387 = vmatpush1.bf16.msra.mxu0 %v5119
    %5388 = vmatprep.mubr.bf16.mxu0 %v4528
    %5389 = vmatmul.mubr.bf16.gmra.mrb[0].mxu0 %v4527
    %v5390 = vpop.f32.mrb[0].mxu0
    %v5391 = vadd.f32 %v5348, %v5390
    %v5392 = vpop.f32.mrb[0].mxu0
    %v5393 = vadd.f32 %v5350, %v5392
    %v5394 = vpop.f32.mrb[0].mxu0
    %v5395 = vadd.f32 %v5352, %v5394
    %v5396 = vpop.f32.mrb[0].mxu0
    %v5397 = vadd.f32 %v5354, %v5396
    %5398 = vdwg.mxu0
    %5399 = vmatprep.subr.bf16.mxu0 %v5122
    %5400 = vmatpush1.bf16.msra.mxu0 %v5121
    %5401 = vmatprep.subr.bf16.mxu0 %v5124
    %5402 = vmatpush1.bf16.msra.mxu0 %v5123
    %5403 = vmatprep.subr.bf16.mxu0 %v5126
    %5404 = vmatpush1.bf16.msra.mxu0 %v5125
    %5405 = vmatprep.subr.bf16.mxu0 %v5128
    %5406 = vmatpush1.bf16.msra.mxu0 %v5127
    %5407 = vmatprep.subr.bf16.mxu0 %v5130
    %5408 = vmatpush1.bf16.msra.mxu0 %v5129
    %5409 = vmatprep.subr.bf16.mxu0 %v5132
    %5410 = vmatpush1.bf16.msra.mxu0 %v5131
    %5411 = vmatprep.subr.bf16.mxu0 %v5134
    %5412 = vmatpush1.bf16.msra.mxu0 %v5133
    %5413 = vmatprep.subr.bf16.mxu0 %v5136
    %5414 = vmatpush1.bf16.msra.mxu0 %v5135
    %5415 = vmatprep.subr.bf16.mxu0 %v5138
    %5416 = vmatpush1.bf16.msra.mxu0 %v5137
    %5417 = vmatprep.subr.bf16.mxu0 %v5140
    %5418 = vmatpush1.bf16.msra.mxu0 %v5139
    %5419 = vmatprep.subr.bf16.mxu0 %v5142
    %5420 = vmatpush1.bf16.msra.mxu0 %v5141
    %5421 = vmatprep.subr.bf16.mxu0 %v5144
    %5422 = vmatpush1.bf16.msra.mxu0 %v5143
    %5423 = vmatprep.subr.bf16.mxu0 %v5146
    %5424 = vmatpush1.bf16.msra.mxu0 %v5145
    %5425 = vmatprep.subr.bf16.mxu0 %v5148
    %5426 = vmatpush1.bf16.msra.mxu0 %v5147
    %5427 = vmatprep.subr.bf16.mxu0 %v5150
    %5428 = vmatpush1.bf16.msra.mxu0 %v5149
    %5429 = vmatprep.subr.bf16.mxu0 %v5152
    %5430 = vmatpush1.bf16.msra.mxu0 %v5151
    %5431 = vmatprep.mubr.bf16.mxu0 %v4530
    %5432 = vmatmul.mubr.bf16.gmra.mrb[0].mxu0 %v4529
    %v5433 = vpop.f32.mrb[0].mxu0
    %v5434 = vadd.f32 %v5391, %v5433
    %v5435 = vpop.f32.mrb[0].mxu0
    %v5436 = vadd.f32 %v5393, %v5435
    %v5437 = vpop.f32.mrb[0].mxu0
    %v5438 = vadd.f32 %v5395, %v5437
    %v5439 = vpop.f32.mrb[0].mxu0
    %v5440 = vadd.f32 %v5397, %v5439
    %5441 = vdwg.mxu0
    %5442 = vmatprep.subr.bf16.mxu0 %v5154
    %5443 = vmatpush1.bf16.msra.mxu0 %v5153
    %5444 = vmatprep.subr.bf16.mxu0 %v5156
    %5445 = vmatpush1.bf16.msra.mxu0 %v5155
    %5446 = vmatprep.subr.bf16.mxu0 %v5158
    %5447 = vmatpush1.bf16.msra.mxu0 %v5157
    %5448 = vmatprep.subr.bf16.mxu0 %v5160
    %5449 = vmatpush1.bf16.msra.mxu0 %v5159
    %5450 = vmatprep.subr.bf16.mxu0 %v5162
    %5451 = vmatpush1.bf16.msra.mxu0 %v5161
    %5452 = vmatprep.subr.bf16.mxu0 %v5164
    %5453 = vmatpush1.bf16.msra.mxu0 %v5163
    %5454 = vmatprep.subr.bf16.mxu0 %v5166
    %5455 = vmatpush1.bf16.msra.mxu0 %v5165
    %5456 = vmatprep.subr.bf16.mxu0 %v5168
    %5457 = vmatpush1.bf16.msra.mxu0 %v5167
    %5458 = vmatprep.subr.bf16.mxu0 %v5170
    %5459 = vmatpush1.bf16.msra.mxu0 %v5169
    %5460 = vmatprep.subr.bf16.mxu0 %v5172
    %5461 = vmatpush1.bf16.msra.mxu0 %v5171
    %5462 = vmatprep.subr.bf16.mxu0 %v5174
    %5463 = vmatpush1.bf16.msra.mxu0 %v5173
    %5464 = vmatprep.subr.bf16.mxu0 %v5176
    %5465 = vmatpush1.bf16.msra.mxu0 %v5175
    %5466 = vmatprep.subr.bf16.mxu0 %v5178
    %5467 = vmatpush1.bf16.msra.mxu0 %v5177
    %5468 = vmatprep.subr.bf16.mxu0 %v5180
    %5469 = vmatpush1.bf16.msra.mxu0 %v5179
    %5470 = vmatprep.subr.bf16.mxu0 %v5182
    %5471 = vmatpush1.bf16.msra.mxu0 %v5181
    %5472 = vmatprep.subr.bf16.mxu0 %v5184
    %5473 = vmatpush1.bf16.msra.mxu0 %v5183
    %5474 = vmatprep.mubr.bf16.mxu0 %v4532
    %5475 = vmatmul.mubr.bf16.gmra.mrb[0].mxu0 %v4531
    %v5476 = vpop.f32.mrb[0].mxu0
    %v5477 = vadd.f32 %v5434, %v5476
    %v5478 = vpop.f32.mrb[0].mxu0
    %v5479 = vadd.f32 %v5436, %v5478
    %v5480 = vpop.f32.mrb[0].mxu0
    %v5481 = vadd.f32 %v5438, %v5480
    %v5482 = vpop.f32.mrb[0].mxu0
    %v5483 = vadd.f32 %v5440, %v5482
    %5484 = vdwg.mxu0
    %5485 = vst [vmem:[#allocation20] sm:$0xff] %v5477
    %5486 = vst [vmem:[#allocation20 + $0x8] sm:$0xff] %v5479
    %5487 = vst [vmem:[#allocation20 + $0x10] sm:$0xff] %v5481
    %5488 = vst [vmem:[#allocation20 + $0x18] sm:$0xff] %v5483
    // Predicated region
    $region114: #{tpu_custom_call.1} parent=1 // pred_check
      _
    $region115: #{tpu_custom_call.1} parent=1 // pred_check_branch
      %5490 = sbr.rel (0) target = $region117
    $region116: #{tpu_custom_call.1} parent=1 // pred_region
      %s5492 = ssub.s32 256, 256
      %5493 = vsyncadd [#allocation4], %s5492
      %s5494 = sshll.u32 [#allocation19], 4
      %s5495 = int_to_ptr.vmem [resolvable:$true] %s5494
      %5500 = dma.vmem_to_hbm [thread:$0]  %s5495, 256, %s18, [#allocation4], 128, 128, 8
    $region117: #{tpu_custom_call.1} parent=1 // pred_fallthru
      _
    // Predicated region
    $region118: #{tpu_custom_call.1} parent=1 // pred_check
      _
    $region119: #{tpu_custom_call.1} parent=1 // pred_check_branch
      %5502 = sbr.rel (0) target = $region121
    $region120: #{tpu_custom_call.1} parent=1 // pred_region
      %s5504 = ssub.s32 512, 512
      %5505 = vsyncadd [#allocation21], %s5504
      %s5506 = sshll.u32 [#allocation20], 4
      %s5507 = int_to_ptr.vmem [resolvable:$true] %s5506
      %5512 = dma.vmem_to_hbm [thread:$0]  %s5507, 512, %s19, [#allocation21], 256, 256, 16
    $region121: #{tpu_custom_call.1} parent=1 // pred_fallthru
      _
    // Predicated region
    $region122: #{tpu_custom_call.1} parent=1 // pred_check
      _
    $region123: #{tpu_custom_call.1} parent=1 // pred_check_branch
      %5514 = sbr.rel (0) target = $region125
    $region124: #{tpu_custom_call.1} parent=1 // pred_region
      %5515 = dma.done [#allocation4], 256
    $region125: #{tpu_custom_call.1} parent=1 // pred_fallthru
      _
    // Predicated region
    $region126: #{tpu_custom_call.1} parent=1 // pred_check
      _
    $region127: #{tpu_custom_call.1} parent=1 // pred_check_branch
      %5517 = sbr.rel (0) target = $region129
    $region128: #{tpu_custom_call.1} parent=1 // pred_region
      %5518 = dma.done [#allocation21], 512
    $region129: #{tpu_custom_call.1} parent=1 // pred_fallthru
      _
    %5519 = vsyncpa [#allocation3], 1
    %5520 = vsyncpa [#allocation6], 1
    %5521 = vsyncpa [#allocation9], 1
    %5522 = vsyncpa [#allocation12], 1
    %5523 = vsyncpa [#allocation15], 1
    %5524 = vsyncpa [#allocation18], 1
    %5525 = vsyncpa [#allocation4], 1
    %5526 = vsyncpa [#allocation21], 1

</llo_original>
